<compile_context>
chip_gen: v5e
topology: v5e:2x2
jax: 0.10.0
libtpu: 0.0.40
codegen_flags: <defaults>
</compile_context>

<pallas_src>
import numpy as np
import jax
import jax.numpy as jnp
from jax import lax
from jax.experimental import pallas as pl
from jax.experimental.pallas import tpu as pltpu

_EPS = 1e-5
_HI = lax.Precision.HIGHEST
_VMEM = pl.BlockSpec(memory_space=pltpu.MemorySpace.VMEM)


# ---------------------------------------------------------------------------
# in-kernel helpers (2-D matmuls, iota/select row-stack -> all Mosaic-safe)
# ---------------------------------------------------------------------------
def _mm(a, b, precision=None):
    """a @ b (2-D), f32 accumulate."""
    return lax.dot_general(a, b, (((1,), (0,)), ((), ())),
                           preferred_element_type=jnp.float32, precision=precision)


def _mm_tb(a, b, precision=None):
    """a @ b.T (2-D), f32 accumulate."""
    return lax.dot_general(a, b, (((1,), (1,)), ((), ())),
                           preferred_element_type=jnp.float32, precision=precision)


def _stack2(a, b):
    """Stack two (1, L) rows into (2, L) via iota+select (avoids sublane concatenate)."""
    L = a.shape[1]
    r = lax.broadcasted_iota(jnp.int32, (2, L), 0)
    return jnp.where(r == 0, jnp.broadcast_to(a, (2, L)), jnp.broadcast_to(b, (2, L)))


def _dims(N, H, W, K, C1, C2):
    Ho1, Wo1 = H - K + 1, W - K + 1          # 14, 14
    Hp, Wp = Ho1 // 2, Wo1 // 2              # 7, 7
    Ho2, Wo2 = Hp - K + 1, Wp - K + 1        # 5, 5
    HpPad = -(-Hp // 8) * 8                  # pooled rows per image padded to sublane mult.
    return dict(Ho1=Ho1, Wo1=Wo1, Hp=Hp, Wp=Wp, Ho2=Ho2, Wo2=Wo2,
                L1=C1 * Wo1, L2=C2 * Wo2,    # 448, 160 lane-dense widths
                M1=N * H - K + 1,            # conv1 slab output rows (30)
                HpPad=HpPad,                 # 8
                M2=N * HpPad - K + 1)        # conv2 slab output rows (14)


# ---------------------------------------------------------------------------
# fused kernel
# ---------------------------------------------------------------------------
def _make_convnet2_kernel(N, H, W, K, C1, C2, F):
    d = _dims(N, H, W, K, C1, C2)
    Ho1, Ho2 = d["Ho1"], d["Ho2"]
    M1, M2, HpPad = d["M1"], d["M2"], d["HpPad"]
    inv1 = 1.0 / float(N * d["Ho1"] * d["Wo1"])
    inv2 = 1.0 / float(N * d["Ho2"] * d["Wo2"])

    def bn_lane_scale_shift(rs, ss, Bm, g, bt, inv):
        """Single-pass BN: stacked [sum(y); sum(y^2)] -> lane-dense (scale, shift)."""
        red = _mm_tb(_stack2(rs, ss), Bm, _HI) * inv           # (2, C): [mean, E[y^2]]
        mean = red[0:1, :]
        var = red[1:2, :] - mean * mean                        # biased batch variance
        sc = g * lax.rsqrt(var + _EPS)
        sh = bt - mean * sc
        bc = _mm(_stack2(sc, sh), Bm, _HI)                     # (2, L) stacked broadcast
        return bc[0:1, :], bc[1:2, :]

    def kernel(x_ref,                         # (N*H, Cin*W) f32  lane-dense input slab
               t1_ref,                        # (K, Cin*W, L1) bf16 banded conv1 weights
               t2_ref,                        # (K, L1, L2)    bf16 banded conv2 weights (+W-pool)
               b1l_ref, g1_ref, bt1_ref,      # (1, L1), (1, C1), (1, C1)
               b2l_ref, g2_ref, bt2_ref,      # (1, L2), (1, C2), (1, C2)
               b1m_ref, b2m_ref,              # (C1, L1), (C2, L2) block-expansion matrices
               ph_ref,                        # (N*HpPad, M1) padded H-pool matrix
               gap_ref,                       # (N, M2)       GAP row-selection matrix
               wfl_ref, bf_ref,               # (L2, F) pre-folded FC weights, (1, F) bias
               o_ref,                         # (N, F)
               ah_ref):                       # scratch (N*HpPad, L1): H-pooled activations
        # ---------------- conv1: one whole-batch-slab dot per tap ----------------
        y1 = b1l_ref[...]                                          # (1, L1) broadcasts
        for ky in range(K):
            lhs = x_ref[pl.ds(ky, M1), :].astype(jnp.bfloat16)     # (M1, Cin*W)
            y1 = y1 + _mm(lhs, t1_ref[ky])                         # (M1, L1) f32

        # ---- BatchNorm1 (single pass, valid rows only) + ReLU + H-pool ----
        rs = ss = None
        for n in range(N):                    # valid rows of image n: [n*H, n*H + Ho1)
            v = y1[n * H:n * H + Ho1, :]
            s = v.sum(axis=0, keepdims=True)
            q = (v * v).sum(axis=0, keepdims=True)
            rs = s if rs is None else rs + s
            ss = q if ss is None else ss + q
        sc_l, sh_l = bn_lane_scale_shift(rs, ss, b1m_ref[...],
                                         g1_ref[...], bt1_ref[...], inv1)
        a1 = jnp.maximum(y1 * sc_l + sh_l, 0.0)                    # garbage rows harmless
        # H-pool (0.25 per row-pair); garbage rows zero-weighted; per-image rows padded to 8.
        ah_ref[...] = _mm(ph_ref[...], a1)                         # (N*HpPad, L1)

        # -------- conv2 (W-pool folded into t2): one slab dot per tap --------
        y2 = b2l_ref[...]                                          # (1, L2)
        for ky in range(K):
            lhs = ah_ref[pl.ds(ky, M2), :].astype(jnp.bfloat16)    # (M2, L1)
            y2 = y2 + _mm(lhs, t2_ref[ky])                         # (M2, L2) f32

        # ---------------- BatchNorm2 (single pass, valid rows only) + ReLU ----------------
        rs2 = ss2 = None
        for n in range(N):                    # valid rows of image n: [n*HpPad, n*HpPad + Ho2)
            v = y2[n * HpPad:n * HpPad + Ho2, :]
            s = v.sum(axis=0, keepdims=True)
            q = (v * v).sum(axis=0, keepdims=True)
            rs2 = s if rs2 is None else rs2 + s
            ss2 = q if ss2 is None else ss2 + q
        sc2_l, sh2_l = bn_lane_scale_shift(rs2, ss2, b2m_ref[...],
                                           g2_ref[...], bt2_ref[...], inv2)
        a2 = jnp.maximum(y2 * sc2_l + sh2_l, 0.0)                  # (M2, L2)

        # ----- batched epilogue: GAP rows -> Linear (1/25 + channel reduce folded) + ReLU -----
        gap_rows = _mm(gap_ref[...], a2, _HI)                      # (N, L2)
        out = _mm(gap_rows, wfl_ref[...], _HI) + bf_ref[...]       # (N, F)
        o_ref[...] = jnp.maximum(out, 0.0)

    return kernel, d


# ---------------------------------------------------------------------------
# one-time wrapper-side plumbing (runs once per weight set, plain numpy/jnp)
# ---------------------------------------------------------------------------
def _band_weights(w_hwio, pos, wo):
    """T[ky, c*W_in+u, co*wo+w] = w_hwio[ky, pos[u]-w, c, co] if 0 <= pos[u]-w < KW else 0,
    so a valid 1-D conv along W (optionally fused with the pool's width-2 sum via pos=u//2)
    becomes one lane-dense matmul per ky."""
    w = np.asarray(w_hwio, np.float32)
    kh, kw, cin, cout = w.shape
    w_in = len(pos)
    t = np.zeros((kh, cin, w_in, cout, wo), np.float32)
    for ky in range(kh):
        for u in range(w_in):
            for ww in range(wo):
                kx = int(pos[u]) - ww
                if 0 <= kx < kw:
                    t[ky, :, u, :, ww] = w[ky, kx]
    return jnp.asarray(t.reshape(kh, cin * w_in, cout * wo), jnp.bfloat16)


def _block_expand(c, wo):
    """(c, c*wo) 0/1 matrix: row ch has ones on lanes [ch*wo, (ch+1)*wo)."""
    m = np.zeros((c, c * wo), np.float32)
    for ch in range(c):
        m[ch, ch * wo:(ch + 1) * wo] = 1.0
    return jnp.asarray(m)


def prepare_params(p, N, H, W):
    """Banded bf16 conv weights, lane-dense biases, block-expansion / pool / GAP matrices and
    the pre-folded FC matrix.  Call once per weight set; reuse across forward calls."""
    K, _, _, C1 = p["w1"].shape
    C2 = p["w2"].shape[3]
    F = p["wf"].shape[1]
    d = _dims(N, H, W, K, C1, C2)
    Ho1, Wo1, Hp, Ho2, Wo2 = d["Ho1"], d["Wo1"], d["Hp"], d["Ho2"], d["Wo2"]
    M1, M2, HpPad = d["M1"], d["M2"], d["HpPad"]
    assert Ho1 % 2 == 0 and Wo1 % 2 == 0, "AvgPool2d(2,2) needs even conv1 output"

    # banded ("weight-side im2col") conv weights; conv2 folds the 2x2 pool's W-summation.
    t1 = _band_weights(p["w1"], np.arange(W), Wo1)               # (K, Cin*W, L1) bf16
    t2 = _band_weights(p["w2"], np.arange(Wo1) // 2, Wo2)        # (K, L1,    L2) bf16

    # H-pool matrix over the conv1 output slab: 0.25 on the two source rows of each pooled
    # row; zero weight on the K-1 cross-image garbage rows; Hp rows per image padded to HpPad.
    ph = np.zeros((N * HpPad, M1), np.float32)
    for n in range(N):
        for i in range(Hp):
            ph[n * HpPad + i, n * H + 2 * i] = 0.25
            ph[n * HpPad + i, n * H + 2 * i + 1] = 0.25

    # GAP row-selection matrix over the conv2 output slab (garbage rows zero-weighted).
    gp = np.zeros((N, M2), np.float32)
    for n in range(N):
        gp[n, n * HpPad:n * HpPad + Ho2] = 1.0

    # FC weights pre-folded with the channel->lane expansion and the 1/(Ho2*Wo2) GAP scale.
    wfl = np.repeat(np.asarray(p["wf"], np.float32), Wo2, axis=0) / float(Ho2 * Wo2)

    return dict(
        t1=t1, t2=t2,
        b1l=jnp.asarray(np.repeat(np.asarray(p["b1"], np.float32), Wo1)[None, :]),
        g1=jnp.asarray(p["g1"], jnp.float32).reshape(1, C1),
        bt1=jnp.asarray(p["bt1"], jnp.float32).reshape(1, C1),
        b2l=jnp.asarray(np.repeat(np.asarray(p["b2"], np.float32), Wo2)[None, :]),
        g2=jnp.asarray(p["g2"], jnp.float32).reshape(1, C2),
        bt2=jnp.asarray(p["bt2"], jnp.float32).reshape(1, C2),
        b1m=_block_expand(C1, Wo1), b2m=_block_expand(C2, Wo2),
        ph=jnp.asarray(ph), gap=jnp.asarray(gp),
        wfl=jnp.asarray(wfl),
        bf=jnp.asarray(p["bf"], jnp.float32).reshape(1, F))


def convnet2_forward(x_nchw, prep):
    """Per-call path: one input transpose/reshape + a single fused pallas_call."""
    N, Cin, H, W = x_nchw.shape
    K = prep["t1"].shape[0]
    C1 = prep["g1"].shape[1]
    C2 = prep["g2"].shape[1]
    F = prep["bf"].shape[1]
    kernel, d = _make_convnet2_kernel(N, H, W, K, C1, C2, F)

    # NCHW -> lane-dense (N*H, Cin*W) slab, lanes = c*W + w (tiny layout plumbing).
    x2 = jnp.transpose(x_nchw, (0, 2, 1, 3)).reshape(N * H, Cin * W).astype(jnp.float32)

    return pl.pallas_call(
        kernel,
        out_shape=jax.ShapeDtypeStruct((N, F), jnp.float32),
        in_specs=[_VMEM] * 15,
        out_specs=_VMEM,
        scratch_shapes=[pltpu.VMEM((N * d["HpPad"], d["L1"]), jnp.float32)],
    )(x2, prep["t1"], prep["t2"],
      prep["b1l"], prep["g1"], prep["bt1"],
      prep["b2l"], prep["g2"], prep["bt2"],
      prep["b1m"], prep["b2m"], prep["ph"], prep["gap"],
      prep["wfl"], prep["bf"])


# ---------------------------------------------------------------------------
# Deterministic parameter initialization (shapes from the module __init__)
# ---------------------------------------------------------------------------
def init_params(key):
    k1, k2, k3, k4, k5 = jax.random.split(key, 5)

    def conv_w(k, kh, kw, cin, cout):
        fan_in = kh * kw * cin
        return jax.random.normal(k, (kh, kw, cin, cout), jnp.float32) / np.sqrt(fan_in)

    return dict(
        w1=conv_w(k1, 3, 3, 3, 32),
        b1=0.1 * jax.random.normal(k2, (32,), jnp.float32),
        g1=jnp.ones((32,), jnp.float32),
        bt1=jnp.zeros((32,), jnp.float32),
        w2=conv_w(k3, 3, 3, 32, 32),
        b2=0.1 * jax.random.normal(k4, (32,), jnp.float32),
        g2=jnp.ones((32,), jnp.float32),
        bt2=jnp.zeros((32,), jnp.float32),
        wf=jax.random.normal(k5, (32, 10), jnp.float32) / np.sqrt(32),
        bf=jnp.zeros((10,), jnp.float32),
    )


# ---------------------------------------------------------------------------
# Pure-JAX reference (f32 / HIGHEST precision; correctness check only)
# ---------------------------------------------------------------------------
def _ref_conv_bn_relu(x, w, b, g, bt):
    y = lax.conv_general_dilated(
        x, w, window_strides=(1, 1), padding="VALID",
        dimension_numbers=("NHWC", "HWIO", "NHWC"),
        precision=lax.Precision.HIGHEST)
    y = y + b.reshape(1, 1, 1, -1)
    mean = jnp.mean(y, axis=(0, 1, 2), keepdims=True)
    var = jnp.mean((y - mean) ** 2, axis=(0, 1, 2), keepdims=True)
    y = (y - mean) * lax.rsqrt(var + _EPS) * g.reshape(1, 1, 1, -1) + bt.reshape(1, 1, 1, -1)
    return jnp.maximum(y, 0.0)


def _ref_forward(x_nchw, p):
    x = jnp.transpose(x_nchw, (0, 2, 3, 1)).astype(jnp.float32)
    x = _ref_conv_bn_relu(x, p["w1"], p["b1"], p["g1"], p["bt1"])
    n, h, w, c = x.shape
    x = x.reshape(n, h // 2, 2, w // 2, 2, c).mean(axis=(2, 4))
    x = _ref_conv_bn_relu(x, p["w2"], p["b2"], p["g2"], p["bt2"])
    x = x.mean(axis=(1, 2))
    y = jnp.dot(x, p["wf"], precision=lax.Precision.HIGHEST) + p["bf"]
    return jnp.maximum(y, 0.0)


if __name__ == "__main__":
    key = jax.random.PRNGKey(0)
    kp, kx = jax.random.split(key)
    params = init_params(kp)
    x = jax.random.normal(kx, (2, 3, 16, 16), jnp.float32)   # NCHW, like the PyTorch module

    N, _, H, W = x.shape
    prep = prepare_params(params, N, H, W)                   # once per weight set

    fwd = jax.jit(convnet2_forward)
    out = fwd(x, prep)
    jax.block_until_ready(out)
    assert out.shape == (2, 10), out.shape

    ref = _ref_forward(x, params)
    # Conv dots run at DEFAULT TPU precision (bf16 multiply, f32 accumulate); the BN statistic
    # reduce/broadcast matmuls and the epilogue run at HIGHEST, so the remaining error is from
    # the bf16 conv multiplies only.
    np.testing.assert_allclose(np.asarray(out), np.asarray(ref), rtol=2e-2, atol=2e-2)

    print("KERNEL_OK")
</pallas_src>

<mosaic_0001>
module attributes {stable_mosaic.version = 11 : i64} {
  func.func @kernel(%arg0: memref<32x48xf32, #tpu.memory_space<vmem>>, %arg1: memref<3x48x448xbf16, #tpu.memory_space<vmem>>, %arg2: memref<3x448x160xbf16, #tpu.memory_space<vmem>>, %arg3: memref<1x448xf32, #tpu.memory_space<vmem>>, %arg4: memref<1x32xf32, #tpu.memory_space<vmem>>, %arg5: memref<1x32xf32, #tpu.memory_space<vmem>>, %arg6: memref<1x160xf32, #tpu.memory_space<vmem>>, %arg7: memref<1x32xf32, #tpu.memory_space<vmem>>, %arg8: memref<1x32xf32, #tpu.memory_space<vmem>>, %arg9: memref<32x448xf32, #tpu.memory_space<vmem>>, %arg10: memref<32x160xf32, #tpu.memory_space<vmem>>, %arg11: memref<16x30xf32, #tpu.memory_space<vmem>>, %arg12: memref<2x14xf32, #tpu.memory_space<vmem>>, %arg13: memref<160x10xf32, #tpu.memory_space<vmem>>, %arg14: memref<1x10xf32, #tpu.memory_space<vmem>>, %arg15: memref<2x10xf32, #tpu.memory_space<vmem>>, %arg16: memref<16x448xf32, #tpu.memory_space<vmem>>) attributes {dimension_semantics = [], scalar_prefetch = 0 : i64, scratch_operands = 1 : i64, tpu.core_type = #tpu.core_type<tc>} {
    %c0 = arith.constant 0 : index
    %c0_0 = arith.constant 0 : index
    %0 = vector.load %arg3[%c0, %c0_0] : memref<1x448xf32, #tpu.memory_space<vmem>>, vector<1x448xf32>
    %c0_1 = arith.constant 0 : index
    %c0_2 = arith.constant 0 : index
    %1 = vector.load %arg0[%c0_1, %c0_2] : memref<32x48xf32, #tpu.memory_space<vmem>>, vector<30x48xf32>
    %2 = arith.truncf %1 : vector<30x48xf32> to vector<30x48xbf16>
    %c0_3 = arith.constant 0 : index
    %c0_4 = arith.constant 0 : index
    %c0_5 = arith.constant 0 : index
    %3 = vector.load %arg1[%c0_3, %c0_4, %c0_5] : memref<3x48x448xbf16, #tpu.memory_space<vmem>>, vector<1x48x448xbf16>
    %4 = vector.shape_cast %3 : vector<1x48x448xbf16> to vector<48x448xbf16>
    %cst = arith.constant dense<0.000000e+00> : vector<30x448xf32>
    %5 = tpu.matmul %2, %4, %cst {dimension_numbers = #tpu.dot_dimension_numbers<[1], [0], [0], [1], [0, 0, 1, 1], [], []>} : vector<30x48xbf16>, vector<48x448xbf16>, vector<30x448xf32> -> vector<30x448xf32>
    %6 = vector.broadcast %0 : vector<1x448xf32> to vector<30x448xf32>
    %7 = arith.addf %6, %5 : vector<30x448xf32>
    %c1 = arith.constant 1 : index
    %c0_6 = arith.constant 0 : index
    %8 = vector.load %arg0[%c1, %c0_6] : memref<32x48xf32, #tpu.memory_space<vmem>>, vector<30x48xf32>
    %9 = arith.truncf %8 : vector<30x48xf32> to vector<30x48xbf16>
    %c1_7 = arith.constant 1 : index
    %c0_8 = arith.constant 0 : index
    %c0_9 = arith.constant 0 : index
    %10 = vector.load %arg1[%c1_7, %c0_8, %c0_9] : memref<3x48x448xbf16, #tpu.memory_space<vmem>>, vector<1x48x448xbf16>
    %11 = vector.shape_cast %10 : vector<1x48x448xbf16> to vector<48x448xbf16>
    %cst_10 = arith.constant dense<0.000000e+00> : vector<30x448xf32>
    %12 = tpu.matmul %9, %11, %cst_10 {dimension_numbers = #tpu.dot_dimension_numbers<[1], [0], [0], [1], [0, 0, 1, 1], [], []>} : vector<30x48xbf16>, vector<48x448xbf16>, vector<30x448xf32> -> vector<30x448xf32>
    %13 = arith.addf %7, %12 : vector<30x448xf32>
    %c2 = arith.constant 2 : index
    %c0_11 = arith.constant 0 : index
    %14 = vector.load %arg0[%c2, %c0_11] : memref<32x48xf32, #tpu.memory_space<vmem>>, vector<30x48xf32>
    %15 = arith.truncf %14 : vector<30x48xf32> to vector<30x48xbf16>
    %c2_12 = arith.constant 2 : index
    %c0_13 = arith.constant 0 : index
    %c0_14 = arith.constant 0 : index
    %16 = vector.load %arg1[%c2_12, %c0_13, %c0_14] : memref<3x48x448xbf16, #tpu.memory_space<vmem>>, vector<1x48x448xbf16>
    %17 = vector.shape_cast %16 : vector<1x48x448xbf16> to vector<48x448xbf16>
    %cst_15 = arith.constant dense<0.000000e+00> : vector<30x448xf32>
    %18 = tpu.matmul %15, %17, %cst_15 {dimension_numbers = #tpu.dot_dimension_numbers<[1], [0], [0], [1], [0, 0, 1, 1], [], []>} : vector<30x48xbf16>, vector<48x448xbf16>, vector<30x448xf32> -> vector<30x448xf32>
    %19 = arith.addf %13, %18 : vector<30x448xf32>
    %20 = vector.extract_strided_slice %19 {offsets = [0, 0], sizes = [14, 448], strides = [1, 1]} : vector<30x448xf32> to vector<14x448xf32>
    %cst_16 = arith.constant dense<0.000000e+00> : vector<448xf32>
    %21 = vector.multi_reduction <add>, %20, %cst_16 [0] : vector<14x448xf32> to vector<448xf32>
    %22 = vector.shape_cast %21 : vector<448xf32> to vector<1x448xf32>
    %23 = arith.mulf %20, %20 : vector<14x448xf32>
    %cst_17 = arith.constant dense<0.000000e+00> : vector<448xf32>
    %24 = vector.multi_reduction <add>, %23, %cst_17 [0] : vector<14x448xf32> to vector<448xf32>
    %25 = vector.shape_cast %24 : vector<448xf32> to vector<1x448xf32>
    %26 = vector.extract_strided_slice %19 {offsets = [16, 0], sizes = [14, 448], strides = [1, 1]} : vector<30x448xf32> to vector<14x448xf32>
    %cst_18 = arith.constant dense<0.000000e+00> : vector<448xf32>
    %27 = vector.multi_reduction <add>, %26, %cst_18 [0] : vector<14x448xf32> to vector<448xf32>
    %28 = vector.shape_cast %27 : vector<448xf32> to vector<1x448xf32>
    %29 = arith.mulf %26, %26 : vector<14x448xf32>
    %cst_19 = arith.constant dense<0.000000e+00> : vector<448xf32>
    %30 = vector.multi_reduction <add>, %29, %cst_19 [0] : vector<14x448xf32> to vector<448xf32>
    %31 = vector.shape_cast %30 : vector<448xf32> to vector<1x448xf32>
    %32 = arith.addf %22, %28 : vector<1x448xf32>
    %33 = arith.addf %25, %31 : vector<1x448xf32>
    %c0_20 = arith.constant 0 : index
    %c0_21 = arith.constant 0 : index
    %34 = vector.load %arg9[%c0_20, %c0_21] : memref<32x448xf32, #tpu.memory_space<vmem>>, vector<32x448xf32>
    %c0_22 = arith.constant 0 : index
    %c0_23 = arith.constant 0 : index
    %35 = vector.load %arg4[%c0_22, %c0_23] : memref<1x32xf32, #tpu.memory_space<vmem>>, vector<1x32xf32>
    %c0_24 = arith.constant 0 : index
    %c0_25 = arith.constant 0 : index
    %36 = vector.load %arg5[%c0_24, %c0_25] : memref<1x32xf32, #tpu.memory_space<vmem>>, vector<1x32xf32>
    %37 = tpu.iota {dimensions = array<i32: 0>} : vector<2x448xi32>
    %c0_i32 = arith.constant 0 : i32
    %38 = vector.broadcast %c0_i32 : i32 to vector<2x448xi32>
    %39 = arith.cmpi eq, %37, %38 : vector<2x448xi32>
    %40 = vector.shape_cast %32 : vector<1x448xf32> to vector<1x448xf32>
    %41 = vector.broadcast %40 : vector<1x448xf32> to vector<2x448xf32>
    %42 = vector.shape_cast %33 : vector<1x448xf32> to vector<1x448xf32>
    %43 = vector.broadcast %42 : vector<1x448xf32> to vector<2x448xf32>
    %44 = arith.select %39, %41, %43 : vector<2x448xi1>, vector<2x448xf32>
    %cst_26 = arith.constant dense<0.000000e+00> : vector<2x32xf32>
    %45 = tpu.matmul %44, %34, %cst_26 {dimension_numbers = #tpu.dot_dimension_numbers<[1], [1], [0], [0], [0, 0, 1, 0], [], []>, precision = #tpu.contract_precision<fp32>} : vector<2x448xf32>, vector<32x448xf32>, vector<2x32xf32> -> vector<2x32xf32>
    %cst_27 = arith.constant 0.00255102036 : f32
    %46 = vector.broadcast %cst_27 : f32 to vector<2x32xf32>
    %47 = arith.mulf %45, %46 : vector<2x32xf32>
    %48 = vector.extract_strided_slice %47 {offsets = [0, 0], sizes = [1, 32], strides = [1, 1]} : vector<2x32xf32> to vector<1x32xf32>
    %49 = vector.extract_strided_slice %47 {offsets = [1, 0], sizes = [1, 32], strides = [1, 1]} : vector<2x32xf32> to vector<1x32xf32>
    %50 = arith.mulf %48, %48 : vector<1x32xf32>
    %51 = arith.subf %49, %50 : vector<1x32xf32>
    %cst_28 = arith.constant 9.99999974E-6 : f32
    %52 = vector.broadcast %cst_28 : f32 to vector<1x32xf32>
    %53 = arith.addf %51, %52 : vector<1x32xf32>
    %54 = math.rsqrt %53 : vector<1x32xf32>
    %55 = arith.mulf %35, %54 : vector<1x32xf32>
    %56 = arith.mulf %48, %55 : vector<1x32xf32>
    %57 = arith.subf %36, %56 : vector<1x32xf32>
    %58 = tpu.iota {dimensions = array<i32: 0>} : vector<2x32xi32>
    %c0_i32_29 = arith.constant 0 : i32
    %59 = vector.broadcast %c0_i32_29 : i32 to vector<2x32xi32>
    %60 = arith.cmpi eq, %58, %59 : vector<2x32xi32>
    %61 = vector.shape_cast %55 : vector<1x32xf32> to vector<1x32xf32>
    %62 = vector.broadcast %61 : vector<1x32xf32> to vector<2x32xf32>
    %63 = vector.shape_cast %57 : vector<1x32xf32> to vector<1x32xf32>
    %64 = vector.broadcast %63 : vector<1x32xf32> to vector<2x32xf32>
    %65 = arith.select %60, %62, %64 : vector<2x32xi1>, vector<2x32xf32>
    %cst_30 = arith.constant dense<0.000000e+00> : vector<2x448xf32>
    %66 = tpu.matmul %65, %34, %cst_30 {dimension_numbers = #tpu.dot_dimension_numbers<[1], [0], [0], [1], [0, 0, 1, 1], [], []>, precision = #tpu.contract_precision<fp32>} : vector<2x32xf32>, vector<32x448xf32>, vector<2x448xf32> -> vector<2x448xf32>
    %67 = vector.extract_strided_slice %66 {offsets = [0, 0], sizes = [1, 448], strides = [1, 1]} : vector<2x448xf32> to vector<1x448xf32>
    %68 = vector.extract_strided_slice %66 {offsets = [1, 0], sizes = [1, 448], strides = [1, 1]} : vector<2x448xf32> to vector<1x448xf32>
    %69 = vector.broadcast %67 : vector<1x448xf32> to vector<30x448xf32>
    %70 = arith.mulf %19, %69 : vector<30x448xf32>
    %71 = vector.broadcast %68 : vector<1x448xf32> to vector<30x448xf32>
    %72 = arith.addf %70, %71 : vector<30x448xf32>
    %cst_31 = arith.constant 0.000000e+00 : f32
    %73 = vector.broadcast %cst_31 : f32 to vector<30x448xf32>
    %74 = arith.maximumf %72, %73 : vector<30x448xf32>
    %c0_32 = arith.constant 0 : index
    %c0_33 = arith.constant 0 : index
    %75 = vector.load %arg11[%c0_32, %c0_33] : memref<16x30xf32, #tpu.memory_space<vmem>>, vector<16x30xf32>
    %cst_34 = arith.constant dense<0.000000e+00> : vector<16x448xf32>
    %76 = tpu.matmul %75, %74, %cst_34 {dimension_numbers = #tpu.dot_dimension_numbers<[1], [0], [0], [1], [0, 0, 1, 1], [], []>} : vector<16x30xf32>, vector<30x448xf32>, vector<16x448xf32> -> vector<16x448xf32>
    %c0_35 = arith.constant 0 : index
    %c0_36 = arith.constant 0 : index
    %77 = vector.load %arg16[%c0_35, %c0_36] : memref<16x448xf32, #tpu.memory_space<vmem>>, vector<16x448xf32>
    tpu.vector_store %arg16[%c0_35, %c0_36], %76 {strides = array<i32>} : memref<16x448xf32, #tpu.memory_space<vmem>>, vector<16x448xf32>,
    %c0_37 = arith.constant 0 : index
    %c0_38 = arith.constant 0 : index
    %78 = vector.load %arg6[%c0_37, %c0_38] : memref<1x160xf32, #tpu.memory_space<vmem>>, vector<1x160xf32>
    %c0_39 = arith.constant 0 : index
    %c0_40 = arith.constant 0 : index
    %79 = vector.load %arg16[%c0_39, %c0_40] : memref<16x448xf32, #tpu.memory_space<vmem>>, vector<14x448xf32>
    %80 = arith.truncf %79 : vector<14x448xf32> to vector<14x448xbf16>
    %c0_41 = arith.constant 0 : index
    %c0_42 = arith.constant 0 : index
    %c0_43 = arith.constant 0 : index
    %81 = vector.load %arg2[%c0_41, %c0_42, %c0_43] : memref<3x448x160xbf16, #tpu.memory_space<vmem>>, vector<1x448x160xbf16>
    %82 = vector.shape_cast %81 : vector<1x448x160xbf16> to vector<448x160xbf16>
    %cst_44 = arith.constant dense<0.000000e+00> : vector<14x160xf32>
    %83 = tpu.matmul %80, %82, %cst_44 {dimension_numbers = #tpu.dot_dimension_numbers<[1], [0], [0], [1], [0, 0, 1, 1], [], []>} : vector<14x448xbf16>, vector<448x160xbf16>, vector<14x160xf32> -> vector<14x160xf32>
    %84 = vector.broadcast %78 : vector<1x160xf32> to vector<14x160xf32>
    %85 = arith.addf %84, %83 : vector<14x160xf32>
    %c1_45 = arith.constant 1 : index
    %c0_46 = arith.constant 0 : index
    %86 = vector.load %arg16[%c1_45, %c0_46] : memref<16x448xf32, #tpu.memory_space<vmem>>, vector<14x448xf32>
    %87 = arith.truncf %86 : vector<14x448xf32> to vector<14x448xbf16>
    %c1_47 = arith.constant 1 : index
    %c0_48 = arith.constant 0 : index
    %c0_49 = arith.constant 0 : index
    %88 = vector.load %arg2[%c1_47, %c0_48, %c0_49] : memref<3x448x160xbf16, #tpu.memory_space<vmem>>, vector<1x448x160xbf16>
    %89 = vector.shape_cast %88 : vector<1x448x160xbf16> to vector<448x160xbf16>
    %cst_50 = arith.constant dense<0.000000e+00> : vector<14x160xf32>
    %90 = tpu.matmul %87, %89, %cst_50 {dimension_numbers = #tpu.dot_dimension_numbers<[1], [0], [0], [1], [0, 0, 1, 1], [], []>} : vector<14x448xbf16>, vector<448x160xbf16>, vector<14x160xf32> -> vector<14x160xf32>
    %91 = arith.addf %85, %90 : vector<14x160xf32>
    %c2_51 = arith.constant 2 : index
    %c0_52 = arith.constant 0 : index
    %92 = vector.load %arg16[%c2_51, %c0_52] : memref<16x448xf32, #tpu.memory_space<vmem>>, vector<14x448xf32>
    %93 = arith.truncf %92 : vector<14x448xf32> to vector<14x448xbf16>
    %c2_53 = arith.constant 2 : index
    %c0_54 = arith.constant 0 : index
    %c0_55 = arith.constant 0 : index
    %94 = vector.load %arg2[%c2_53, %c0_54, %c0_55] : memref<3x448x160xbf16, #tpu.memory_space<vmem>>, vector<1x448x160xbf16>
    %95 = vector.shape_cast %94 : vector<1x448x160xbf16> to vector<448x160xbf16>
    %cst_56 = arith.constant dense<0.000000e+00> : vector<14x160xf32>
    %96 = tpu.matmul %93, %95, %cst_56 {dimension_numbers = #tpu.dot_dimension_numbers<[1], [0], [0], [1], [0, 0, 1, 1], [], []>} : vector<14x448xbf16>, vector<448x160xbf16>, vector<14x160xf32> -> vector<14x160xf32>
    %97 = arith.addf %91, %96 : vector<14x160xf32>
    %98 = vector.extract_strided_slice %97 {offsets = [0, 0], sizes = [5, 160], strides = [1, 1]} : vector<14x160xf32> to vector<5x160xf32>
    %cst_57 = arith.constant dense<0.000000e+00> : vector<160xf32>
    %99 = vector.multi_reduction <add>, %98, %cst_57 [0] : vector<5x160xf32> to vector<160xf32>
    %100 = vector.shape_cast %99 : vector<160xf32> to vector<1x160xf32>
    %101 = arith.mulf %98, %98 : vector<5x160xf32>
    %cst_58 = arith.constant dense<0.000000e+00> : vector<160xf32>
    %102 = vector.multi_reduction <add>, %101, %cst_58 [0] : vector<5x160xf32> to vector<160xf32>
    %103 = vector.shape_cast %102 : vector<160xf32> to vector<1x160xf32>
    %104 = vector.extract_strided_slice %97 {offsets = [8, 0], sizes = [5, 160], strides = [1, 1]} : vector<14x160xf32> to vector<5x160xf32>
    %cst_59 = arith.constant dense<0.000000e+00> : vector<160xf32>
    %105 = vector.multi_reduction <add>, %104, %cst_59 [0] : vector<5x160xf32> to vector<160xf32>
    %106 = vector.shape_cast %105 : vector<160xf32> to vector<1x160xf32>
    %107 = arith.mulf %104, %104 : vector<5x160xf32>
    %cst_60 = arith.constant dense<0.000000e+00> : vector<160xf32>
    %108 = vector.multi_reduction <add>, %107, %cst_60 [0] : vector<5x160xf32> to vector<160xf32>
    %109 = vector.shape_cast %108 : vector<160xf32> to vector<1x160xf32>
    %110 = arith.addf %100, %106 : vector<1x160xf32>
    %111 = arith.addf %103, %109 : vector<1x160xf32>
    %c0_61 = arith.constant 0 : index
    %c0_62 = arith.constant 0 : index
    %112 = vector.load %arg10[%c0_61, %c0_62] : memref<32x160xf32, #tpu.memory_space<vmem>>, vector<32x160xf32>
    %c0_63 = arith.constant 0 : index
    %c0_64 = arith.constant 0 : index
    %113 = vector.load %arg7[%c0_63, %c0_64] : memref<1x32xf32, #tpu.memory_space<vmem>>, vector<1x32xf32>
    %c0_65 = arith.constant 0 : index
    %c0_66 = arith.constant 0 : index
    %114 = vector.load %arg8[%c0_65, %c0_66] : memref<1x32xf32, #tpu.memory_space<vmem>>, vector<1x32xf32>
    %115 = tpu.iota {dimensions = array<i32: 0>} : vector<2x160xi32>
    %c0_i32_67 = arith.constant 0 : i32
    %116 = vector.broadcast %c0_i32_67 : i32 to vector<2x160xi32>
    %117 = arith.cmpi eq, %115, %116 : vector<2x160xi32>
    %118 = vector.shape_cast %110 : vector<1x160xf32> to vector<1x160xf32>
    %119 = vector.broadcast %118 : vector<1x160xf32> to vector<2x160xf32>
    %120 = vector.shape_cast %111 : vector<1x160xf32> to vector<1x160xf32>
    %121 = vector.broadcast %120 : vector<1x160xf32> to vector<2x160xf32>
    %122 = arith.select %117, %119, %121 : vector<2x160xi1>, vector<2x160xf32>
    %cst_68 = arith.constant dense<0.000000e+00> : vector<2x32xf32>
    %123 = tpu.matmul %122, %112, %cst_68 {dimension_numbers = #tpu.dot_dimension_numbers<[1], [1], [0], [0], [0, 0, 1, 0], [], []>, precision = #tpu.contract_precision<fp32>} : vector<2x160xf32>, vector<32x160xf32>, vector<2x32xf32> -> vector<2x32xf32>
    %cst_69 = arith.constant 2.000000e-02 : f32
    %124 = vector.broadcast %cst_69 : f32 to vector<2x32xf32>
    %125 = arith.mulf %123, %124 : vector<2x32xf32>
    %126 = vector.extract_strided_slice %125 {offsets = [0, 0], sizes = [1, 32], strides = [1, 1]} : vector<2x32xf32> to vector<1x32xf32>
    %127 = vector.extract_strided_slice %125 {offsets = [1, 0], sizes = [1, 32], strides = [1, 1]} : vector<2x32xf32> to vector<1x32xf32>
    %128 = arith.mulf %126, %126 : vector<1x32xf32>
    %129 = arith.subf %127, %128 : vector<1x32xf32>
    %cst_70 = arith.constant 9.99999974E-6 : f32
    %130 = vector.broadcast %cst_70 : f32 to vector<1x32xf32>
    %131 = arith.addf %129, %130 : vector<1x32xf32>
    %132 = math.rsqrt %131 : vector<1x32xf32>
    %133 = arith.mulf %113, %132 : vector<1x32xf32>
    %134 = arith.mulf %126, %133 : vector<1x32xf32>
    %135 = arith.subf %114, %134 : vector<1x32xf32>
    %136 = tpu.iota {dimensions = array<i32: 0>} : vector<2x32xi32>
    %c0_i32_71 = arith.constant 0 : i32
    %137 = vector.broadcast %c0_i32_71 : i32 to vector<2x32xi32>
    %138 = arith.cmpi eq, %136, %137 : vector<2x32xi32>
    %139 = vector.shape_cast %133 : vector<1x32xf32> to vector<1x32xf32>
    %140 = vector.broadcast %139 : vector<1x32xf32> to vector<2x32xf32>
    %141 = vector.shape_cast %135 : vector<1x32xf32> to vector<1x32xf32>
    %142 = vector.broadcast %141 : vector<1x32xf32> to vector<2x32xf32>
    %143 = arith.select %138, %140, %142 : vector<2x32xi1>, vector<2x32xf32>
    %cst_72 = arith.constant dense<0.000000e+00> : vector<2x160xf32>
    %144 = tpu.matmul %143, %112, %cst_72 {dimension_numbers = #tpu.dot_dimension_numbers<[1], [0], [0], [1], [0, 0, 1, 1], [], []>, precision = #tpu.contract_precision<fp32>} : vector<2x32xf32>, vector<32x160xf32>, vector<2x160xf32> -> vector<2x160xf32>
    %145 = vector.extract_strided_slice %144 {offsets = [0, 0], sizes = [1, 160], strides = [1, 1]} : vector<2x160xf32> to vector<1x160xf32>
    %146 = vector.extract_strided_slice %144 {offsets = [1, 0], sizes = [1, 160], strides = [1, 1]} : vector<2x160xf32> to vector<1x160xf32>
    %147 = vector.broadcast %145 : vector<1x160xf32> to vector<14x160xf32>
    %148 = arith.mulf %97, %147 : vector<14x160xf32>
    %149 = vector.broadcast %146 : vector<1x160xf32> to vector<14x160xf32>
    %150 = arith.addf %148, %149 : vector<14x160xf32>
    %cst_73 = arith.constant 0.000000e+00 : f32
    %151 = vector.broadcast %cst_73 : f32 to vector<14x160xf32>
    %152 = arith.maximumf %150, %151 : vector<14x160xf32>
    %c0_74 = arith.constant 0 : index
    %c0_75 = arith.constant 0 : index
    %153 = vector.load %arg12[%c0_74, %c0_75] : memref<2x14xf32, #tpu.memory_space<vmem>>, vector<2x14xf32>
    %cst_76 = arith.constant dense<0.000000e+00> : vector<2x160xf32>
    %154 = tpu.matmul %153, %152, %cst_76 {dimension_numbers = #tpu.dot_dimension_numbers<[1], [0], [0], [1], [0, 0, 1, 1], [], []>, precision = #tpu.contract_precision<fp32>} : vector<2x14xf32>, vector<14x160xf32>, vector<2x160xf32> -> vector<2x160xf32>
    %c0_77 = arith.constant 0 : index
    %c0_78 = arith.constant 0 : index
    %155 = vector.load %arg13[%c0_77, %c0_78] : memref<160x10xf32, #tpu.memory_space<vmem>>, vector<160x10xf32>
    %cst_79 = arith.constant dense<0.000000e+00> : vector<2x10xf32>
    %156 = tpu.matmul %154, %155, %cst_79 {dimension_numbers = #tpu.dot_dimension_numbers<[1], [0], [0], [1], [0, 0, 1, 1], [], []>, precision = #tpu.contract_precision<fp32>} : vector<2x160xf32>, vector<160x10xf32>, vector<2x10xf32> -> vector<2x10xf32>
    %c0_80 = arith.constant 0 : index
    %c0_81 = arith.constant 0 : index
    %157 = vector.load %arg14[%c0_80, %c0_81] : memref<1x10xf32, #tpu.memory_space<vmem>>, vector<1x10xf32>
    %158 = vector.broadcast %157 : vector<1x10xf32> to vector<2x10xf32>
    %159 = arith.addf %156, %158 : vector<2x10xf32>
    %cst_82 = arith.constant 0.000000e+00 : f32
    %160 = vector.broadcast %cst_82 : f32 to vector<2x10xf32>
    %161 = arith.maximumf %159, %160 : vector<2x10xf32>
    %c0_83 = arith.constant 0 : index
    %c0_84 = arith.constant 0 : index
    %162 = vector.load %arg15[%c0_83, %c0_84] : memref<2x10xf32, #tpu.memory_space<vmem>>, vector<2x10xf32>
    tpu.vector_store %arg15[%c0_83, %c0_84], %161 {strides = array<i32>} : memref<2x10xf32, #tpu.memory_space<vmem>>, vector<2x10xf32>,
    return
  }
}

</mosaic_0001>

<llo_original>
// kernel: convnet2_forward.1
$region0: #{convnet2_forward.1}
  #allocation0 [shape = 'u32[]', space=smem, size = 0x4, offset = 0x4, fixed_abs, tag = 'smem constant byte address 0x4 - core index']
  #allocation1 [shape = 'u32[72,128]{1,0:T(1,128)}', space=vmem, size = 0x9000, scoped, tag = 'internal scratch']
  #allocation2 [shape = 'f32[16,448]{1,0:T(8,128)}', space=vmem, size = 0x8000, scoped, tag = 'scratch operand']
  %s0 = inlined_call_operand.vmem [shape: f32[32,48], index: 0, kind: input, shape index: {}]
  %s1 = inlined_call_operand.vmem [shape: bf16[3,48,448], index: 1, kind: input, shape index: {}]
  %s2 = inlined_call_operand.vmem [shape: bf16[3,448,160], index: 2, kind: input, shape index: {}]
  %s3 = inlined_call_operand.vmem [shape: f32[1,448], index: 3, kind: input, shape index: {}]
  %s4 = inlined_call_operand.vmem [shape: f32[1,32], index: 4, kind: input, shape index: {}]
  %s5 = inlined_call_operand.vmem [shape: f32[1,32], index: 5, kind: input, shape index: {}]
  %s6 = inlined_call_operand.vmem [shape: f32[1,160], index: 6, kind: input, shape index: {}]
  %s7 = inlined_call_operand.vmem [shape: f32[1,32], index: 7, kind: input, shape index: {}]
  %s8 = inlined_call_operand.vmem [shape: f32[1,32], index: 8, kind: input, shape index: {}]
  %s9 = inlined_call_operand.vmem [shape: f32[32,448], index: 9, kind: input, shape index: {}]
  %s10 = inlined_call_operand.vmem [shape: f32[32,160], index: 10, kind: input, shape index: {}]
  %s11 = inlined_call_operand.vmem [shape: f32[16,30], index: 11, kind: input, shape index: {}]
  %s12 = inlined_call_operand.vmem [shape: f32[2,14], index: 12, kind: input, shape index: {}]
  %s13 = inlined_call_operand.vmem [shape: f32[160,10], index: 13, kind: input, shape index: {}]
  %s14 = inlined_call_operand.vmem [shape: f32[1,10], index: 14, kind: input, shape index: {}]
  %s15 = inlined_call_operand.hbm [shape: f32[2,10], index: 15, kind: output, shape index: {}]
  %s16 = sld [smem:[#allocation0]]
  $region70: #{convnet2_forward.1} parent=0
    _
  %s18 = ssub.s32 1, %s16
  %s19 = scalar_select 0, %s18, %s16
  $region1: #{convnet2_forward.1} parent=0
    #allocation3 [shape = 'u8[1024]{0}', space=vmem, size = 0x400, scoped, tag = 'output window, operand 0, single buffered']
    #allocation4 [shape = 's32[1]{0}', space=sflag, size = 0x4, scoped, tag = 'scoped memory for convnet2_forward.1']
    %20 = vsyncpa [#allocation4], 0
    // Predicated region
    $region2: #{convnet2_forward.1} parent=1 // pred_check
      _
    $region3: #{convnet2_forward.1} parent=1 // pred_check_branch
      %22 = sbr.rel (0) target = $region5
    $region4: #{convnet2_forward.1} parent=1 // pred_region
      _
    $region5: #{convnet2_forward.1} parent=1 // pred_fallthru
      _
    // Predicated region
    $region6: #{convnet2_forward.1} parent=1 // pred_check
      _
    $region7: #{convnet2_forward.1} parent=1 // pred_check_branch
      %24 = sbr.rel (0) target = $region9
    $region8: #{convnet2_forward.1} parent=1 // pred_region
      _
    $region9: #{convnet2_forward.1} parent=1 // pred_fallthru
      _
    // Predicated region
    $region10: #{convnet2_forward.1} parent=1 // pred_check
      _
    $region11: #{convnet2_forward.1} parent=1 // pred_check_branch
      %26 = sbr.rel (0) target = $region13
    $region12: #{convnet2_forward.1} parent=1 // pred_region
      _
    $region13: #{convnet2_forward.1} parent=1 // pred_fallthru
      _
    // Predicated region
    $region14: #{convnet2_forward.1} parent=1 // pred_check
      _
    $region15: #{convnet2_forward.1} parent=1 // pred_check_branch
      %28 = sbr.rel (0) target = $region17
    $region16: #{convnet2_forward.1} parent=1 // pred_region
      _
    $region17: #{convnet2_forward.1} parent=1 // pred_fallthru
      _
    // Predicated region
    $region18: #{convnet2_forward.1} parent=1 // pred_check
      _
    $region19: #{convnet2_forward.1} parent=1 // pred_check_branch
      %30 = sbr.rel (0) target = $region21
    $region20: #{convnet2_forward.1} parent=1 // pred_region
      _
    $region21: #{convnet2_forward.1} parent=1 // pred_fallthru
      _
    // Predicated region
    $region22: #{convnet2_forward.1} parent=1 // pred_check
      _
    $region23: #{convnet2_forward.1} parent=1 // pred_check_branch
      %32 = sbr.rel (0) target = $region25
    $region24: #{convnet2_forward.1} parent=1 // pred_region
      _
    $region25: #{convnet2_forward.1} parent=1 // pred_fallthru
      _
    // Predicated region
    $region26: #{convnet2_forward.1} parent=1 // pred_check
      _
    $region27: #{convnet2_forward.1} parent=1 // pred_check_branch
      %34 = sbr.rel (0) target = $region29
    $region28: #{convnet2_forward.1} parent=1 // pred_region
      _
    $region29: #{convnet2_forward.1} parent=1 // pred_fallthru
      _
    // Predicated region
    $region30: #{convnet2_forward.1} parent=1 // pred_check
      _
    $region31: #{convnet2_forward.1} parent=1 // pred_check_branch
      %36 = sbr.rel (0) target = $region33
    $region32: #{convnet2_forward.1} parent=1 // pred_region
      _
    $region33: #{convnet2_forward.1} parent=1 // pred_fallthru
      _
    // Predicated region
    $region34: #{convnet2_forward.1} parent=1 // pred_check
      _
    $region35: #{convnet2_forward.1} parent=1 // pred_check_branch
      %38 = sbr.rel (0) target = $region37
    $region36: #{convnet2_forward.1} parent=1 // pred_region
      _
    $region37: #{convnet2_forward.1} parent=1 // pred_fallthru
      _
    // Predicated region
    $region38: #{convnet2_forward.1} parent=1 // pred_check
      _
    $region39: #{convnet2_forward.1} parent=1 // pred_check_branch
      %40 = sbr.rel (0) target = $region41
    $region40: #{convnet2_forward.1} parent=1 // pred_region
      _
    $region41: #{convnet2_forward.1} parent=1 // pred_fallthru
      _
    // Predicated region
    $region42: #{convnet2_forward.1} parent=1 // pred_check
      _
    $region43: #{convnet2_forward.1} parent=1 // pred_check_branch
      %42 = sbr.rel (0) target = $region45
    $region44: #{convnet2_forward.1} parent=1 // pred_region
      _
    $region45: #{convnet2_forward.1} parent=1 // pred_fallthru
      _
    // Predicated region
    $region46: #{convnet2_forward.1} parent=1 // pred_check
      _
    $region47: #{convnet2_forward.1} parent=1 // pred_check_branch
      %44 = sbr.rel (0) target = $region49
    $region48: #{convnet2_forward.1} parent=1 // pred_region
      _
    $region49: #{convnet2_forward.1} parent=1 // pred_fallthru
      _
    // Predicated region
    $region50: #{convnet2_forward.1} parent=1 // pred_check
      _
    $region51: #{convnet2_forward.1} parent=1 // pred_check_branch
      %46 = sbr.rel (0) target = $region53
    $region52: #{convnet2_forward.1} parent=1 // pred_region
      _
    $region53: #{convnet2_forward.1} parent=1 // pred_fallthru
      _
    // Predicated region
    $region54: #{convnet2_forward.1} parent=1 // pred_check
      _
    $region55: #{convnet2_forward.1} parent=1 // pred_check_branch
      %48 = sbr.rel (0) target = $region57
    $region56: #{convnet2_forward.1} parent=1 // pred_region
      _
    $region57: #{convnet2_forward.1} parent=1 // pred_fallthru
      _
    // Predicated region
    $region58: #{convnet2_forward.1} parent=1 // pred_check
      _
    $region59: #{convnet2_forward.1} parent=1 // pred_check_branch
      %50 = sbr.rel (0) target = $region61
    $region60: #{convnet2_forward.1} parent=1 // pred_region
      _
    $region61: #{convnet2_forward.1} parent=1 // pred_fallthru
      _
    %v52 = vld [vmem:[%s3] sm:$0xf]
    %v53 = vld [vmem:[%s0] sm:$0xff]
    %v54 = vld [vmem:[%s0 + $0x8] sm:$0xff]
    %v55 = vld [vmem:[%s0 + $0x10] sm:$0xff]
    %v56 = vld [vmem:[%s0 + $0x18] sm:$0x3f]
    %v57 = vpack.c.bf16 %v54, %v53
    %v58 = vpack.c.bf16 %v56, %v55
    %v59 = vld [vmem:[%s1] sm:$0xff]
    %v60 = vld [vmem:[%s1 + $0x8] sm:$0xff]
    %v61 = vld [vmem:[%s1 + $0x10] sm:$0xff]
    %v62 = vld [vmem:[%s1 + $0x18] sm:$0xff]
    %v63 = vld [vmem:[%s1 + $0x20] sm:$0xff]
    %v64 = vld [vmem:[%s1 + $0x28] sm:$0xff]
    %v65 = vld [vmem:[%s1 + $0x30] sm:$0xff]
    %v66 = vld [vmem:[%s1 + $0x38] sm:$0xff]
    %v67 = vld [vmem:[%s1 + $0x40] sm:$0xff]
    %v68 = vld [vmem:[%s1 + $0x48] sm:$0xff]
    %v69 = vld [vmem:[%s1 + $0x50] sm:$0xff]
    %v70 = vld [vmem:[%s1 + $0x58] sm:$0xff]
    %v83 = vunpack.c.l.b16 %v59
    %v84 = vunpack.c.h.b16 %v59
    %v85 = vunpack.c.l.b16 %v60
    %v86 = vunpack.c.h.b16 %v60
    %v87 = vunpack.c.l.b16 %v61
    %v88 = vunpack.c.h.b16 %v61
    %v89 = vunpack.c.l.b16 %v62
    %v90 = vunpack.c.h.b16 %v62
    %v91 = vunpack.c.l.b16 %v63
    %v92 = vunpack.c.h.b16 %v63
    %v93 = vunpack.c.l.b16 %v64
    %v94 = vunpack.c.h.b16 %v64
    %v95 = vunpack.c.l.b16 %v65
    %v96 = vunpack.c.h.b16 %v65
    %v97 = vunpack.c.l.b16 %v66
    %v98 = vunpack.c.h.b16 %v66
    %v99 = vunpack.c.l.b16 %v67
    %v100 = vunpack.c.h.b16 %v67
    %v101 = vunpack.c.l.b16 %v68
    %v102 = vunpack.c.h.b16 %v68
    %v103 = vunpack.c.l.b16 %v69
    %v104 = vunpack.c.h.b16 %v69
    %v105 = vunpack.c.l.b16 %v70
    %v106 = vunpack.c.h.b16 %v70
    %v107 = vpack.c.b16 %v87, %v83
    %v108 = vpack.c.b16 %v88, %v84
    %v109 = vpack.c.b16 %v89, %v85
    %v110 = vpack.c.b16 %v90, %v86
    %v111 = vpack.c.b16 %v95, %v91
    %v112 = vpack.c.b16 %v96, %v92
    %v113 = vpack.c.b16 %v97, %v93
    %v114 = vpack.c.b16 %v98, %v94
    %v115 = vpack.c.b16 %v103, %v99
    %v116 = vpack.c.b16 %v104, %v100
    %v117 = vpack.c.b16 %v105, %v101
    %v118 = vpack.c.b16 %v106, %v102
    %vm131 = vcmask 392192
    %v133 = vsel %vm131, %v57, 0
    %v136 = vsel %vm131, %v58, 0
    %138 = vmatpush.bf16.msra.mxu0 0
    %139 = vmatpush.bf16.msra.mxu0 0
    %140 = vmatpush.bf16.msra.mxu0 0
    %141 = vmatpush.bf16.msra.mxu0 0
    %142 = vmatpush.bf16.msra.mxu0 0
    %143 = vmatpush.bf16.msra.mxu0 %v115
    %144 = vmatpush.bf16.msra.mxu0 %v111
    %145 = vmatpush.bf16.msra.mxu0 %v107
    %146 = vmatmul.bf16.gmra.mxu0 %v133
    %v147 = vpop.f32.mrf.mxu0
    %v148 = vadd.f32 0.0, %v147
    %v149 = vpop.f32.mrf.mxu0
    %v150 = vadd.f32 0.0, %v149
    %151 = vmatmul.bf16.gmra.mxu0 %v136
    %v152 = vpop.f32.mrf.mxu0
    %v153 = vadd.f32 0.0, %v152
    %v154 = vpop.f32.mrf.mxu0
    %v155 = vadd.f32 0.0, %v154
    %156 = vdwg.mxu0
    %157 = vmatpush.bf16.msra.mxu0 0
    %158 = vmatpush.bf16.msra.mxu0 0
    %159 = vmatpush.bf16.msra.mxu0 0
    %160 = vmatpush.bf16.msra.mxu0 0
    %161 = vmatpush.bf16.msra.mxu0 0
    %162 = vmatpush.bf16.msra.mxu0 %v116
    %163 = vmatpush.bf16.msra.mxu0 %v112
    %164 = vmatpush.bf16.msra.mxu0 %v108
    %165 = vmatmul.bf16.gmra.mxu0 %v133
    %v166 = vpop.f32.mrf.mxu0
    %v167 = vadd.f32 0.0, %v166
    %v168 = vpop.f32.mrf.mxu0
    %v169 = vadd.f32 0.0, %v168
    %170 = vmatmul.bf16.gmra.mxu0 %v136
    %v171 = vpop.f32.mrf.mxu0
    %v172 = vadd.f32 0.0, %v171
    %v173 = vpop.f32.mrf.mxu0
    %v174 = vadd.f32 0.0, %v173
    %175 = vdwg.mxu0
    %176 = vmatpush.bf16.msra.mxu0 0
    %177 = vmatpush.bf16.msra.mxu0 0
    %178 = vmatpush.bf16.msra.mxu0 0
    %179 = vmatpush.bf16.msra.mxu0 0
    %180 = vmatpush.bf16.msra.mxu0 0
    %181 = vmatpush.bf16.msra.mxu0 %v117
    %182 = vmatpush.bf16.msra.mxu0 %v113
    %183 = vmatpush.bf16.msra.mxu0 %v109
    %184 = vmatmul.bf16.gmra.mxu0 %v133
    %v185 = vpop.f32.mrf.mxu0
    %v186 = vadd.f32 0.0, %v185
    %v187 = vpop.f32.mrf.mxu0
    %v188 = vadd.f32 0.0, %v187
    %189 = vmatmul.bf16.gmra.mxu0 %v136
    %v190 = vpop.f32.mrf.mxu0
    %v191 = vadd.f32 0.0, %v190
    %v192 = vpop.f32.mrf.mxu0
    %v193 = vadd.f32 0.0, %v192
    %194 = vdwg.mxu0
    %195 = vmatpush.bf16.msra.mxu0 0
    %196 = vmatpush.bf16.msra.mxu0 0
    %197 = vmatpush.bf16.msra.mxu0 0
    %198 = vmatpush.bf16.msra.mxu0 0
    %199 = vmatpush.bf16.msra.mxu0 0
    %200 = vmatpush.bf16.msra.mxu0 %v118
    %201 = vmatpush.bf16.msra.mxu0 %v114
    %202 = vmatpush.bf16.msra.mxu0 %v110
    %203 = vmatmul.bf16.gmra.mxu0 %v133
    %v204 = vpop.f32.mrf.mxu0
    %v205 = vadd.f32 0.0, %v204
    %v206 = vpop.f32.mrf.mxu0
    %v207 = vadd.f32 0.0, %v206
    %208 = vmatmul.bf16.gmra.mxu0 %v136
    %v209 = vpop.f32.mrf.mxu0
    %v210 = vadd.f32 0.0, %v209
    %v211 = vpop.f32.mrf.mxu0
    %v212 = vadd.f32 0.0, %v211
    %213 = vdwg.mxu0
    %v215 = vperm.slane %v52, 0
    %v216 = vperm.slane %v52, 1
    %v217 = vperm.slane %v52, 2
    %v218 = vperm.slane %v52, 3
    %v223 = vadd.f32 %v215, %v148
    %v224 = vadd.f32 %v216, %v167
    %v225 = vadd.f32 %v217, %v186
    %v226 = vadd.f32 %v218, %v205
    %v227 = vadd.f32 %v215, %v150
    %v228 = vadd.f32 %v216, %v169
    %v229 = vadd.f32 %v217, %v188
    %v230 = vadd.f32 %v218, %v207
    %v231 = vadd.f32 %v215, %v153
    %v232 = vadd.f32 %v216, %v172
    %v233 = vadd.f32 %v217, %v191
    %v234 = vadd.f32 %v218, %v210
    %v235 = vadd.f32 %v215, %v155
    %v236 = vadd.f32 %v216, %v174
    %v237 = vadd.f32 %v217, %v193
    %v238 = vadd.f32 %v218, %v212
    %v239 = vld [vmem:[%s0 + $0x1] sm:$0xff]
    %v240 = vld [vmem:[%s0 + $0x9] sm:$0xff]
    %v241 = vld [vmem:[%s0 + $0x11] sm:$0xff]
    %v242 = vld [vmem:[%s0 + $0x19] sm:$0x3f]
    %v243 = vpack.c.bf16 %v240, %v239
    %v244 = vpack.c.bf16 %v242, %v241
    %s245 = scalar_lea.vmem %s1, 96
    %v246 = vld [vmem:[%s245] sm:$0xff]
    %v247 = vld [vmem:[%s245 + $0x8] sm:$0xff]
    %v248 = vld [vmem:[%s245 + $0x10] sm:$0xff]
    %v249 = vld [vmem:[%s245 + $0x18] sm:$0xff]
    %v250 = vld [vmem:[%s245 + $0x20] sm:$0xff]
    %v251 = vld [vmem:[%s245 + $0x28] sm:$0xff]
    %v252 = vld [vmem:[%s245 + $0x30] sm:$0xff]
    %v253 = vld [vmem:[%s245 + $0x38] sm:$0xff]
    %v254 = vld [vmem:[%s245 + $0x40] sm:$0xff]
    %v255 = vld [vmem:[%s245 + $0x48] sm:$0xff]
    %v256 = vld [vmem:[%s245 + $0x50] sm:$0xff]
    %v257 = vld [vmem:[%s245 + $0x58] sm:$0xff]
    %v270 = vunpack.c.l.b16 %v246
    %v271 = vunpack.c.h.b16 %v246
    %v272 = vunpack.c.l.b16 %v247
    %v273 = vunpack.c.h.b16 %v247
    %v274 = vunpack.c.l.b16 %v248
    %v275 = vunpack.c.h.b16 %v248
    %v276 = vunpack.c.l.b16 %v249
    %v277 = vunpack.c.h.b16 %v249
    %v278 = vunpack.c.l.b16 %v250
    %v279 = vunpack.c.h.b16 %v250
    %v280 = vunpack.c.l.b16 %v251
    %v281 = vunpack.c.h.b16 %v251
    %v282 = vunpack.c.l.b16 %v252
    %v283 = vunpack.c.h.b16 %v252
    %v284 = vunpack.c.l.b16 %v253
    %v285 = vunpack.c.h.b16 %v253
    %v286 = vunpack.c.l.b16 %v254
    %v287 = vunpack.c.h.b16 %v254
    %v288 = vunpack.c.l.b16 %v255
    %v289 = vunpack.c.h.b16 %v255
    %v290 = vunpack.c.l.b16 %v256
    %v291 = vunpack.c.h.b16 %v256
    %v292 = vunpack.c.l.b16 %v257
    %v293 = vunpack.c.h.b16 %v257
    %v294 = vpack.c.b16 %v274, %v270
    %v295 = vpack.c.b16 %v275, %v271
    %v296 = vpack.c.b16 %v276, %v272
    %v297 = vpack.c.b16 %v277, %v273
    %v298 = vpack.c.b16 %v282, %v278
    %v299 = vpack.c.b16 %v283, %v279
    %v300 = vpack.c.b16 %v284, %v280
    %v301 = vpack.c.b16 %v285, %v281
    %v302 = vpack.c.b16 %v290, %v286
    %v303 = vpack.c.b16 %v291, %v287
    %v304 = vpack.c.b16 %v292, %v288
    %v305 = vpack.c.b16 %v293, %v289
    %v319 = vsel %vm131, %v243, 0
    %v322 = vsel %vm131, %v244, 0
    %324 = vmatpush.bf16.msra.mxu0 0
    %325 = vmatpush.bf16.msra.mxu0 0
    %326 = vmatpush.bf16.msra.mxu0 0
    %327 = vmatpush.bf16.msra.mxu0 0
    %328 = vmatpush.bf16.msra.mxu0 0
    %329 = vmatpush.bf16.msra.mxu0 %v302
    %330 = vmatpush.bf16.msra.mxu0 %v298
    %331 = vmatpush.bf16.msra.mxu0 %v294
    %332 = vmatmul.bf16.gmra.mxu0 %v319
    %v333 = vpop.f32.mrf.mxu0
    %v334 = vadd.f32 0.0, %v333
    %v335 = vpop.f32.mrf.mxu0
    %v336 = vadd.f32 0.0, %v335
    %337 = vmatmul.bf16.gmra.mxu0 %v322
    %v338 = vpop.f32.mrf.mxu0
    %v339 = vadd.f32 0.0, %v338
    %v340 = vpop.f32.mrf.mxu0
    %v341 = vadd.f32 0.0, %v340
    %342 = vdwg.mxu0
    %343 = vmatpush.bf16.msra.mxu0 0
    %344 = vmatpush.bf16.msra.mxu0 0
    %345 = vmatpush.bf16.msra.mxu0 0
    %346 = vmatpush.bf16.msra.mxu0 0
    %347 = vmatpush.bf16.msra.mxu0 0
    %348 = vmatpush.bf16.msra.mxu0 %v303
    %349 = vmatpush.bf16.msra.mxu0 %v299
    %350 = vmatpush.bf16.msra.mxu0 %v295
    %351 = vmatmul.bf16.gmra.mxu0 %v319
    %v352 = vpop.f32.mrf.mxu0
    %v353 = vadd.f32 0.0, %v352
    %v354 = vpop.f32.mrf.mxu0
    %v355 = vadd.f32 0.0, %v354
    %356 = vmatmul.bf16.gmra.mxu0 %v322
    %v357 = vpop.f32.mrf.mxu0
    %v358 = vadd.f32 0.0, %v357
    %v359 = vpop.f32.mrf.mxu0
    %v360 = vadd.f32 0.0, %v359
    %361 = vdwg.mxu0
    %362 = vmatpush.bf16.msra.mxu0 0
    %363 = vmatpush.bf16.msra.mxu0 0
    %364 = vmatpush.bf16.msra.mxu0 0
    %365 = vmatpush.bf16.msra.mxu0 0
    %366 = vmatpush.bf16.msra.mxu0 0
    %367 = vmatpush.bf16.msra.mxu0 %v304
    %368 = vmatpush.bf16.msra.mxu0 %v300
    %369 = vmatpush.bf16.msra.mxu0 %v296
    %370 = vmatmul.bf16.gmra.mxu0 %v319
    %v371 = vpop.f32.mrf.mxu0
    %v372 = vadd.f32 0.0, %v371
    %v373 = vpop.f32.mrf.mxu0
    %v374 = vadd.f32 0.0, %v373
    %375 = vmatmul.bf16.gmra.mxu0 %v322
    %v376 = vpop.f32.mrf.mxu0
    %v377 = vadd.f32 0.0, %v376
    %v378 = vpop.f32.mrf.mxu0
    %v379 = vadd.f32 0.0, %v378
    %380 = vdwg.mxu0
    %381 = vmatpush.bf16.msra.mxu0 0
    %382 = vmatpush.bf16.msra.mxu0 0
    %383 = vmatpush.bf16.msra.mxu0 0
    %384 = vmatpush.bf16.msra.mxu0 0
    %385 = vmatpush.bf16.msra.mxu0 0
    %386 = vmatpush.bf16.msra.mxu0 %v305
    %387 = vmatpush.bf16.msra.mxu0 %v301
    %388 = vmatpush.bf16.msra.mxu0 %v297
    %389 = vmatmul.bf16.gmra.mxu0 %v319
    %v390 = vpop.f32.mrf.mxu0
    %v391 = vadd.f32 0.0, %v390
    %v392 = vpop.f32.mrf.mxu0
    %v393 = vadd.f32 0.0, %v392
    %394 = vmatmul.bf16.gmra.mxu0 %v322
    %v395 = vpop.f32.mrf.mxu0
    %v396 = vadd.f32 0.0, %v395
    %v397 = vpop.f32.mrf.mxu0
    %v398 = vadd.f32 0.0, %v397
    %399 = vdwg.mxu0
    %v400 = vadd.f32 %v223, %v334
    %v401 = vadd.f32 %v224, %v353
    %v402 = vadd.f32 %v225, %v372
    %v403 = vadd.f32 %v226, %v391
    %v404 = vadd.f32 %v227, %v336
    %v405 = vadd.f32 %v228, %v355
    %v406 = vadd.f32 %v229, %v374
    %v407 = vadd.f32 %v230, %v393
    %v408 = vadd.f32 %v231, %v339
    %v409 = vadd.f32 %v232, %v358
    %v410 = vadd.f32 %v233, %v377
    %v411 = vadd.f32 %v234, %v396
    %v412 = vadd.f32 %v235, %v341
    %v413 = vadd.f32 %v236, %v360
    %v414 = vadd.f32 %v237, %v379
    %v415 = vadd.f32 %v238, %v398
    %v416 = vld [vmem:[%s0 + $0x2] sm:$0xff]
    %v417 = vld [vmem:[%s0 + $0xa] sm:$0xff]
    %v418 = vld [vmem:[%s0 + $0x12] sm:$0xff]
    %v419 = vld [vmem:[%s0 + $0x1a] sm:$0x3f]
    %v420 = vpack.c.bf16 %v417, %v416
    %v421 = vpack.c.bf16 %v419, %v418
    %s422 = scalar_lea.vmem %s1, 192
    %v423 = vld [vmem:[%s422] sm:$0xff]
    %v424 = vld [vmem:[%s422 + $0x8] sm:$0xff]
    %v425 = vld [vmem:[%s422 + $0x10] sm:$0xff]
    %v426 = vld [vmem:[%s422 + $0x18] sm:$0xff]
    %v427 = vld [vmem:[%s422 + $0x20] sm:$0xff]
    %v428 = vld [vmem:[%s422 + $0x28] sm:$0xff]
    %v429 = vld [vmem:[%s422 + $0x30] sm:$0xff]
    %v430 = vld [vmem:[%s422 + $0x38] sm:$0xff]
    %v431 = vld [vmem:[%s422 + $0x40] sm:$0xff]
    %v432 = vld [vmem:[%s422 + $0x48] sm:$0xff]
    %v433 = vld [vmem:[%s422 + $0x50] sm:$0xff]
    %v434 = vld [vmem:[%s422 + $0x58] sm:$0xff]
    %v447 = vunpack.c.l.b16 %v423
    %v448 = vunpack.c.h.b16 %v423
    %v449 = vunpack.c.l.b16 %v424
    %v450 = vunpack.c.h.b16 %v424
    %v451 = vunpack.c.l.b16 %v425
    %v452 = vunpack.c.h.b16 %v425
    %v453 = vunpack.c.l.b16 %v426
    %v454 = vunpack.c.h.b16 %v426
    %v455 = vunpack.c.l.b16 %v427
    %v456 = vunpack.c.h.b16 %v427
    %v457 = vunpack.c.l.b16 %v428
    %v458 = vunpack.c.h.b16 %v428
    %v459 = vunpack.c.l.b16 %v429
    %v460 = vunpack.c.h.b16 %v429
    %v461 = vunpack.c.l.b16 %v430
    %v462 = vunpack.c.h.b16 %v430
    %v463 = vunpack.c.l.b16 %v431
    %v464 = vunpack.c.h.b16 %v431
    %v465 = vunpack.c.l.b16 %v432
    %v466 = vunpack.c.h.b16 %v432
    %v467 = vunpack.c.l.b16 %v433
    %v468 = vunpack.c.h.b16 %v433
    %v469 = vunpack.c.l.b16 %v434
    %v470 = vunpack.c.h.b16 %v434
    %v471 = vpack.c.b16 %v451, %v447
    %v472 = vpack.c.b16 %v452, %v448
    %v473 = vpack.c.b16 %v453, %v449
    %v474 = vpack.c.b16 %v454, %v450
    %v475 = vpack.c.b16 %v459, %v455
    %v476 = vpack.c.b16 %v460, %v456
    %v477 = vpack.c.b16 %v461, %v457
    %v478 = vpack.c.b16 %v462, %v458
    %v479 = vpack.c.b16 %v467, %v463
    %v480 = vpack.c.b16 %v468, %v464
    %v481 = vpack.c.b16 %v469, %v465
    %v482 = vpack.c.b16 %v470, %v466
    %v496 = vsel %vm131, %v420, 0
    %v499 = vsel %vm131, %v421, 0
    %501 = vmatpush.bf16.msra.mxu0 0
    %502 = vmatpush.bf16.msra.mxu0 0
    %503 = vmatpush.bf16.msra.mxu0 0
    %504 = vmatpush.bf16.msra.mxu0 0
    %505 = vmatpush.bf16.msra.mxu0 0
    %506 = vmatpush.bf16.msra.mxu0 %v479
    %507 = vmatpush.bf16.msra.mxu0 %v475
    %508 = vmatpush.bf16.msra.mxu0 %v471
    %509 = vmatmul.bf16.gmra.mxu0 %v496
    %v510 = vpop.f32.mrf.mxu0
    %v511 = vadd.f32 0.0, %v510
    %v512 = vpop.f32.mrf.mxu0
    %v513 = vadd.f32 0.0, %v512
    %514 = vmatmul.bf16.gmra.mxu0 %v499
    %v515 = vpop.f32.mrf.mxu0
    %v516 = vadd.f32 0.0, %v515
    %v517 = vpop.f32.mrf.mxu0
    %v518 = vadd.f32 0.0, %v517
    %519 = vdwg.mxu0
    %520 = vmatpush.bf16.msra.mxu0 0
    %521 = vmatpush.bf16.msra.mxu0 0
    %522 = vmatpush.bf16.msra.mxu0 0
    %523 = vmatpush.bf16.msra.mxu0 0
    %524 = vmatpush.bf16.msra.mxu0 0
    %525 = vmatpush.bf16.msra.mxu0 %v480
    %526 = vmatpush.bf16.msra.mxu0 %v476
    %527 = vmatpush.bf16.msra.mxu0 %v472
    %528 = vmatmul.bf16.gmra.mxu0 %v496
    %v529 = vpop.f32.mrf.mxu0
    %v530 = vadd.f32 0.0, %v529
    %v531 = vpop.f32.mrf.mxu0
    %v532 = vadd.f32 0.0, %v531
    %533 = vmatmul.bf16.gmra.mxu0 %v499
    %v534 = vpop.f32.mrf.mxu0
    %v535 = vadd.f32 0.0, %v534
    %v536 = vpop.f32.mrf.mxu0
    %v537 = vadd.f32 0.0, %v536
    %538 = vdwg.mxu0
    %539 = vmatpush.bf16.msra.mxu0 0
    %540 = vmatpush.bf16.msra.mxu0 0
    %541 = vmatpush.bf16.msra.mxu0 0
    %542 = vmatpush.bf16.msra.mxu0 0
    %543 = vmatpush.bf16.msra.mxu0 0
    %544 = vmatpush.bf16.msra.mxu0 %v481
    %545 = vmatpush.bf16.msra.mxu0 %v477
    %546 = vmatpush.bf16.msra.mxu0 %v473
    %547 = vmatmul.bf16.gmra.mxu0 %v496
    %v548 = vpop.f32.mrf.mxu0
    %v549 = vadd.f32 0.0, %v548
    %v550 = vpop.f32.mrf.mxu0
    %v551 = vadd.f32 0.0, %v550
    %552 = vmatmul.bf16.gmra.mxu0 %v499
    %v553 = vpop.f32.mrf.mxu0
    %v554 = vadd.f32 0.0, %v553
    %v555 = vpop.f32.mrf.mxu0
    %v556 = vadd.f32 0.0, %v555
    %557 = vdwg.mxu0
    %558 = vmatpush.bf16.msra.mxu0 0
    %559 = vmatpush.bf16.msra.mxu0 0
    %560 = vmatpush.bf16.msra.mxu0 0
    %561 = vmatpush.bf16.msra.mxu0 0
    %562 = vmatpush.bf16.msra.mxu0 0
    %563 = vmatpush.bf16.msra.mxu0 %v482
    %564 = vmatpush.bf16.msra.mxu0 %v478
    %565 = vmatpush.bf16.msra.mxu0 %v474
    %566 = vmatmul.bf16.gmra.mxu0 %v496
    %v567 = vpop.f32.mrf.mxu0
    %v568 = vadd.f32 0.0, %v567
    %v569 = vpop.f32.mrf.mxu0
    %v570 = vadd.f32 0.0, %v569
    %571 = vmatmul.bf16.gmra.mxu0 %v499
    %v572 = vpop.f32.mrf.mxu0
    %v573 = vadd.f32 0.0, %v572
    %v574 = vpop.f32.mrf.mxu0
    %v575 = vadd.f32 0.0, %v574
    %576 = vdwg.mxu0
    %v577 = vadd.f32 %v400, %v511
    %v578 = vadd.f32 %v401, %v530
    %v579 = vadd.f32 %v402, %v549
    %v580 = vadd.f32 %v403, %v568
    %v581 = vadd.f32 %v404, %v513
    %v582 = vadd.f32 %v405, %v532
    %v583 = vadd.f32 %v406, %v551
    %v584 = vadd.f32 %v407, %v570
    %v585 = vadd.f32 %v408, %v516
    %v586 = vadd.f32 %v409, %v535
    %v587 = vadd.f32 %v410, %v554
    %v588 = vadd.f32 %v411, %v573
    %v589 = vadd.f32 %v412, %v518
    %v590 = vadd.f32 %v413, %v537
    %v591 = vadd.f32 %v414, %v556
    %v592 = vadd.f32 %v415, %v575
    %vm593 = vcmask 1045504
    %v594 = vsel %vm593, %v581, 0.0
    %v595 = vadd.f32 %v577, %v594
    %v596 = vrot.slane %v595, 4
    %v597 = vadd.f32 %v595, %v596
    %v598 = vrot.slane %v597, 2
    %v599 = vadd.f32 %v597, %v598
    %v600 = vrot.slane %v599, 1
    %v601 = vadd.f32 %v599, %v600
    %v602 = vsel %vm593, %v582, 0.0
    %v603 = vadd.f32 %v578, %v602
    %v604 = vrot.slane %v603, 4
    %v605 = vadd.f32 %v603, %v604
    %v606 = vrot.slane %v605, 2
    %v607 = vadd.f32 %v605, %v606
    %v608 = vrot.slane %v607, 1
    %v609 = vadd.f32 %v607, %v608
    %v610 = vsel %vm593, %v583, 0.0
    %v611 = vadd.f32 %v579, %v610
    %v612 = vrot.slane %v611, 4
    %v613 = vadd.f32 %v611, %v612
    %v614 = vrot.slane %v613, 2
    %v615 = vadd.f32 %v613, %v614
    %v616 = vrot.slane %v615, 1
    %v617 = vadd.f32 %v615, %v616
    %vm618 = vcmask 523264
    %v619 = vsel %vm618, %v580, 0.0
    %vm620 = vcmask 521216
    %v621 = vsel %vm620, %v584, 0.0
    %v622 = vadd.f32 %v619, %v621
    %v623 = vrot.slane %v622, 4
    %v624 = vadd.f32 %v622, %v623
    %v625 = vrot.slane %v624, 2
    %v626 = vadd.f32 %v624, %v625
    %v627 = vrot.slane %v626, 1
    %v628 = vadd.f32 %v626, %v627
    %v629 = vmul.f32 %v577, %v577
    %v630 = vmul.f32 %v578, %v578
    %v631 = vmul.f32 %v579, %v579
    %v632 = vmul.f32 %v580, %v580
    %v633 = vmul.f32 %v581, %v581
    %v634 = vmul.f32 %v582, %v582
    %v635 = vmul.f32 %v583, %v583
    %v636 = vmul.f32 %v584, %v584
    %v637 = vsel %vm593, %v633, 0.0
    %v638 = vadd.f32 %v629, %v637
    %v639 = vrot.slane %v638, 4
    %v640 = vadd.f32 %v638, %v639
    %v641 = vrot.slane %v640, 2
    %v642 = vadd.f32 %v640, %v641
    %v643 = vrot.slane %v642, 1
    %v644 = vadd.f32 %v642, %v643
    %v645 = vsel %vm593, %v634, 0.0
    %v646 = vadd.f32 %v630, %v645
    %v647 = vrot.slane %v646, 4
    %v648 = vadd.f32 %v646, %v647
    %v649 = vrot.slane %v648, 2
    %v650 = vadd.f32 %v648, %v649
    %v651 = vrot.slane %v650, 1
    %v652 = vadd.f32 %v650, %v651
    %v653 = vsel %vm593, %v635, 0.0
    %v654 = vadd.f32 %v631, %v653
    %v655 = vrot.slane %v654, 4
    %v656 = vadd.f32 %v654, %v655
    %v657 = vrot.slane %v656, 2
    %v658 = vadd.f32 %v656, %v657
    %v659 = vrot.slane %v658, 1
    %v660 = vadd.f32 %v658, %v659
    %v661 = vsel %vm618, %v632, 0.0
    %v662 = vsel %vm620, %v636, 0.0
    %v663 = vadd.f32 %v661, %v662
    %v664 = vrot.slane %v663, 4
    %v665 = vadd.f32 %v663, %v664
    %v666 = vrot.slane %v665, 2
    %v667 = vadd.f32 %v665, %v666
    %v668 = vrot.slane %v667, 1
    %v669 = vadd.f32 %v667, %v668
    %v670 = vsel %vm593, %v589, 0.0
    %v671 = vadd.f32 %v585, %v670
    %v672 = vrot.slane %v671, 4
    %v673 = vadd.f32 %v671, %v672
    %v674 = vrot.slane %v673, 2
    %v675 = vadd.f32 %v673, %v674
    %v676 = vrot.slane %v675, 1
    %v677 = vadd.f32 %v675, %v676
    %v678 = vsel %vm593, %v590, 0.0
    %v679 = vadd.f32 %v586, %v678
    %v680 = vrot.slane %v679, 4
    %v681 = vadd.f32 %v679, %v680
    %v682 = vrot.slane %v681, 2
    %v683 = vadd.f32 %v681, %v682
    %v684 = vrot.slane %v683, 1
    %v685 = vadd.f32 %v683, %v684
    %v686 = vsel %vm593, %v591, 0.0
    %v687 = vadd.f32 %v587, %v686
    %v688 = vrot.slane %v687, 4
    %v689 = vadd.f32 %v687, %v688
    %v690 = vrot.slane %v689, 2
    %v691 = vadd.f32 %v689, %v690
    %v692 = vrot.slane %v691, 1
    %v693 = vadd.f32 %v691, %v692
    %v694 = vsel %vm618, %v588, 0.0
    %v695 = vsel %vm620, %v592, 0.0
    %v696 = vadd.f32 %v694, %v695
    %v697 = vrot.slane %v696, 4
    %v698 = vadd.f32 %v696, %v697
    %v699 = vrot.slane %v698, 2
    %v700 = vadd.f32 %v698, %v699
    %v701 = vrot.slane %v700, 1
    %v702 = vadd.f32 %v700, %v701
    %v703 = vmul.f32 %v585, %v585
    %v704 = vmul.f32 %v586, %v586
    %v705 = vmul.f32 %v587, %v587
    %v706 = vmul.f32 %v588, %v588
    %v707 = vmul.f32 %v589, %v589
    %v708 = vmul.f32 %v590, %v590
    %v709 = vmul.f32 %v591, %v591
    %v710 = vmul.f32 %v592, %v592
    %v711 = vsel %vm593, %v707, 0.0
    %v712 = vadd.f32 %v703, %v711
    %v713 = vrot.slane %v712, 4
    %v714 = vadd.f32 %v712, %v713
    %v715 = vrot.slane %v714, 2
    %v716 = vadd.f32 %v714, %v715
    %v717 = vrot.slane %v716, 1
    %v718 = vadd.f32 %v716, %v717
    %v719 = vsel %vm593, %v708, 0.0
    %v720 = vadd.f32 %v704, %v719
    %v721 = vrot.slane %v720, 4
    %v722 = vadd.f32 %v720, %v721
    %v723 = vrot.slane %v722, 2
    %v724 = vadd.f32 %v722, %v723
    %v725 = vrot.slane %v724, 1
    %v726 = vadd.f32 %v724, %v725
    %v727 = vsel %vm593, %v709, 0.0
    %v728 = vadd.f32 %v705, %v727
    %v729 = vrot.slane %v728, 4
    %v730 = vadd.f32 %v728, %v729
    %v731 = vrot.slane %v730, 2
    %v732 = vadd.f32 %v730, %v731
    %v733 = vrot.slane %v732, 1
    %v734 = vadd.f32 %v732, %v733
    %v735 = vsel %vm618, %v706, 0.0
    %v736 = vsel %vm620, %v710, 0.0
    %v737 = vadd.f32 %v735, %v736
    %v738 = vrot.slane %v737, 4
    %v739 = vadd.f32 %v737, %v738
    %v740 = vrot.slane %v739, 2
    %v741 = vadd.f32 %v739, %v740
    %v742 = vrot.slane %v741, 1
    %v743 = vadd.f32 %v741, %v742
    %v744 = vadd.f32 %v601, %v677
    %v745 = vadd.f32 %v609, %v685
    %v746 = vadd.f32 %v617, %v693
    %v747 = vadd.f32 %v628, %v702
    %v748 = vadd.f32 %v644, %v718
    %v749 = vadd.f32 %v652, %v726
    %v750 = vadd.f32 %v660, %v734
    %v751 = vadd.f32 %v669, %v743
    %v752 = vld [vmem:[%s9] sm:$0xff]
    %v753 = vld [vmem:[%s9 + $0x8] sm:$0xff]
    %v754 = vld [vmem:[%s9 + $0x10] sm:$0xff]
    %v755 = vld [vmem:[%s9 + $0x18] sm:$0xff]
    %v756 = vld [vmem:[%s9 + $0x20] sm:$0xff]
    %v757 = vld [vmem:[%s9 + $0x28] sm:$0xff]
    %v758 = vld [vmem:[%s9 + $0x30] sm:$0xff]
    %v759 = vld [vmem:[%s9 + $0x38] sm:$0xff]
    %v760 = vld [vmem:[%s9 + $0x40] sm:$0xff]
    %v761 = vld [vmem:[%s9 + $0x48] sm:$0xff]
    %v762 = vld [vmem:[%s9 + $0x50] sm:$0xff]
    %v763 = vld [vmem:[%s9 + $0x58] sm:$0xff]
    %v764 = vld [vmem:[%s9 + $0x60] sm:$0xff]
    %v765 = vld [vmem:[%s9 + $0x68] sm:$0xff]
    %v766 = vld [vmem:[%s9 + $0x70] sm:$0xff]
    %v767 = vld [vmem:[%s9 + $0x78] sm:$0xff]
    %v768 = vld [vmem:[%s4] sm:$0x1]
    %v769 = vld [vmem:[%s5] sm:$0x1]
    %v770 = vlaneseq
    %v771 = vshrl.u32 %v770, 7
    %vm772 = vcmp.eq.s32.totalorder %v771, 0
    %v773 = vsel %vm772, %v744, %v748
    %v774 = vsel %vm772, %v745, %v749
    %v775 = vsel %vm772, %v746, %v750
    %v776 = vsel %vm772, %v747, %v751
    %v778 = vsel %vm618, %v776, 0
    %v781 = vsel %vm618, %v755, 0
    %v784 = vsel %vm618, %v759, 0
    %v787 = vsel %vm618, %v763, 0
    %v790 = vsel %vm618, %v767, 0
    %792 = vmatpush.xpose.msra.mxu0 0.0
    %793 = vmatpush.xpose.msra.mxu0 0.0
    %794 = vmatpush.xpose.msra.mxu0 0.0
    %795 = vmatpush.xpose.msra.mxu0 0.0
    %796 = vmatpush.xpose.msra.mxu0 0.0
    %797 = vmatpush.xpose.msra.mxu0 0.0
    %798 = vmatpush.xpose.msra.mxu0 0.0
    %799 = vmatpush.xpose.msra.mxu0 0.0
    %800 = vmatpush.xpose.msra.mxu0 0.0
    %801 = vmatpush.xpose.msra.mxu0 0.0
    %802 = vmatpush.xpose.msra.mxu0 0.0
    %803 = vmatpush.xpose.msra.mxu0 0.0
    %v804 = vand.u32 %v764, 4294901760
    %805 = vmatpush.xpose.msra.mxu0 %v804
    %v806 = vand.u32 %v760, 4294901760
    %807 = vmatpush.xpose.msra.mxu0 %v806
    %v808 = vand.u32 %v756, 4294901760
    %809 = vmatpush.xpose.msra.mxu0 %v808
    %v810 = vand.u32 %v752, 4294901760
    %811 = vmatpush.xpose.msra.mxu0 %v810
    %v812 = vand.u32 %v773, 4294901760
    %v813 = vsub.f32 %v773, %v812
    %v814 = vand.u32 %v813, 4294901760
    %v815 = vsub.f32 %v813, %v814
    %v816 = vand.u32 %v815, 4294901760
    %817 = vmatmul.f32.gmra.mxu0 %v816
    %v818 = vpop.f32.mrf.mxu0
    %v819 = vadd.f32 0.0, %v818
    %820 = vdwg.mxu0
    %821 = vmatpush.xpose.msra.mxu0 0.0
    %822 = vmatpush.xpose.msra.mxu0 0.0
    %823 = vmatpush.xpose.msra.mxu0 0.0
    %824 = vmatpush.xpose.msra.mxu0 0.0
    %825 = vmatpush.xpose.msra.mxu0 0.0
    %826 = vmatpush.xpose.msra.mxu0 0.0
    %827 = vmatpush.xpose.msra.mxu0 0.0
    %828 = vmatpush.xpose.msra.mxu0 0.0
    %829 = vmatpush.xpose.msra.mxu0 0.0
    %830 = vmatpush.xpose.msra.mxu0 0.0
    %831 = vmatpush.xpose.msra.mxu0 0.0
    %832 = vmatpush.xpose.msra.mxu0 0.0
    %v833 = vand.u32 %v764, 4294901760
    %v834 = vsub.f32 %v764, %v833
    %v835 = vand.u32 %v834, 4294901760
    %v836 = vsub.f32 %v834, %v835
    %v837 = vand.u32 %v836, 4294901760
    %838 = vmatpush.xpose.msra.mxu0 %v837
    %v839 = vand.u32 %v760, 4294901760
    %v840 = vsub.f32 %v760, %v839
    %v841 = vand.u32 %v840, 4294901760
    %v842 = vsub.f32 %v840, %v841
    %v843 = vand.u32 %v842, 4294901760
    %844 = vmatpush.xpose.msra.mxu0 %v843
    %v845 = vand.u32 %v756, 4294901760
    %v846 = vsub.f32 %v756, %v845
    %v847 = vand.u32 %v846, 4294901760
    %v848 = vsub.f32 %v846, %v847
    %v849 = vand.u32 %v848, 4294901760
    %850 = vmatpush.xpose.msra.mxu0 %v849
    %v851 = vand.u32 %v752, 4294901760
    %v852 = vsub.f32 %v752, %v851
    %v853 = vand.u32 %v852, 4294901760
    %v854 = vsub.f32 %v852, %v853
    %v855 = vand.u32 %v854, 4294901760
    %856 = vmatpush.xpose.msra.mxu0 %v855
    %v857 = vand.u32 %v773, 4294901760
    %858 = vmatmul.f32.gmra.mxu0 %v857
    %v859 = vpop.f32.mrf.mxu0
    %v860 = vadd.f32 %v819, %v859
    %861 = vdwg.mxu0
    %862 = vmatpush.xpose.msra.mxu0 0.0
    %863 = vmatpush.xpose.msra.mxu0 0.0
    %864 = vmatpush.xpose.msra.mxu0 0.0
    %865 = vmatpush.xpose.msra.mxu0 0.0
    %866 = vmatpush.xpose.msra.mxu0 0.0
    %867 = vmatpush.xpose.msra.mxu0 0.0
    %868 = vmatpush.xpose.msra.mxu0 0.0
    %869 = vmatpush.xpose.msra.mxu0 0.0
    %870 = vmatpush.xpose.msra.mxu0 0.0
    %871 = vmatpush.xpose.msra.mxu0 0.0
    %872 = vmatpush.xpose.msra.mxu0 0.0
    %873 = vmatpush.xpose.msra.mxu0 0.0
    %v874 = vand.u32 %v764, 4294901760
    %v875 = vsub.f32 %v764, %v874
    %876 = vmatpush.xpose.msra.mxu0 %v875
    %v877 = vand.u32 %v760, 4294901760
    %v878 = vsub.f32 %v760, %v877
    %879 = vmatpush.xpose.msra.mxu0 %v878
    %v880 = vand.u32 %v756, 4294901760
    %v881 = vsub.f32 %v756, %v880
    %882 = vmatpush.xpose.msra.mxu0 %v881
    %v883 = vand.u32 %v752, 4294901760
    %v884 = vsub.f32 %v752, %v883
    %885 = vmatpush.xpose.msra.mxu0 %v884
    %v886 = vand.u32 %v773, 4294901760
    %v887 = vsub.f32 %v773, %v886
    %888 = vmatmul.f32.gmra.mxu0 %v887
    %v889 = vpop.f32.mrf.mxu0
    %v890 = vadd.f32 %v860, %v889
    %891 = vdwg.mxu0
    %892 = vmatpush.xpose.msra.mxu0 0.0
    %893 = vmatpush.xpose.msra.mxu0 0.0
    %894 = vmatpush.xpose.msra.mxu0 0.0
    %895 = vmatpush.xpose.msra.mxu0 0.0
    %896 = vmatpush.xpose.msra.mxu0 0.0
    %897 = vmatpush.xpose.msra.mxu0 0.0
    %898 = vmatpush.xpose.msra.mxu0 0.0
    %899 = vmatpush.xpose.msra.mxu0 0.0
    %900 = vmatpush.xpose.msra.mxu0 0.0
    %901 = vmatpush.xpose.msra.mxu0 0.0
    %902 = vmatpush.xpose.msra.mxu0 0.0
    %903 = vmatpush.xpose.msra.mxu0 0.0
    %v904 = vand.u32 %v764, 4294901760
    %905 = vmatpush.xpose.msra.mxu0 %v904
    %v906 = vand.u32 %v760, 4294901760
    %907 = vmatpush.xpose.msra.mxu0 %v906
    %v908 = vand.u32 %v756, 4294901760
    %909 = vmatpush.xpose.msra.mxu0 %v908
    %v910 = vand.u32 %v752, 4294901760
    %911 = vmatpush.xpose.msra.mxu0 %v910
    %v912 = vand.u32 %v773, 4294901760
    %v913 = vsub.f32 %v773, %v912
    %v914 = vand.u32 %v913, 4294901760
    %915 = vmatmul.f32.gmra.mxu0 %v914
    %v916 = vpop.f32.mrf.mxu0
    %v917 = vadd.f32 %v890, %v916
    %918 = vdwg.mxu0
    %919 = vmatpush.xpose.msra.mxu0 0.0
    %920 = vmatpush.xpose.msra.mxu0 0.0
    %921 = vmatpush.xpose.msra.mxu0 0.0
    %922 = vmatpush.xpose.msra.mxu0 0.0
    %923 = vmatpush.xpose.msra.mxu0 0.0
    %924 = vmatpush.xpose.msra.mxu0 0.0
    %925 = vmatpush.xpose.msra.mxu0 0.0
    %926 = vmatpush.xpose.msra.mxu0 0.0
    %927 = vmatpush.xpose.msra.mxu0 0.0
    %928 = vmatpush.xpose.msra.mxu0 0.0
    %929 = vmatpush.xpose.msra.mxu0 0.0
    %930 = vmatpush.xpose.msra.mxu0 0.0
    %v931 = vand.u32 %v764, 4294901760
    %v932 = vsub.f32 %v764, %v931
    %v933 = vand.u32 %v932, 4294901760
    %934 = vmatpush.xpose.msra.mxu0 %v933
    %v935 = vand.u32 %v760, 4294901760
    %v936 = vsub.f32 %v760, %v935
    %v937 = vand.u32 %v936, 4294901760
    %938 = vmatpush.xpose.msra.mxu0 %v937
    %v939 = vand.u32 %v756, 4294901760
    %v940 = vsub.f32 %v756, %v939
    %v941 = vand.u32 %v940, 4294901760
    %942 = vmatpush.xpose.msra.mxu0 %v941
    %v943 = vand.u32 %v752, 4294901760
    %v944 = vsub.f32 %v752, %v943
    %v945 = vand.u32 %v944, 4294901760
    %946 = vmatpush.xpose.msra.mxu0 %v945
    %v947 = vand.u32 %v773, 4294901760
    %948 = vmatmul.f32.gmra.mxu0 %v947
    %v949 = vpop.f32.mrf.mxu0
    %v950 = vadd.f32 %v917, %v949
    %951 = vdwg.mxu0
    %952 = vmatpush.xpose.msra.mxu0 0.0
    %953 = vmatpush.xpose.msra.mxu0 0.0
    %954 = vmatpush.xpose.msra.mxu0 0.0
    %955 = vmatpush.xpose.msra.mxu0 0.0
    %956 = vmatpush.xpose.msra.mxu0 0.0
    %957 = vmatpush.xpose.msra.mxu0 0.0
    %958 = vmatpush.xpose.msra.mxu0 0.0
    %959 = vmatpush.xpose.msra.mxu0 0.0
    %960 = vmatpush.xpose.msra.mxu0 0.0
    %961 = vmatpush.xpose.msra.mxu0 0.0
    %962 = vmatpush.xpose.msra.mxu0 0.0
    %963 = vmatpush.xpose.msra.mxu0 0.0
    %v964 = vand.u32 %v764, 4294901760
    %965 = vmatpush.xpose.msra.mxu0 %v964
    %v966 = vand.u32 %v760, 4294901760
    %967 = vmatpush.xpose.msra.mxu0 %v966
    %v968 = vand.u32 %v756, 4294901760
    %969 = vmatpush.xpose.msra.mxu0 %v968
    %v970 = vand.u32 %v752, 4294901760
    %971 = vmatpush.xpose.msra.mxu0 %v970
    %v972 = vand.u32 %v773, 4294901760
    %973 = vmatmul.f32.gmra.mxu0 %v972
    %v974 = vpop.f32.mrf.mxu0
    %v975 = vadd.f32 %v950, %v974
    %976 = vdwg.mxu0
    %977 = vmatpush.xpose.msra.mxu0 0.0
    %978 = vmatpush.xpose.msra.mxu0 0.0
    %979 = vmatpush.xpose.msra.mxu0 0.0
    %980 = vmatpush.xpose.msra.mxu0 0.0
    %981 = vmatpush.xpose.msra.mxu0 0.0
    %982 = vmatpush.xpose.msra.mxu0 0.0
    %983 = vmatpush.xpose.msra.mxu0 0.0
    %984 = vmatpush.xpose.msra.mxu0 0.0
    %985 = vmatpush.xpose.msra.mxu0 0.0
    %986 = vmatpush.xpose.msra.mxu0 0.0
    %987 = vmatpush.xpose.msra.mxu0 0.0
    %988 = vmatpush.xpose.msra.mxu0 0.0
    %v989 = vand.u32 %v765, 4294901760
    %990 = vmatpush.xpose.msra.mxu0 %v989
    %v991 = vand.u32 %v761, 4294901760
    %992 = vmatpush.xpose.msra.mxu0 %v991
    %v993 = vand.u32 %v757, 4294901760
    %994 = vmatpush.xpose.msra.mxu0 %v993
    %v995 = vand.u32 %v753, 4294901760
    %996 = vmatpush.xpose.msra.mxu0 %v995
    %v997 = vand.u32 %v774, 4294901760
    %v998 = vsub.f32 %v774, %v997
    %v999 = vand.u32 %v998, 4294901760
    %v1000 = vsub.f32 %v998, %v999
    %v1001 = vand.u32 %v1000, 4294901760
    %1002 = vmatmul.f32.gmra.mxu0 %v1001
    %v1003 = vpop.f32.mrf.mxu0
    %v1004 = vadd.f32 %v975, %v1003
    %1005 = vdwg.mxu0
    %1006 = vmatpush.xpose.msra.mxu0 0.0
    %1007 = vmatpush.xpose.msra.mxu0 0.0
    %1008 = vmatpush.xpose.msra.mxu0 0.0
    %1009 = vmatpush.xpose.msra.mxu0 0.0
    %1010 = vmatpush.xpose.msra.mxu0 0.0
    %1011 = vmatpush.xpose.msra.mxu0 0.0
    %1012 = vmatpush.xpose.msra.mxu0 0.0
    %1013 = vmatpush.xpose.msra.mxu0 0.0
    %1014 = vmatpush.xpose.msra.mxu0 0.0
    %1015 = vmatpush.xpose.msra.mxu0 0.0
    %1016 = vmatpush.xpose.msra.mxu0 0.0
    %1017 = vmatpush.xpose.msra.mxu0 0.0
    %v1018 = vand.u32 %v765, 4294901760
    %v1019 = vsub.f32 %v765, %v1018
    %v1020 = vand.u32 %v1019, 4294901760
    %v1021 = vsub.f32 %v1019, %v1020
    %v1022 = vand.u32 %v1021, 4294901760
    %1023 = vmatpush.xpose.msra.mxu0 %v1022
    %v1024 = vand.u32 %v761, 4294901760
    %v1025 = vsub.f32 %v761, %v1024
    %v1026 = vand.u32 %v1025, 4294901760
    %v1027 = vsub.f32 %v1025, %v1026
    %v1028 = vand.u32 %v1027, 4294901760
    %1029 = vmatpush.xpose.msra.mxu0 %v1028
    %v1030 = vand.u32 %v757, 4294901760
    %v1031 = vsub.f32 %v757, %v1030
    %v1032 = vand.u32 %v1031, 4294901760
    %v1033 = vsub.f32 %v1031, %v1032
    %v1034 = vand.u32 %v1033, 4294901760
    %1035 = vmatpush.xpose.msra.mxu0 %v1034
    %v1036 = vand.u32 %v753, 4294901760
    %v1037 = vsub.f32 %v753, %v1036
    %v1038 = vand.u32 %v1037, 4294901760
    %v1039 = vsub.f32 %v1037, %v1038
    %v1040 = vand.u32 %v1039, 4294901760
    %1041 = vmatpush.xpose.msra.mxu0 %v1040
    %v1042 = vand.u32 %v774, 4294901760
    %1043 = vmatmul.f32.gmra.mxu0 %v1042
    %v1044 = vpop.f32.mrf.mxu0
    %v1045 = vadd.f32 %v1004, %v1044
    %1046 = vdwg.mxu0
    %1047 = vmatpush.xpose.msra.mxu0 0.0
    %1048 = vmatpush.xpose.msra.mxu0 0.0
    %1049 = vmatpush.xpose.msra.mxu0 0.0
    %1050 = vmatpush.xpose.msra.mxu0 0.0
    %1051 = vmatpush.xpose.msra.mxu0 0.0
    %1052 = vmatpush.xpose.msra.mxu0 0.0
    %1053 = vmatpush.xpose.msra.mxu0 0.0
    %1054 = vmatpush.xpose.msra.mxu0 0.0
    %1055 = vmatpush.xpose.msra.mxu0 0.0
    %1056 = vmatpush.xpose.msra.mxu0 0.0
    %1057 = vmatpush.xpose.msra.mxu0 0.0
    %1058 = vmatpush.xpose.msra.mxu0 0.0
    %v1059 = vand.u32 %v765, 4294901760
    %v1060 = vsub.f32 %v765, %v1059
    %1061 = vmatpush.xpose.msra.mxu0 %v1060
    %v1062 = vand.u32 %v761, 4294901760
    %v1063 = vsub.f32 %v761, %v1062
    %1064 = vmatpush.xpose.msra.mxu0 %v1063
    %v1065 = vand.u32 %v757, 4294901760
    %v1066 = vsub.f32 %v757, %v1065
    %1067 = vmatpush.xpose.msra.mxu0 %v1066
    %v1068 = vand.u32 %v753, 4294901760
    %v1069 = vsub.f32 %v753, %v1068
    %1070 = vmatpush.xpose.msra.mxu0 %v1069
    %v1071 = vand.u32 %v774, 4294901760
    %v1072 = vsub.f32 %v774, %v1071
    %1073 = vmatmul.f32.gmra.mxu0 %v1072
    %v1074 = vpop.f32.mrf.mxu0
    %v1075 = vadd.f32 %v1045, %v1074
    %1076 = vdwg.mxu0
    %1077 = vmatpush.xpose.msra.mxu0 0.0
    %1078 = vmatpush.xpose.msra.mxu0 0.0
    %1079 = vmatpush.xpose.msra.mxu0 0.0
    %1080 = vmatpush.xpose.msra.mxu0 0.0
    %1081 = vmatpush.xpose.msra.mxu0 0.0
    %1082 = vmatpush.xpose.msra.mxu0 0.0
    %1083 = vmatpush.xpose.msra.mxu0 0.0
    %1084 = vmatpush.xpose.msra.mxu0 0.0
    %1085 = vmatpush.xpose.msra.mxu0 0.0
    %1086 = vmatpush.xpose.msra.mxu0 0.0
    %1087 = vmatpush.xpose.msra.mxu0 0.0
    %1088 = vmatpush.xpose.msra.mxu0 0.0
    %v1089 = vand.u32 %v765, 4294901760
    %1090 = vmatpush.xpose.msra.mxu0 %v1089
    %v1091 = vand.u32 %v761, 4294901760
    %1092 = vmatpush.xpose.msra.mxu0 %v1091
    %v1093 = vand.u32 %v757, 4294901760
    %1094 = vmatpush.xpose.msra.mxu0 %v1093
    %v1095 = vand.u32 %v753, 4294901760
    %1096 = vmatpush.xpose.msra.mxu0 %v1095
    %v1097 = vand.u32 %v774, 4294901760
    %v1098 = vsub.f32 %v774, %v1097
    %v1099 = vand.u32 %v1098, 4294901760
    %1100 = vmatmul.f32.gmra.mxu0 %v1099
    %v1101 = vpop.f32.mrf.mxu0
    %v1102 = vadd.f32 %v1075, %v1101
    %1103 = vdwg.mxu0
    %1104 = vmatpush.xpose.msra.mxu0 0.0
    %1105 = vmatpush.xpose.msra.mxu0 0.0
    %1106 = vmatpush.xpose.msra.mxu0 0.0
    %1107 = vmatpush.xpose.msra.mxu0 0.0
    %1108 = vmatpush.xpose.msra.mxu0 0.0
    %1109 = vmatpush.xpose.msra.mxu0 0.0
    %1110 = vmatpush.xpose.msra.mxu0 0.0
    %1111 = vmatpush.xpose.msra.mxu0 0.0
    %1112 = vmatpush.xpose.msra.mxu0 0.0
    %1113 = vmatpush.xpose.msra.mxu0 0.0
    %1114 = vmatpush.xpose.msra.mxu0 0.0
    %1115 = vmatpush.xpose.msra.mxu0 0.0
    %v1116 = vand.u32 %v765, 4294901760
    %v1117 = vsub.f32 %v765, %v1116
    %v1118 = vand.u32 %v1117, 4294901760
    %1119 = vmatpush.xpose.msra.mxu0 %v1118
    %v1120 = vand.u32 %v761, 4294901760
    %v1121 = vsub.f32 %v761, %v1120
    %v1122 = vand.u32 %v1121, 4294901760
    %1123 = vmatpush.xpose.msra.mxu0 %v1122
    %v1124 = vand.u32 %v757, 4294901760
    %v1125 = vsub.f32 %v757, %v1124
    %v1126 = vand.u32 %v1125, 4294901760
    %1127 = vmatpush.xpose.msra.mxu0 %v1126
    %v1128 = vand.u32 %v753, 4294901760
    %v1129 = vsub.f32 %v753, %v1128
    %v1130 = vand.u32 %v1129, 4294901760
    %1131 = vmatpush.xpose.msra.mxu0 %v1130
    %v1132 = vand.u32 %v774, 4294901760
    %1133 = vmatmul.f32.gmra.mxu0 %v1132
    %v1134 = vpop.f32.mrf.mxu0
    %v1135 = vadd.f32 %v1102, %v1134
    %1136 = vdwg.mxu0
    %1137 = vmatpush.xpose.msra.mxu0 0.0
    %1138 = vmatpush.xpose.msra.mxu0 0.0
    %1139 = vmatpush.xpose.msra.mxu0 0.0
    %1140 = vmatpush.xpose.msra.mxu0 0.0
    %1141 = vmatpush.xpose.msra.mxu0 0.0
    %1142 = vmatpush.xpose.msra.mxu0 0.0
    %1143 = vmatpush.xpose.msra.mxu0 0.0
    %1144 = vmatpush.xpose.msra.mxu0 0.0
    %1145 = vmatpush.xpose.msra.mxu0 0.0
    %1146 = vmatpush.xpose.msra.mxu0 0.0
    %1147 = vmatpush.xpose.msra.mxu0 0.0
    %1148 = vmatpush.xpose.msra.mxu0 0.0
    %v1149 = vand.u32 %v765, 4294901760
    %1150 = vmatpush.xpose.msra.mxu0 %v1149
    %v1151 = vand.u32 %v761, 4294901760
    %1152 = vmatpush.xpose.msra.mxu0 %v1151
    %v1153 = vand.u32 %v757, 4294901760
    %1154 = vmatpush.xpose.msra.mxu0 %v1153
    %v1155 = vand.u32 %v753, 4294901760
    %1156 = vmatpush.xpose.msra.mxu0 %v1155
    %v1157 = vand.u32 %v774, 4294901760
    %1158 = vmatmul.f32.gmra.mxu0 %v1157
    %v1159 = vpop.f32.mrf.mxu0
    %v1160 = vadd.f32 %v1135, %v1159
    %1161 = vdwg.mxu0
    %1162 = vmatpush.xpose.msra.mxu0 0.0
    %1163 = vmatpush.xpose.msra.mxu0 0.0
    %1164 = vmatpush.xpose.msra.mxu0 0.0
    %1165 = vmatpush.xpose.msra.mxu0 0.0
    %1166 = vmatpush.xpose.msra.mxu0 0.0
    %1167 = vmatpush.xpose.msra.mxu0 0.0
    %1168 = vmatpush.xpose.msra.mxu0 0.0
    %1169 = vmatpush.xpose.msra.mxu0 0.0
    %1170 = vmatpush.xpose.msra.mxu0 0.0
    %1171 = vmatpush.xpose.msra.mxu0 0.0
    %1172 = vmatpush.xpose.msra.mxu0 0.0
    %1173 = vmatpush.xpose.msra.mxu0 0.0
    %v1174 = vand.u32 %v766, 4294901760
    %1175 = vmatpush.xpose.msra.mxu0 %v1174
    %v1176 = vand.u32 %v762, 4294901760
    %1177 = vmatpush.xpose.msra.mxu0 %v1176
    %v1178 = vand.u32 %v758, 4294901760
    %1179 = vmatpush.xpose.msra.mxu0 %v1178
    %v1180 = vand.u32 %v754, 4294901760
    %1181 = vmatpush.xpose.msra.mxu0 %v1180
    %v1182 = vand.u32 %v775, 4294901760
    %v1183 = vsub.f32 %v775, %v1182
    %v1184 = vand.u32 %v1183, 4294901760
    %v1185 = vsub.f32 %v1183, %v1184
    %v1186 = vand.u32 %v1185, 4294901760
    %1187 = vmatmul.f32.gmra.mxu0 %v1186
    %v1188 = vpop.f32.mrf.mxu0
    %v1189 = vadd.f32 %v1160, %v1188
    %1190 = vdwg.mxu0
    %1191 = vmatpush.xpose.msra.mxu0 0.0
    %1192 = vmatpush.xpose.msra.mxu0 0.0
    %1193 = vmatpush.xpose.msra.mxu0 0.0
    %1194 = vmatpush.xpose.msra.mxu0 0.0
    %1195 = vmatpush.xpose.msra.mxu0 0.0
    %1196 = vmatpush.xpose.msra.mxu0 0.0
    %1197 = vmatpush.xpose.msra.mxu0 0.0
    %1198 = vmatpush.xpose.msra.mxu0 0.0
    %1199 = vmatpush.xpose.msra.mxu0 0.0
    %1200 = vmatpush.xpose.msra.mxu0 0.0
    %1201 = vmatpush.xpose.msra.mxu0 0.0
    %1202 = vmatpush.xpose.msra.mxu0 0.0
    %v1203 = vand.u32 %v766, 4294901760
    %v1204 = vsub.f32 %v766, %v1203
    %v1205 = vand.u32 %v1204, 4294901760
    %v1206 = vsub.f32 %v1204, %v1205
    %v1207 = vand.u32 %v1206, 4294901760
    %1208 = vmatpush.xpose.msra.mxu0 %v1207
    %v1209 = vand.u32 %v762, 4294901760
    %v1210 = vsub.f32 %v762, %v1209
    %v1211 = vand.u32 %v1210, 4294901760
    %v1212 = vsub.f32 %v1210, %v1211
    %v1213 = vand.u32 %v1212, 4294901760
    %1214 = vmatpush.xpose.msra.mxu0 %v1213
    %v1215 = vand.u32 %v758, 4294901760
    %v1216 = vsub.f32 %v758, %v1215
    %v1217 = vand.u32 %v1216, 4294901760
    %v1218 = vsub.f32 %v1216, %v1217
    %v1219 = vand.u32 %v1218, 4294901760
    %1220 = vmatpush.xpose.msra.mxu0 %v1219
    %v1221 = vand.u32 %v754, 4294901760
    %v1222 = vsub.f32 %v754, %v1221
    %v1223 = vand.u32 %v1222, 4294901760
    %v1224 = vsub.f32 %v1222, %v1223
    %v1225 = vand.u32 %v1224, 4294901760
    %1226 = vmatpush.xpose.msra.mxu0 %v1225
    %v1227 = vand.u32 %v775, 4294901760
    %1228 = vmatmul.f32.gmra.mxu0 %v1227
    %v1229 = vpop.f32.mrf.mxu0
    %v1230 = vadd.f32 %v1189, %v1229
    %1231 = vdwg.mxu0
    %1232 = vmatpush.xpose.msra.mxu0 0.0
    %1233 = vmatpush.xpose.msra.mxu0 0.0
    %1234 = vmatpush.xpose.msra.mxu0 0.0
    %1235 = vmatpush.xpose.msra.mxu0 0.0
    %1236 = vmatpush.xpose.msra.mxu0 0.0
    %1237 = vmatpush.xpose.msra.mxu0 0.0
    %1238 = vmatpush.xpose.msra.mxu0 0.0
    %1239 = vmatpush.xpose.msra.mxu0 0.0
    %1240 = vmatpush.xpose.msra.mxu0 0.0
    %1241 = vmatpush.xpose.msra.mxu0 0.0
    %1242 = vmatpush.xpose.msra.mxu0 0.0
    %1243 = vmatpush.xpose.msra.mxu0 0.0
    %v1244 = vand.u32 %v766, 4294901760
    %v1245 = vsub.f32 %v766, %v1244
    %1246 = vmatpush.xpose.msra.mxu0 %v1245
    %v1247 = vand.u32 %v762, 4294901760
    %v1248 = vsub.f32 %v762, %v1247
    %1249 = vmatpush.xpose.msra.mxu0 %v1248
    %v1250 = vand.u32 %v758, 4294901760
    %v1251 = vsub.f32 %v758, %v1250
    %1252 = vmatpush.xpose.msra.mxu0 %v1251
    %v1253 = vand.u32 %v754, 4294901760
    %v1254 = vsub.f32 %v754, %v1253
    %1255 = vmatpush.xpose.msra.mxu0 %v1254
    %v1256 = vand.u32 %v775, 4294901760
    %v1257 = vsub.f32 %v775, %v1256
    %1258 = vmatmul.f32.gmra.mxu0 %v1257
    %v1259 = vpop.f32.mrf.mxu0
    %v1260 = vadd.f32 %v1230, %v1259
    %1261 = vdwg.mxu0
    %1262 = vmatpush.xpose.msra.mxu0 0.0
    %1263 = vmatpush.xpose.msra.mxu0 0.0
    %1264 = vmatpush.xpose.msra.mxu0 0.0
    %1265 = vmatpush.xpose.msra.mxu0 0.0
    %1266 = vmatpush.xpose.msra.mxu0 0.0
    %1267 = vmatpush.xpose.msra.mxu0 0.0
    %1268 = vmatpush.xpose.msra.mxu0 0.0
    %1269 = vmatpush.xpose.msra.mxu0 0.0
    %1270 = vmatpush.xpose.msra.mxu0 0.0
    %1271 = vmatpush.xpose.msra.mxu0 0.0
    %1272 = vmatpush.xpose.msra.mxu0 0.0
    %1273 = vmatpush.xpose.msra.mxu0 0.0
    %v1274 = vand.u32 %v766, 4294901760
    %1275 = vmatpush.xpose.msra.mxu0 %v1274
    %v1276 = vand.u32 %v762, 4294901760
    %1277 = vmatpush.xpose.msra.mxu0 %v1276
    %v1278 = vand.u32 %v758, 4294901760
    %1279 = vmatpush.xpose.msra.mxu0 %v1278
    %v1280 = vand.u32 %v754, 4294901760
    %1281 = vmatpush.xpose.msra.mxu0 %v1280
    %v1282 = vand.u32 %v775, 4294901760
    %v1283 = vsub.f32 %v775, %v1282
    %v1284 = vand.u32 %v1283, 4294901760
    %1285 = vmatmul.f32.gmra.mxu0 %v1284
    %v1286 = vpop.f32.mrf.mxu0
    %v1287 = vadd.f32 %v1260, %v1286
    %1288 = vdwg.mxu0
    %1289 = vmatpush.xpose.msra.mxu0 0.0
    %1290 = vmatpush.xpose.msra.mxu0 0.0
    %1291 = vmatpush.xpose.msra.mxu0 0.0
    %1292 = vmatpush.xpose.msra.mxu0 0.0
    %1293 = vmatpush.xpose.msra.mxu0 0.0
    %1294 = vmatpush.xpose.msra.mxu0 0.0
    %1295 = vmatpush.xpose.msra.mxu0 0.0
    %1296 = vmatpush.xpose.msra.mxu0 0.0
    %1297 = vmatpush.xpose.msra.mxu0 0.0
    %1298 = vmatpush.xpose.msra.mxu0 0.0
    %1299 = vmatpush.xpose.msra.mxu0 0.0
    %1300 = vmatpush.xpose.msra.mxu0 0.0
    %v1301 = vand.u32 %v766, 4294901760
    %v1302 = vsub.f32 %v766, %v1301
    %v1303 = vand.u32 %v1302, 4294901760
    %1304 = vmatpush.xpose.msra.mxu0 %v1303
    %v1305 = vand.u32 %v762, 4294901760
    %v1306 = vsub.f32 %v762, %v1305
    %v1307 = vand.u32 %v1306, 4294901760
    %1308 = vmatpush.xpose.msra.mxu0 %v1307
    %v1309 = vand.u32 %v758, 4294901760
    %v1310 = vsub.f32 %v758, %v1309
    %v1311 = vand.u32 %v1310, 4294901760
    %1312 = vmatpush.xpose.msra.mxu0 %v1311
    %v1313 = vand.u32 %v754, 4294901760
    %v1314 = vsub.f32 %v754, %v1313
    %v1315 = vand.u32 %v1314, 4294901760
    %1316 = vmatpush.xpose.msra.mxu0 %v1315
    %v1317 = vand.u32 %v775, 4294901760
    %1318 = vmatmul.f32.gmra.mxu0 %v1317
    %v1319 = vpop.f32.mrf.mxu0
    %v1320 = vadd.f32 %v1287, %v1319
    %1321 = vdwg.mxu0
    %1322 = vmatpush.xpose.msra.mxu0 0.0
    %1323 = vmatpush.xpose.msra.mxu0 0.0
    %1324 = vmatpush.xpose.msra.mxu0 0.0
    %1325 = vmatpush.xpose.msra.mxu0 0.0
    %1326 = vmatpush.xpose.msra.mxu0 0.0
    %1327 = vmatpush.xpose.msra.mxu0 0.0
    %1328 = vmatpush.xpose.msra.mxu0 0.0
    %1329 = vmatpush.xpose.msra.mxu0 0.0
    %1330 = vmatpush.xpose.msra.mxu0 0.0
    %1331 = vmatpush.xpose.msra.mxu0 0.0
    %1332 = vmatpush.xpose.msra.mxu0 0.0
    %1333 = vmatpush.xpose.msra.mxu0 0.0
    %v1334 = vand.u32 %v766, 4294901760
    %1335 = vmatpush.xpose.msra.mxu0 %v1334
    %v1336 = vand.u32 %v762, 4294901760
    %1337 = vmatpush.xpose.msra.mxu0 %v1336
    %v1338 = vand.u32 %v758, 4294901760
    %1339 = vmatpush.xpose.msra.mxu0 %v1338
    %v1340 = vand.u32 %v754, 4294901760
    %1341 = vmatpush.xpose.msra.mxu0 %v1340
    %v1342 = vand.u32 %v775, 4294901760
    %1343 = vmatmul.f32.gmra.mxu0 %v1342
    %v1344 = vpop.f32.mrf.mxu0
    %v1345 = vadd.f32 %v1320, %v1344
    %1346 = vdwg.mxu0
    %1347 = vmatpush.xpose.msra.mxu0 0.0
    %1348 = vmatpush.xpose.msra.mxu0 0.0
    %1349 = vmatpush.xpose.msra.mxu0 0.0
    %1350 = vmatpush.xpose.msra.mxu0 0.0
    %1351 = vmatpush.xpose.msra.mxu0 0.0
    %1352 = vmatpush.xpose.msra.mxu0 0.0
    %1353 = vmatpush.xpose.msra.mxu0 0.0
    %1354 = vmatpush.xpose.msra.mxu0 0.0
    %1355 = vmatpush.xpose.msra.mxu0 0.0
    %1356 = vmatpush.xpose.msra.mxu0 0.0
    %1357 = vmatpush.xpose.msra.mxu0 0.0
    %1358 = vmatpush.xpose.msra.mxu0 0.0
    %v1359 = vand.u32 %v790, 4294901760
    %1360 = vmatpush.xpose.msra.mxu0 %v1359
    %v1361 = vand.u32 %v787, 4294901760
    %1362 = vmatpush.xpose.msra.mxu0 %v1361
    %v1363 = vand.u32 %v784, 4294901760
    %1364 = vmatpush.xpose.msra.mxu0 %v1363
    %v1365 = vand.u32 %v781, 4294901760
    %1366 = vmatpush.xpose.msra.mxu0 %v1365
    %v1367 = vand.u32 %v778, 4294901760
    %v1368 = vsub.f32 %v778, %v1367
    %v1369 = vand.u32 %v1368, 4294901760
    %v1370 = vsub.f32 %v1368, %v1369
    %v1371 = vand.u32 %v1370, 4294901760
    %1372 = vmatmul.f32.gmra.mxu0 %v1371
    %v1373 = vpop.f32.mrf.mxu0
    %v1374 = vadd.f32 %v1345, %v1373
    %1375 = vdwg.mxu0
    %1376 = vmatpush.xpose.msra.mxu0 0.0
    %1377 = vmatpush.xpose.msra.mxu0 0.0
    %1378 = vmatpush.xpose.msra.mxu0 0.0
    %1379 = vmatpush.xpose.msra.mxu0 0.0
    %1380 = vmatpush.xpose.msra.mxu0 0.0
    %1381 = vmatpush.xpose.msra.mxu0 0.0
    %1382 = vmatpush.xpose.msra.mxu0 0.0
    %1383 = vmatpush.xpose.msra.mxu0 0.0
    %1384 = vmatpush.xpose.msra.mxu0 0.0
    %1385 = vmatpush.xpose.msra.mxu0 0.0
    %1386 = vmatpush.xpose.msra.mxu0 0.0
    %1387 = vmatpush.xpose.msra.mxu0 0.0
    %v1388 = vand.u32 %v790, 4294901760
    %v1389 = vsub.f32 %v790, %v1388
    %v1390 = vand.u32 %v1389, 4294901760
    %v1391 = vsub.f32 %v1389, %v1390
    %v1392 = vand.u32 %v1391, 4294901760
    %1393 = vmatpush.xpose.msra.mxu0 %v1392
    %v1394 = vand.u32 %v787, 4294901760
    %v1395 = vsub.f32 %v787, %v1394
    %v1396 = vand.u32 %v1395, 4294901760
    %v1397 = vsub.f32 %v1395, %v1396
    %v1398 = vand.u32 %v1397, 4294901760
    %1399 = vmatpush.xpose.msra.mxu0 %v1398
    %v1400 = vand.u32 %v784, 4294901760
    %v1401 = vsub.f32 %v784, %v1400
    %v1402 = vand.u32 %v1401, 4294901760
    %v1403 = vsub.f32 %v1401, %v1402
    %v1404 = vand.u32 %v1403, 4294901760
    %1405 = vmatpush.xpose.msra.mxu0 %v1404
    %v1406 = vand.u32 %v781, 4294901760
    %v1407 = vsub.f32 %v781, %v1406
    %v1408 = vand.u32 %v1407, 4294901760
    %v1409 = vsub.f32 %v1407, %v1408
    %v1410 = vand.u32 %v1409, 4294901760
    %1411 = vmatpush.xpose.msra.mxu0 %v1410
    %v1412 = vand.u32 %v778, 4294901760
    %1413 = vmatmul.f32.gmra.mxu0 %v1412
    %v1414 = vpop.f32.mrf.mxu0
    %v1415 = vadd.f32 %v1374, %v1414
    %1416 = vdwg.mxu0
    %1417 = vmatpush.xpose.msra.mxu0 0.0
    %1418 = vmatpush.xpose.msra.mxu0 0.0
    %1419 = vmatpush.xpose.msra.mxu0 0.0
    %1420 = vmatpush.xpose.msra.mxu0 0.0
    %1421 = vmatpush.xpose.msra.mxu0 0.0
    %1422 = vmatpush.xpose.msra.mxu0 0.0
    %1423 = vmatpush.xpose.msra.mxu0 0.0
    %1424 = vmatpush.xpose.msra.mxu0 0.0
    %1425 = vmatpush.xpose.msra.mxu0 0.0
    %1426 = vmatpush.xpose.msra.mxu0 0.0
    %1427 = vmatpush.xpose.msra.mxu0 0.0
    %1428 = vmatpush.xpose.msra.mxu0 0.0
    %v1429 = vand.u32 %v790, 4294901760
    %v1430 = vsub.f32 %v790, %v1429
    %1431 = vmatpush.xpose.msra.mxu0 %v1430
    %v1432 = vand.u32 %v787, 4294901760
    %v1433 = vsub.f32 %v787, %v1432
    %1434 = vmatpush.xpose.msra.mxu0 %v1433
    %v1435 = vand.u32 %v784, 4294901760
    %v1436 = vsub.f32 %v784, %v1435
    %1437 = vmatpush.xpose.msra.mxu0 %v1436
    %v1438 = vand.u32 %v781, 4294901760
    %v1439 = vsub.f32 %v781, %v1438
    %1440 = vmatpush.xpose.msra.mxu0 %v1439
    %v1441 = vand.u32 %v778, 4294901760
    %v1442 = vsub.f32 %v778, %v1441
    %1443 = vmatmul.f32.gmra.mxu0 %v1442
    %v1444 = vpop.f32.mrf.mxu0
    %v1445 = vadd.f32 %v1415, %v1444
    %1446 = vdwg.mxu0
    %1447 = vmatpush.xpose.msra.mxu0 0.0
    %1448 = vmatpush.xpose.msra.mxu0 0.0
    %1449 = vmatpush.xpose.msra.mxu0 0.0
    %1450 = vmatpush.xpose.msra.mxu0 0.0
    %1451 = vmatpush.xpose.msra.mxu0 0.0
    %1452 = vmatpush.xpose.msra.mxu0 0.0
    %1453 = vmatpush.xpose.msra.mxu0 0.0
    %1454 = vmatpush.xpose.msra.mxu0 0.0
    %1455 = vmatpush.xpose.msra.mxu0 0.0
    %1456 = vmatpush.xpose.msra.mxu0 0.0
    %1457 = vmatpush.xpose.msra.mxu0 0.0
    %1458 = vmatpush.xpose.msra.mxu0 0.0
    %v1459 = vand.u32 %v790, 4294901760
    %1460 = vmatpush.xpose.msra.mxu0 %v1459
    %v1461 = vand.u32 %v787, 4294901760
    %1462 = vmatpush.xpose.msra.mxu0 %v1461
    %v1463 = vand.u32 %v784, 4294901760
    %1464 = vmatpush.xpose.msra.mxu0 %v1463
    %v1465 = vand.u32 %v781, 4294901760
    %1466 = vmatpush.xpose.msra.mxu0 %v1465
    %v1467 = vand.u32 %v778, 4294901760
    %v1468 = vsub.f32 %v778, %v1467
    %v1469 = vand.u32 %v1468, 4294901760
    %1470 = vmatmul.f32.gmra.mxu0 %v1469
    %v1471 = vpop.f32.mrf.mxu0
    %v1472 = vadd.f32 %v1445, %v1471
    %1473 = vdwg.mxu0
    %1474 = vmatpush.xpose.msra.mxu0 0.0
    %1475 = vmatpush.xpose.msra.mxu0 0.0
    %1476 = vmatpush.xpose.msra.mxu0 0.0
    %1477 = vmatpush.xpose.msra.mxu0 0.0
    %1478 = vmatpush.xpose.msra.mxu0 0.0
    %1479 = vmatpush.xpose.msra.mxu0 0.0
    %1480 = vmatpush.xpose.msra.mxu0 0.0
    %1481 = vmatpush.xpose.msra.mxu0 0.0
    %1482 = vmatpush.xpose.msra.mxu0 0.0
    %1483 = vmatpush.xpose.msra.mxu0 0.0
    %1484 = vmatpush.xpose.msra.mxu0 0.0
    %1485 = vmatpush.xpose.msra.mxu0 0.0
    %v1486 = vand.u32 %v790, 4294901760
    %v1487 = vsub.f32 %v790, %v1486
    %v1488 = vand.u32 %v1487, 4294901760
    %1489 = vmatpush.xpose.msra.mxu0 %v1488
    %v1490 = vand.u32 %v787, 4294901760
    %v1491 = vsub.f32 %v787, %v1490
    %v1492 = vand.u32 %v1491, 4294901760
    %1493 = vmatpush.xpose.msra.mxu0 %v1492
    %v1494 = vand.u32 %v784, 4294901760
    %v1495 = vsub.f32 %v784, %v1494
    %v1496 = vand.u32 %v1495, 4294901760
    %1497 = vmatpush.xpose.msra.mxu0 %v1496
    %v1498 = vand.u32 %v781, 4294901760
    %v1499 = vsub.f32 %v781, %v1498
    %v1500 = vand.u32 %v1499, 4294901760
    %1501 = vmatpush.xpose.msra.mxu0 %v1500
    %v1502 = vand.u32 %v778, 4294901760
    %1503 = vmatmul.f32.gmra.mxu0 %v1502
    %v1504 = vpop.f32.mrf.mxu0
    %v1505 = vadd.f32 %v1472, %v1504
    %1506 = vdwg.mxu0
    %1507 = vmatpush.xpose.msra.mxu0 0.0
    %1508 = vmatpush.xpose.msra.mxu0 0.0
    %1509 = vmatpush.xpose.msra.mxu0 0.0
    %1510 = vmatpush.xpose.msra.mxu0 0.0
    %1511 = vmatpush.xpose.msra.mxu0 0.0
    %1512 = vmatpush.xpose.msra.mxu0 0.0
    %1513 = vmatpush.xpose.msra.mxu0 0.0
    %1514 = vmatpush.xpose.msra.mxu0 0.0
    %1515 = vmatpush.xpose.msra.mxu0 0.0
    %1516 = vmatpush.xpose.msra.mxu0 0.0
    %1517 = vmatpush.xpose.msra.mxu0 0.0
    %1518 = vmatpush.xpose.msra.mxu0 0.0
    %v1519 = vand.u32 %v790, 4294901760
    %1520 = vmatpush.xpose.msra.mxu0 %v1519
    %v1521 = vand.u32 %v787, 4294901760
    %1522 = vmatpush.xpose.msra.mxu0 %v1521
    %v1523 = vand.u32 %v784, 4294901760
    %1524 = vmatpush.xpose.msra.mxu0 %v1523
    %v1525 = vand.u32 %v781, 4294901760
    %1526 = vmatpush.xpose.msra.mxu0 %v1525
    %v1527 = vand.u32 %v778, 4294901760
    %1528 = vmatmul.f32.gmra.mxu0 %v1527
    %v1529 = vpop.f32.mrf.mxu0
    %v1530 = vadd.f32 %v1505, %v1529
    %1531 = vdwg.mxu0
    %v1532 = vmul.f32 %v1530, 0.0025510204
    %v1533 = vmul.f32 %v1532, %v1532
    %v1535 = vrot.slane %v1533, 7
    %v1537 = vsub.f32 %v1532, %v1535
    %v1538 = vadd.f32 %v1537, 1e-05
    %v1539 = vrsqrt.pop %v1538
    %v1540 = vmul.f32 %v1539, %v1538
    %v1541 = vmul.f32 %v1540, %v1539
    %v1542 = vmul.f32 0.5, %v1541
    %v1543 = vsub.f32 1.5, %v1542
    %v1544 = vmul.f32 %v1539, %v1543
    %vm1545 = vweird.f32 %v1538
    %vm1546 = vweird.f32 %v1539
    %vm1547 = vmor %vm1545, %vm1546
    %v1548 = vsel %vm1547, %v1539, %v1544
    %1550 = vst [vmem:[#allocation1] sm:$0xff] %v1548
    %s1551 = scalar_lea.vmem [#allocation1], 1
    %v1552 = vld [vmem:[%s1551] ss:$9 sm:$0xff]
    %v1554 = vmul.f32 %v768, %v1552
    %v1555 = vmul.f32 %v1532, %v1554
    %v1556 = vsub.f32 %v769, %v1555
    %v1558 = vperm.slane %v1554, 0
    %v1561 = vperm.slane %v1556, 0
    %v1563 = vsel %vm772, %v1558, %v1561
    %vm1564 = vcmask 261120
    %v1566 = vsel %vm1564, %v1563, 0
    %1568 = vmatpush.msra.mxu0 0.0
    %1569 = vmatpush.msra.mxu0 0.0
    %1570 = vmatpush.msra.mxu0 0.0
    %1571 = vmatpush.msra.mxu0 0.0
    %1572 = vmatpush.msra.mxu0 0.0
    %1573 = vmatpush.msra.mxu0 0.0
    %1574 = vmatpush.msra.mxu0 0.0
    %1575 = vmatpush.msra.mxu0 0.0
    %1576 = vmatpush.msra.mxu0 0.0
    %1577 = vmatpush.msra.mxu0 0.0
    %1578 = vmatpush.msra.mxu0 0.0
    %1579 = vmatpush.msra.mxu0 0.0
    %v1580 = vand.u32 %v764, 4294901760
    %1581 = vmatpush.msra.mxu0 %v1580
    %v1582 = vand.u32 %v760, 4294901760
    %1583 = vmatpush.msra.mxu0 %v1582
    %v1584 = vand.u32 %v756, 4294901760
    %1585 = vmatpush.msra.mxu0 %v1584
    %v1586 = vand.u32 %v752, 4294901760
    %1587 = vmatpush.msra.mxu0 %v1586
    %v1588 = vand.u32 %v1566, 4294901760
    %v1589 = vsub.f32 %v1566, %v1588
    %v1590 = vand.u32 %v1589, 4294901760
    %v1591 = vsub.f32 %v1589, %v1590
    %v1592 = vand.u32 %v1591, 4294901760
    %1593 = vmatmul.f32.gmra.mxu0 %v1592
    %v1594 = vpop.f32.mrf.mxu0
    %v1595 = vadd.f32 0.0, %v1594
    %1596 = vdwg.mxu0
    %1597 = vmatpush.msra.mxu0 0.0
    %1598 = vmatpush.msra.mxu0 0.0
    %1599 = vmatpush.msra.mxu0 0.0
    %1600 = vmatpush.msra.mxu0 0.0
    %1601 = vmatpush.msra.mxu0 0.0
    %1602 = vmatpush.msra.mxu0 0.0
    %1603 = vmatpush.msra.mxu0 0.0
    %1604 = vmatpush.msra.mxu0 0.0
    %1605 = vmatpush.msra.mxu0 0.0
    %1606 = vmatpush.msra.mxu0 0.0
    %1607 = vmatpush.msra.mxu0 0.0
    %1608 = vmatpush.msra.mxu0 0.0
    %v1609 = vand.u32 %v764, 4294901760
    %v1610 = vsub.f32 %v764, %v1609
    %v1611 = vand.u32 %v1610, 4294901760
    %v1612 = vsub.f32 %v1610, %v1611
    %v1613 = vand.u32 %v1612, 4294901760
    %1614 = vmatpush.msra.mxu0 %v1613
    %v1615 = vand.u32 %v760, 4294901760
    %v1616 = vsub.f32 %v760, %v1615
    %v1617 = vand.u32 %v1616, 4294901760
    %v1618 = vsub.f32 %v1616, %v1617
    %v1619 = vand.u32 %v1618, 4294901760
    %1620 = vmatpush.msra.mxu0 %v1619
    %v1621 = vand.u32 %v756, 4294901760
    %v1622 = vsub.f32 %v756, %v1621
    %v1623 = vand.u32 %v1622, 4294901760
    %v1624 = vsub.f32 %v1622, %v1623
    %v1625 = vand.u32 %v1624, 4294901760
    %1626 = vmatpush.msra.mxu0 %v1625
    %v1627 = vand.u32 %v752, 4294901760
    %v1628 = vsub.f32 %v752, %v1627
    %v1629 = vand.u32 %v1628, 4294901760
    %v1630 = vsub.f32 %v1628, %v1629
    %v1631 = vand.u32 %v1630, 4294901760
    %1632 = vmatpush.msra.mxu0 %v1631
    %v1633 = vand.u32 %v1566, 4294901760
    %1634 = vmatmul.f32.gmra.mxu0 %v1633
    %v1635 = vpop.f32.mrf.mxu0
    %v1636 = vadd.f32 %v1595, %v1635
    %1637 = vdwg.mxu0
    %1638 = vmatpush.msra.mxu0 0.0
    %1639 = vmatpush.msra.mxu0 0.0
    %1640 = vmatpush.msra.mxu0 0.0
    %1641 = vmatpush.msra.mxu0 0.0
    %1642 = vmatpush.msra.mxu0 0.0
    %1643 = vmatpush.msra.mxu0 0.0
    %1644 = vmatpush.msra.mxu0 0.0
    %1645 = vmatpush.msra.mxu0 0.0
    %1646 = vmatpush.msra.mxu0 0.0
    %1647 = vmatpush.msra.mxu0 0.0
    %1648 = vmatpush.msra.mxu0 0.0
    %1649 = vmatpush.msra.mxu0 0.0
    %v1650 = vand.u32 %v764, 4294901760
    %v1651 = vsub.f32 %v764, %v1650
    %1652 = vmatpush.msra.mxu0 %v1651
    %v1653 = vand.u32 %v760, 4294901760
    %v1654 = vsub.f32 %v760, %v1653
    %1655 = vmatpush.msra.mxu0 %v1654
    %v1656 = vand.u32 %v756, 4294901760
    %v1657 = vsub.f32 %v756, %v1656
    %1658 = vmatpush.msra.mxu0 %v1657
    %v1659 = vand.u32 %v752, 4294901760
    %v1660 = vsub.f32 %v752, %v1659
    %1661 = vmatpush.msra.mxu0 %v1660
    %v1662 = vand.u32 %v1566, 4294901760
    %v1663 = vsub.f32 %v1566, %v1662
    %1664 = vmatmul.f32.gmra.mxu0 %v1663
    %v1665 = vpop.f32.mrf.mxu0
    %v1666 = vadd.f32 %v1636, %v1665
    %1667 = vdwg.mxu0
    %1668 = vmatpush.msra.mxu0 0.0
    %1669 = vmatpush.msra.mxu0 0.0
    %1670 = vmatpush.msra.mxu0 0.0
    %1671 = vmatpush.msra.mxu0 0.0
    %1672 = vmatpush.msra.mxu0 0.0
    %1673 = vmatpush.msra.mxu0 0.0
    %1674 = vmatpush.msra.mxu0 0.0
    %1675 = vmatpush.msra.mxu0 0.0
    %1676 = vmatpush.msra.mxu0 0.0
    %1677 = vmatpush.msra.mxu0 0.0
    %1678 = vmatpush.msra.mxu0 0.0
    %1679 = vmatpush.msra.mxu0 0.0
    %v1680 = vand.u32 %v764, 4294901760
    %1681 = vmatpush.msra.mxu0 %v1680
    %v1682 = vand.u32 %v760, 4294901760
    %1683 = vmatpush.msra.mxu0 %v1682
    %v1684 = vand.u32 %v756, 4294901760
    %1685 = vmatpush.msra.mxu0 %v1684
    %v1686 = vand.u32 %v752, 4294901760
    %1687 = vmatpush.msra.mxu0 %v1686
    %v1688 = vand.u32 %v1566, 4294901760
    %v1689 = vsub.f32 %v1566, %v1688
    %v1690 = vand.u32 %v1689, 4294901760
    %1691 = vmatmul.f32.gmra.mxu0 %v1690
    %v1692 = vpop.f32.mrf.mxu0
    %v1693 = vadd.f32 %v1666, %v1692
    %1694 = vdwg.mxu0
    %1695 = vmatpush.msra.mxu0 0.0
    %1696 = vmatpush.msra.mxu0 0.0
    %1697 = vmatpush.msra.mxu0 0.0
    %1698 = vmatpush.msra.mxu0 0.0
    %1699 = vmatpush.msra.mxu0 0.0
    %1700 = vmatpush.msra.mxu0 0.0
    %1701 = vmatpush.msra.mxu0 0.0
    %1702 = vmatpush.msra.mxu0 0.0
    %1703 = vmatpush.msra.mxu0 0.0
    %1704 = vmatpush.msra.mxu0 0.0
    %1705 = vmatpush.msra.mxu0 0.0
    %1706 = vmatpush.msra.mxu0 0.0
    %v1707 = vand.u32 %v764, 4294901760
    %v1708 = vsub.f32 %v764, %v1707
    %v1709 = vand.u32 %v1708, 4294901760
    %1710 = vmatpush.msra.mxu0 %v1709
    %v1711 = vand.u32 %v760, 4294901760
    %v1712 = vsub.f32 %v760, %v1711
    %v1713 = vand.u32 %v1712, 4294901760
    %1714 = vmatpush.msra.mxu0 %v1713
    %v1715 = vand.u32 %v756, 4294901760
    %v1716 = vsub.f32 %v756, %v1715
    %v1717 = vand.u32 %v1716, 4294901760
    %1718 = vmatpush.msra.mxu0 %v1717
    %v1719 = vand.u32 %v752, 4294901760
    %v1720 = vsub.f32 %v752, %v1719
    %v1721 = vand.u32 %v1720, 4294901760
    %1722 = vmatpush.msra.mxu0 %v1721
    %v1723 = vand.u32 %v1566, 4294901760
    %1724 = vmatmul.f32.gmra.mxu0 %v1723
    %v1725 = vpop.f32.mrf.mxu0
    %v1726 = vadd.f32 %v1693, %v1725
    %1727 = vdwg.mxu0
    %1728 = vmatpush.msra.mxu0 0.0
    %1729 = vmatpush.msra.mxu0 0.0
    %1730 = vmatpush.msra.mxu0 0.0
    %1731 = vmatpush.msra.mxu0 0.0
    %1732 = vmatpush.msra.mxu0 0.0
    %1733 = vmatpush.msra.mxu0 0.0
    %1734 = vmatpush.msra.mxu0 0.0
    %1735 = vmatpush.msra.mxu0 0.0
    %1736 = vmatpush.msra.mxu0 0.0
    %1737 = vmatpush.msra.mxu0 0.0
    %1738 = vmatpush.msra.mxu0 0.0
    %1739 = vmatpush.msra.mxu0 0.0
    %v1740 = vand.u32 %v764, 4294901760
    %1741 = vmatpush.msra.mxu0 %v1740
    %v1742 = vand.u32 %v760, 4294901760
    %1743 = vmatpush.msra.mxu0 %v1742
    %v1744 = vand.u32 %v756, 4294901760
    %1745 = vmatpush.msra.mxu0 %v1744
    %v1746 = vand.u32 %v752, 4294901760
    %1747 = vmatpush.msra.mxu0 %v1746
    %v1748 = vand.u32 %v1566, 4294901760
    %1749 = vmatmul.f32.gmra.mxu0 %v1748
    %v1750 = vpop.f32.mrf.mxu0
    %v1751 = vadd.f32 %v1726, %v1750
    %1752 = vdwg.mxu0
    %1753 = vmatpush.msra.mxu0 0.0
    %1754 = vmatpush.msra.mxu0 0.0
    %1755 = vmatpush.msra.mxu0 0.0
    %1756 = vmatpush.msra.mxu0 0.0
    %1757 = vmatpush.msra.mxu0 0.0
    %1758 = vmatpush.msra.mxu0 0.0
    %1759 = vmatpush.msra.mxu0 0.0
    %1760 = vmatpush.msra.mxu0 0.0
    %1761 = vmatpush.msra.mxu0 0.0
    %1762 = vmatpush.msra.mxu0 0.0
    %1763 = vmatpush.msra.mxu0 0.0
    %1764 = vmatpush.msra.mxu0 0.0
    %v1765 = vand.u32 %v765, 4294901760
    %1766 = vmatpush.msra.mxu0 %v1765
    %v1767 = vand.u32 %v761, 4294901760
    %1768 = vmatpush.msra.mxu0 %v1767
    %v1769 = vand.u32 %v757, 4294901760
    %1770 = vmatpush.msra.mxu0 %v1769
    %v1771 = vand.u32 %v753, 4294901760
    %1772 = vmatpush.msra.mxu0 %v1771
    %v1773 = vand.u32 %v1566, 4294901760
    %v1774 = vsub.f32 %v1566, %v1773
    %v1775 = vand.u32 %v1774, 4294901760
    %v1776 = vsub.f32 %v1774, %v1775
    %v1777 = vand.u32 %v1776, 4294901760
    %1778 = vmatmul.f32.gmra.mxu0 %v1777
    %v1779 = vpop.f32.mrf.mxu0
    %v1780 = vadd.f32 0.0, %v1779
    %1781 = vdwg.mxu0
    %1782 = vmatpush.msra.mxu0 0.0
    %1783 = vmatpush.msra.mxu0 0.0
    %1784 = vmatpush.msra.mxu0 0.0
    %1785 = vmatpush.msra.mxu0 0.0
    %1786 = vmatpush.msra.mxu0 0.0
    %1787 = vmatpush.msra.mxu0 0.0
    %1788 = vmatpush.msra.mxu0 0.0
    %1789 = vmatpush.msra.mxu0 0.0
    %1790 = vmatpush.msra.mxu0 0.0
    %1791 = vmatpush.msra.mxu0 0.0
    %1792 = vmatpush.msra.mxu0 0.0
    %1793 = vmatpush.msra.mxu0 0.0
    %v1794 = vand.u32 %v765, 4294901760
    %v1795 = vsub.f32 %v765, %v1794
    %v1796 = vand.u32 %v1795, 4294901760
    %v1797 = vsub.f32 %v1795, %v1796
    %v1798 = vand.u32 %v1797, 4294901760
    %1799 = vmatpush.msra.mxu0 %v1798
    %v1800 = vand.u32 %v761, 4294901760
    %v1801 = vsub.f32 %v761, %v1800
    %v1802 = vand.u32 %v1801, 4294901760
    %v1803 = vsub.f32 %v1801, %v1802
    %v1804 = vand.u32 %v1803, 4294901760
    %1805 = vmatpush.msra.mxu0 %v1804
    %v1806 = vand.u32 %v757, 4294901760
    %v1807 = vsub.f32 %v757, %v1806
    %v1808 = vand.u32 %v1807, 4294901760
    %v1809 = vsub.f32 %v1807, %v1808
    %v1810 = vand.u32 %v1809, 4294901760
    %1811 = vmatpush.msra.mxu0 %v1810
    %v1812 = vand.u32 %v753, 4294901760
    %v1813 = vsub.f32 %v753, %v1812
    %v1814 = vand.u32 %v1813, 4294901760
    %v1815 = vsub.f32 %v1813, %v1814
    %v1816 = vand.u32 %v1815, 4294901760
    %1817 = vmatpush.msra.mxu0 %v1816
    %v1818 = vand.u32 %v1566, 4294901760
    %1819 = vmatmul.f32.gmra.mxu0 %v1818
    %v1820 = vpop.f32.mrf.mxu0
    %v1821 = vadd.f32 %v1780, %v1820
    %1822 = vdwg.mxu0
    %1823 = vmatpush.msra.mxu0 0.0
    %1824 = vmatpush.msra.mxu0 0.0
    %1825 = vmatpush.msra.mxu0 0.0
    %1826 = vmatpush.msra.mxu0 0.0
    %1827 = vmatpush.msra.mxu0 0.0
    %1828 = vmatpush.msra.mxu0 0.0
    %1829 = vmatpush.msra.mxu0 0.0
    %1830 = vmatpush.msra.mxu0 0.0
    %1831 = vmatpush.msra.mxu0 0.0
    %1832 = vmatpush.msra.mxu0 0.0
    %1833 = vmatpush.msra.mxu0 0.0
    %1834 = vmatpush.msra.mxu0 0.0
    %v1835 = vand.u32 %v765, 4294901760
    %v1836 = vsub.f32 %v765, %v1835
    %1837 = vmatpush.msra.mxu0 %v1836
    %v1838 = vand.u32 %v761, 4294901760
    %v1839 = vsub.f32 %v761, %v1838
    %1840 = vmatpush.msra.mxu0 %v1839
    %v1841 = vand.u32 %v757, 4294901760
    %v1842 = vsub.f32 %v757, %v1841
    %1843 = vmatpush.msra.mxu0 %v1842
    %v1844 = vand.u32 %v753, 4294901760
    %v1845 = vsub.f32 %v753, %v1844
    %1846 = vmatpush.msra.mxu0 %v1845
    %v1847 = vand.u32 %v1566, 4294901760
    %v1848 = vsub.f32 %v1566, %v1847
    %1849 = vmatmul.f32.gmra.mxu0 %v1848
    %v1850 = vpop.f32.mrf.mxu0
    %v1851 = vadd.f32 %v1821, %v1850
    %1852 = vdwg.mxu0
    %1853 = vmatpush.msra.mxu0 0.0
    %1854 = vmatpush.msra.mxu0 0.0
    %1855 = vmatpush.msra.mxu0 0.0
    %1856 = vmatpush.msra.mxu0 0.0
    %1857 = vmatpush.msra.mxu0 0.0
    %1858 = vmatpush.msra.mxu0 0.0
    %1859 = vmatpush.msra.mxu0 0.0
    %1860 = vmatpush.msra.mxu0 0.0
    %1861 = vmatpush.msra.mxu0 0.0
    %1862 = vmatpush.msra.mxu0 0.0
    %1863 = vmatpush.msra.mxu0 0.0
    %1864 = vmatpush.msra.mxu0 0.0
    %v1865 = vand.u32 %v765, 4294901760
    %1866 = vmatpush.msra.mxu0 %v1865
    %v1867 = vand.u32 %v761, 4294901760
    %1868 = vmatpush.msra.mxu0 %v1867
    %v1869 = vand.u32 %v757, 4294901760
    %1870 = vmatpush.msra.mxu0 %v1869
    %v1871 = vand.u32 %v753, 4294901760
    %1872 = vmatpush.msra.mxu0 %v1871
    %v1873 = vand.u32 %v1566, 4294901760
    %v1874 = vsub.f32 %v1566, %v1873
    %v1875 = vand.u32 %v1874, 4294901760
    %1876 = vmatmul.f32.gmra.mxu0 %v1875
    %v1877 = vpop.f32.mrf.mxu0
    %v1878 = vadd.f32 %v1851, %v1877
    %1879 = vdwg.mxu0
    %1880 = vmatpush.msra.mxu0 0.0
    %1881 = vmatpush.msra.mxu0 0.0
    %1882 = vmatpush.msra.mxu0 0.0
    %1883 = vmatpush.msra.mxu0 0.0
    %1884 = vmatpush.msra.mxu0 0.0
    %1885 = vmatpush.msra.mxu0 0.0
    %1886 = vmatpush.msra.mxu0 0.0
    %1887 = vmatpush.msra.mxu0 0.0
    %1888 = vmatpush.msra.mxu0 0.0
    %1889 = vmatpush.msra.mxu0 0.0
    %1890 = vmatpush.msra.mxu0 0.0
    %1891 = vmatpush.msra.mxu0 0.0
    %v1892 = vand.u32 %v765, 4294901760
    %v1893 = vsub.f32 %v765, %v1892
    %v1894 = vand.u32 %v1893, 4294901760
    %1895 = vmatpush.msra.mxu0 %v1894
    %v1896 = vand.u32 %v761, 4294901760
    %v1897 = vsub.f32 %v761, %v1896
    %v1898 = vand.u32 %v1897, 4294901760
    %1899 = vmatpush.msra.mxu0 %v1898
    %v1900 = vand.u32 %v757, 4294901760
    %v1901 = vsub.f32 %v757, %v1900
    %v1902 = vand.u32 %v1901, 4294901760
    %1903 = vmatpush.msra.mxu0 %v1902
    %v1904 = vand.u32 %v753, 4294901760
    %v1905 = vsub.f32 %v753, %v1904
    %v1906 = vand.u32 %v1905, 4294901760
    %1907 = vmatpush.msra.mxu0 %v1906
    %v1908 = vand.u32 %v1566, 4294901760
    %1909 = vmatmul.f32.gmra.mxu0 %v1908
    %v1910 = vpop.f32.mrf.mxu0
    %v1911 = vadd.f32 %v1878, %v1910
    %1912 = vdwg.mxu0
    %1913 = vmatpush.msra.mxu0 0.0
    %1914 = vmatpush.msra.mxu0 0.0
    %1915 = vmatpush.msra.mxu0 0.0
    %1916 = vmatpush.msra.mxu0 0.0
    %1917 = vmatpush.msra.mxu0 0.0
    %1918 = vmatpush.msra.mxu0 0.0
    %1919 = vmatpush.msra.mxu0 0.0
    %1920 = vmatpush.msra.mxu0 0.0
    %1921 = vmatpush.msra.mxu0 0.0
    %1922 = vmatpush.msra.mxu0 0.0
    %1923 = vmatpush.msra.mxu0 0.0
    %1924 = vmatpush.msra.mxu0 0.0
    %v1925 = vand.u32 %v765, 4294901760
    %1926 = vmatpush.msra.mxu0 %v1925
    %v1927 = vand.u32 %v761, 4294901760
    %1928 = vmatpush.msra.mxu0 %v1927
    %v1929 = vand.u32 %v757, 4294901760
    %1930 = vmatpush.msra.mxu0 %v1929
    %v1931 = vand.u32 %v753, 4294901760
    %1932 = vmatpush.msra.mxu0 %v1931
    %v1933 = vand.u32 %v1566, 4294901760
    %1934 = vmatmul.f32.gmra.mxu0 %v1933
    %v1935 = vpop.f32.mrf.mxu0
    %v1936 = vadd.f32 %v1911, %v1935
    %1937 = vdwg.mxu0
    %1938 = vmatpush.msra.mxu0 0.0
    %1939 = vmatpush.msra.mxu0 0.0
    %1940 = vmatpush.msra.mxu0 0.0
    %1941 = vmatpush.msra.mxu0 0.0
    %1942 = vmatpush.msra.mxu0 0.0
    %1943 = vmatpush.msra.mxu0 0.0
    %1944 = vmatpush.msra.mxu0 0.0
    %1945 = vmatpush.msra.mxu0 0.0
    %1946 = vmatpush.msra.mxu0 0.0
    %1947 = vmatpush.msra.mxu0 0.0
    %1948 = vmatpush.msra.mxu0 0.0
    %1949 = vmatpush.msra.mxu0 0.0
    %v1950 = vand.u32 %v766, 4294901760
    %1951 = vmatpush.msra.mxu0 %v1950
    %v1952 = vand.u32 %v762, 4294901760
    %1953 = vmatpush.msra.mxu0 %v1952
    %v1954 = vand.u32 %v758, 4294901760
    %1955 = vmatpush.msra.mxu0 %v1954
    %v1956 = vand.u32 %v754, 4294901760
    %1957 = vmatpush.msra.mxu0 %v1956
    %v1958 = vand.u32 %v1566, 4294901760
    %v1959 = vsub.f32 %v1566, %v1958
    %v1960 = vand.u32 %v1959, 4294901760
    %v1961 = vsub.f32 %v1959, %v1960
    %v1962 = vand.u32 %v1961, 4294901760
    %1963 = vmatmul.f32.gmra.mxu0 %v1962
    %v1964 = vpop.f32.mrf.mxu0
    %v1965 = vadd.f32 0.0, %v1964
    %1966 = vdwg.mxu0
    %1967 = vmatpush.msra.mxu0 0.0
    %1968 = vmatpush.msra.mxu0 0.0
    %1969 = vmatpush.msra.mxu0 0.0
    %1970 = vmatpush.msra.mxu0 0.0
    %1971 = vmatpush.msra.mxu0 0.0
    %1972 = vmatpush.msra.mxu0 0.0
    %1973 = vmatpush.msra.mxu0 0.0
    %1974 = vmatpush.msra.mxu0 0.0
    %1975 = vmatpush.msra.mxu0 0.0
    %1976 = vmatpush.msra.mxu0 0.0
    %1977 = vmatpush.msra.mxu0 0.0
    %1978 = vmatpush.msra.mxu0 0.0
    %v1979 = vand.u32 %v766, 4294901760
    %v1980 = vsub.f32 %v766, %v1979
    %v1981 = vand.u32 %v1980, 4294901760
    %v1982 = vsub.f32 %v1980, %v1981
    %v1983 = vand.u32 %v1982, 4294901760
    %1984 = vmatpush.msra.mxu0 %v1983
    %v1985 = vand.u32 %v762, 4294901760
    %v1986 = vsub.f32 %v762, %v1985
    %v1987 = vand.u32 %v1986, 4294901760
    %v1988 = vsub.f32 %v1986, %v1987
    %v1989 = vand.u32 %v1988, 4294901760
    %1990 = vmatpush.msra.mxu0 %v1989
    %v1991 = vand.u32 %v758, 4294901760
    %v1992 = vsub.f32 %v758, %v1991
    %v1993 = vand.u32 %v1992, 4294901760
    %v1994 = vsub.f32 %v1992, %v1993
    %v1995 = vand.u32 %v1994, 4294901760
    %1996 = vmatpush.msra.mxu0 %v1995
    %v1997 = vand.u32 %v754, 4294901760
    %v1998 = vsub.f32 %v754, %v1997
    %v1999 = vand.u32 %v1998, 4294901760
    %v2000 = vsub.f32 %v1998, %v1999
    %v2001 = vand.u32 %v2000, 4294901760
    %2002 = vmatpush.msra.mxu0 %v2001
    %v2003 = vand.u32 %v1566, 4294901760
    %2004 = vmatmul.f32.gmra.mxu0 %v2003
    %v2005 = vpop.f32.mrf.mxu0
    %v2006 = vadd.f32 %v1965, %v2005
    %2007 = vdwg.mxu0
    %2008 = vmatpush.msra.mxu0 0.0
    %2009 = vmatpush.msra.mxu0 0.0
    %2010 = vmatpush.msra.mxu0 0.0
    %2011 = vmatpush.msra.mxu0 0.0
    %2012 = vmatpush.msra.mxu0 0.0
    %2013 = vmatpush.msra.mxu0 0.0
    %2014 = vmatpush.msra.mxu0 0.0
    %2015 = vmatpush.msra.mxu0 0.0
    %2016 = vmatpush.msra.mxu0 0.0
    %2017 = vmatpush.msra.mxu0 0.0
    %2018 = vmatpush.msra.mxu0 0.0
    %2019 = vmatpush.msra.mxu0 0.0
    %v2020 = vand.u32 %v766, 4294901760
    %v2021 = vsub.f32 %v766, %v2020
    %2022 = vmatpush.msra.mxu0 %v2021
    %v2023 = vand.u32 %v762, 4294901760
    %v2024 = vsub.f32 %v762, %v2023
    %2025 = vmatpush.msra.mxu0 %v2024
    %v2026 = vand.u32 %v758, 4294901760
    %v2027 = vsub.f32 %v758, %v2026
    %2028 = vmatpush.msra.mxu0 %v2027
    %v2029 = vand.u32 %v754, 4294901760
    %v2030 = vsub.f32 %v754, %v2029
    %2031 = vmatpush.msra.mxu0 %v2030
    %v2032 = vand.u32 %v1566, 4294901760
    %v2033 = vsub.f32 %v1566, %v2032
    %2034 = vmatmul.f32.gmra.mxu0 %v2033
    %v2035 = vpop.f32.mrf.mxu0
    %v2036 = vadd.f32 %v2006, %v2035
    %2037 = vdwg.mxu0
    %2038 = vmatpush.msra.mxu0 0.0
    %2039 = vmatpush.msra.mxu0 0.0
    %2040 = vmatpush.msra.mxu0 0.0
    %2041 = vmatpush.msra.mxu0 0.0
    %2042 = vmatpush.msra.mxu0 0.0
    %2043 = vmatpush.msra.mxu0 0.0
    %2044 = vmatpush.msra.mxu0 0.0
    %2045 = vmatpush.msra.mxu0 0.0
    %2046 = vmatpush.msra.mxu0 0.0
    %2047 = vmatpush.msra.mxu0 0.0
    %2048 = vmatpush.msra.mxu0 0.0
    %2049 = vmatpush.msra.mxu0 0.0
    %v2050 = vand.u32 %v766, 4294901760
    %2051 = vmatpush.msra.mxu0 %v2050
    %v2052 = vand.u32 %v762, 4294901760
    %2053 = vmatpush.msra.mxu0 %v2052
    %v2054 = vand.u32 %v758, 4294901760
    %2055 = vmatpush.msra.mxu0 %v2054
    %v2056 = vand.u32 %v754, 4294901760
    %2057 = vmatpush.msra.mxu0 %v2056
    %v2058 = vand.u32 %v1566, 4294901760
    %v2059 = vsub.f32 %v1566, %v2058
    %v2060 = vand.u32 %v2059, 4294901760
    %2061 = vmatmul.f32.gmra.mxu0 %v2060
    %v2062 = vpop.f32.mrf.mxu0
    %v2063 = vadd.f32 %v2036, %v2062
    %2064 = vdwg.mxu0
    %2065 = vmatpush.msra.mxu0 0.0
    %2066 = vmatpush.msra.mxu0 0.0
    %2067 = vmatpush.msra.mxu0 0.0
    %2068 = vmatpush.msra.mxu0 0.0
    %2069 = vmatpush.msra.mxu0 0.0
    %2070 = vmatpush.msra.mxu0 0.0
    %2071 = vmatpush.msra.mxu0 0.0
    %2072 = vmatpush.msra.mxu0 0.0
    %2073 = vmatpush.msra.mxu0 0.0
    %2074 = vmatpush.msra.mxu0 0.0
    %2075 = vmatpush.msra.mxu0 0.0
    %2076 = vmatpush.msra.mxu0 0.0
    %v2077 = vand.u32 %v766, 4294901760
    %v2078 = vsub.f32 %v766, %v2077
    %v2079 = vand.u32 %v2078, 4294901760
    %2080 = vmatpush.msra.mxu0 %v2079
    %v2081 = vand.u32 %v762, 4294901760
    %v2082 = vsub.f32 %v762, %v2081
    %v2083 = vand.u32 %v2082, 4294901760
    %2084 = vmatpush.msra.mxu0 %v2083
    %v2085 = vand.u32 %v758, 4294901760
    %v2086 = vsub.f32 %v758, %v2085
    %v2087 = vand.u32 %v2086, 4294901760
    %2088 = vmatpush.msra.mxu0 %v2087
    %v2089 = vand.u32 %v754, 4294901760
    %v2090 = vsub.f32 %v754, %v2089
    %v2091 = vand.u32 %v2090, 4294901760
    %2092 = vmatpush.msra.mxu0 %v2091
    %v2093 = vand.u32 %v1566, 4294901760
    %2094 = vmatmul.f32.gmra.mxu0 %v2093
    %v2095 = vpop.f32.mrf.mxu0
    %v2096 = vadd.f32 %v2063, %v2095
    %2097 = vdwg.mxu0
    %2098 = vmatpush.msra.mxu0 0.0
    %2099 = vmatpush.msra.mxu0 0.0
    %2100 = vmatpush.msra.mxu0 0.0
    %2101 = vmatpush.msra.mxu0 0.0
    %2102 = vmatpush.msra.mxu0 0.0
    %2103 = vmatpush.msra.mxu0 0.0
    %2104 = vmatpush.msra.mxu0 0.0
    %2105 = vmatpush.msra.mxu0 0.0
    %2106 = vmatpush.msra.mxu0 0.0
    %2107 = vmatpush.msra.mxu0 0.0
    %2108 = vmatpush.msra.mxu0 0.0
    %2109 = vmatpush.msra.mxu0 0.0
    %v2110 = vand.u32 %v766, 4294901760
    %2111 = vmatpush.msra.mxu0 %v2110
    %v2112 = vand.u32 %v762, 4294901760
    %2113 = vmatpush.msra.mxu0 %v2112
    %v2114 = vand.u32 %v758, 4294901760
    %2115 = vmatpush.msra.mxu0 %v2114
    %v2116 = vand.u32 %v754, 4294901760
    %2117 = vmatpush.msra.mxu0 %v2116
    %v2118 = vand.u32 %v1566, 4294901760
    %2119 = vmatmul.f32.gmra.mxu0 %v2118
    %v2120 = vpop.f32.mrf.mxu0
    %v2121 = vadd.f32 %v2096, %v2120
    %2122 = vdwg.mxu0
    %2123 = vmatpush.msra.mxu0 0.0
    %2124 = vmatpush.msra.mxu0 0.0
    %2125 = vmatpush.msra.mxu0 0.0
    %2126 = vmatpush.msra.mxu0 0.0
    %2127 = vmatpush.msra.mxu0 0.0
    %2128 = vmatpush.msra.mxu0 0.0
    %2129 = vmatpush.msra.mxu0 0.0
    %2130 = vmatpush.msra.mxu0 0.0
    %2131 = vmatpush.msra.mxu0 0.0
    %2132 = vmatpush.msra.mxu0 0.0
    %2133 = vmatpush.msra.mxu0 0.0
    %2134 = vmatpush.msra.mxu0 0.0
    %v2135 = vand.u32 %v767, 4294901760
    %2136 = vmatpush.msra.mxu0 %v2135
    %v2137 = vand.u32 %v763, 4294901760
    %2138 = vmatpush.msra.mxu0 %v2137
    %v2139 = vand.u32 %v759, 4294901760
    %2140 = vmatpush.msra.mxu0 %v2139
    %v2141 = vand.u32 %v755, 4294901760
    %2142 = vmatpush.msra.mxu0 %v2141
    %v2143 = vand.u32 %v1566, 4294901760
    %v2144 = vsub.f32 %v1566, %v2143
    %v2145 = vand.u32 %v2144, 4294901760
    %v2146 = vsub.f32 %v2144, %v2145
    %v2147 = vand.u32 %v2146, 4294901760
    %2148 = vmatmul.f32.gmra.mxu0 %v2147
    %v2149 = vpop.f32.mrf.mxu0
    %v2150 = vadd.f32 0.0, %v2149
    %2151 = vdwg.mxu0
    %2152 = vmatpush.msra.mxu0 0.0
    %2153 = vmatpush.msra.mxu0 0.0
    %2154 = vmatpush.msra.mxu0 0.0
    %2155 = vmatpush.msra.mxu0 0.0
    %2156 = vmatpush.msra.mxu0 0.0
    %2157 = vmatpush.msra.mxu0 0.0
    %2158 = vmatpush.msra.mxu0 0.0
    %2159 = vmatpush.msra.mxu0 0.0
    %2160 = vmatpush.msra.mxu0 0.0
    %2161 = vmatpush.msra.mxu0 0.0
    %2162 = vmatpush.msra.mxu0 0.0
    %2163 = vmatpush.msra.mxu0 0.0
    %v2164 = vand.u32 %v767, 4294901760
    %v2165 = vsub.f32 %v767, %v2164
    %v2166 = vand.u32 %v2165, 4294901760
    %v2167 = vsub.f32 %v2165, %v2166
    %v2168 = vand.u32 %v2167, 4294901760
    %2169 = vmatpush.msra.mxu0 %v2168
    %v2170 = vand.u32 %v763, 4294901760
    %v2171 = vsub.f32 %v763, %v2170
    %v2172 = vand.u32 %v2171, 4294901760
    %v2173 = vsub.f32 %v2171, %v2172
    %v2174 = vand.u32 %v2173, 4294901760
    %2175 = vmatpush.msra.mxu0 %v2174
    %v2176 = vand.u32 %v759, 4294901760
    %v2177 = vsub.f32 %v759, %v2176
    %v2178 = vand.u32 %v2177, 4294901760
    %v2179 = vsub.f32 %v2177, %v2178
    %v2180 = vand.u32 %v2179, 4294901760
    %2181 = vmatpush.msra.mxu0 %v2180
    %v2182 = vand.u32 %v755, 4294901760
    %v2183 = vsub.f32 %v755, %v2182
    %v2184 = vand.u32 %v2183, 4294901760
    %v2185 = vsub.f32 %v2183, %v2184
    %v2186 = vand.u32 %v2185, 4294901760
    %2187 = vmatpush.msra.mxu0 %v2186
    %v2188 = vand.u32 %v1566, 4294901760
    %2189 = vmatmul.f32.gmra.mxu0 %v2188
    %v2190 = vpop.f32.mrf.mxu0
    %v2191 = vadd.f32 %v2150, %v2190
    %2192 = vdwg.mxu0
    %2193 = vmatpush.msra.mxu0 0.0
    %2194 = vmatpush.msra.mxu0 0.0
    %2195 = vmatpush.msra.mxu0 0.0
    %2196 = vmatpush.msra.mxu0 0.0
    %2197 = vmatpush.msra.mxu0 0.0
    %2198 = vmatpush.msra.mxu0 0.0
    %2199 = vmatpush.msra.mxu0 0.0
    %2200 = vmatpush.msra.mxu0 0.0
    %2201 = vmatpush.msra.mxu0 0.0
    %2202 = vmatpush.msra.mxu0 0.0
    %2203 = vmatpush.msra.mxu0 0.0
    %2204 = vmatpush.msra.mxu0 0.0
    %v2205 = vand.u32 %v767, 4294901760
    %v2206 = vsub.f32 %v767, %v2205
    %2207 = vmatpush.msra.mxu0 %v2206
    %v2208 = vand.u32 %v763, 4294901760
    %v2209 = vsub.f32 %v763, %v2208
    %2210 = vmatpush.msra.mxu0 %v2209
    %v2211 = vand.u32 %v759, 4294901760
    %v2212 = vsub.f32 %v759, %v2211
    %2213 = vmatpush.msra.mxu0 %v2212
    %v2214 = vand.u32 %v755, 4294901760
    %v2215 = vsub.f32 %v755, %v2214
    %2216 = vmatpush.msra.mxu0 %v2215
    %v2217 = vand.u32 %v1566, 4294901760
    %v2218 = vsub.f32 %v1566, %v2217
    %2219 = vmatmul.f32.gmra.mxu0 %v2218
    %v2220 = vpop.f32.mrf.mxu0
    %v2221 = vadd.f32 %v2191, %v2220
    %2222 = vdwg.mxu0
    %2223 = vmatpush.msra.mxu0 0.0
    %2224 = vmatpush.msra.mxu0 0.0
    %2225 = vmatpush.msra.mxu0 0.0
    %2226 = vmatpush.msra.mxu0 0.0
    %2227 = vmatpush.msra.mxu0 0.0
    %2228 = vmatpush.msra.mxu0 0.0
    %2229 = vmatpush.msra.mxu0 0.0
    %2230 = vmatpush.msra.mxu0 0.0
    %2231 = vmatpush.msra.mxu0 0.0
    %2232 = vmatpush.msra.mxu0 0.0
    %2233 = vmatpush.msra.mxu0 0.0
    %2234 = vmatpush.msra.mxu0 0.0
    %v2235 = vand.u32 %v767, 4294901760
    %2236 = vmatpush.msra.mxu0 %v2235
    %v2237 = vand.u32 %v763, 4294901760
    %2238 = vmatpush.msra.mxu0 %v2237
    %v2239 = vand.u32 %v759, 4294901760
    %2240 = vmatpush.msra.mxu0 %v2239
    %v2241 = vand.u32 %v755, 4294901760
    %2242 = vmatpush.msra.mxu0 %v2241
    %v2243 = vand.u32 %v1566, 4294901760
    %v2244 = vsub.f32 %v1566, %v2243
    %v2245 = vand.u32 %v2244, 4294901760
    %2246 = vmatmul.f32.gmra.mxu0 %v2245
    %v2247 = vpop.f32.mrf.mxu0
    %v2248 = vadd.f32 %v2221, %v2247
    %2249 = vdwg.mxu0
    %2250 = vmatpush.msra.mxu0 0.0
    %2251 = vmatpush.msra.mxu0 0.0
    %2252 = vmatpush.msra.mxu0 0.0
    %2253 = vmatpush.msra.mxu0 0.0
    %2254 = vmatpush.msra.mxu0 0.0
    %2255 = vmatpush.msra.mxu0 0.0
    %2256 = vmatpush.msra.mxu0 0.0
    %2257 = vmatpush.msra.mxu0 0.0
    %2258 = vmatpush.msra.mxu0 0.0
    %2259 = vmatpush.msra.mxu0 0.0
    %2260 = vmatpush.msra.mxu0 0.0
    %2261 = vmatpush.msra.mxu0 0.0
    %v2262 = vand.u32 %v767, 4294901760
    %v2263 = vsub.f32 %v767, %v2262
    %v2264 = vand.u32 %v2263, 4294901760
    %2265 = vmatpush.msra.mxu0 %v2264
    %v2266 = vand.u32 %v763, 4294901760
    %v2267 = vsub.f32 %v763, %v2266
    %v2268 = vand.u32 %v2267, 4294901760
    %2269 = vmatpush.msra.mxu0 %v2268
    %v2270 = vand.u32 %v759, 4294901760
    %v2271 = vsub.f32 %v759, %v2270
    %v2272 = vand.u32 %v2271, 4294901760
    %2273 = vmatpush.msra.mxu0 %v2272
    %v2274 = vand.u32 %v755, 4294901760
    %v2275 = vsub.f32 %v755, %v2274
    %v2276 = vand.u32 %v2275, 4294901760
    %2277 = vmatpush.msra.mxu0 %v2276
    %v2278 = vand.u32 %v1566, 4294901760
    %2279 = vmatmul.f32.gmra.mxu0 %v2278
    %v2280 = vpop.f32.mrf.mxu0
    %v2281 = vadd.f32 %v2248, %v2280
    %2282 = vdwg.mxu0
    %2283 = vmatpush.msra.mxu0 0.0
    %2284 = vmatpush.msra.mxu0 0.0
    %2285 = vmatpush.msra.mxu0 0.0
    %2286 = vmatpush.msra.mxu0 0.0
    %2287 = vmatpush.msra.mxu0 0.0
    %2288 = vmatpush.msra.mxu0 0.0
    %2289 = vmatpush.msra.mxu0 0.0
    %2290 = vmatpush.msra.mxu0 0.0
    %2291 = vmatpush.msra.mxu0 0.0
    %2292 = vmatpush.msra.mxu0 0.0
    %2293 = vmatpush.msra.mxu0 0.0
    %2294 = vmatpush.msra.mxu0 0.0
    %v2295 = vand.u32 %v767, 4294901760
    %2296 = vmatpush.msra.mxu0 %v2295
    %v2297 = vand.u32 %v763, 4294901760
    %2298 = vmatpush.msra.mxu0 %v2297
    %v2299 = vand.u32 %v759, 4294901760
    %2300 = vmatpush.msra.mxu0 %v2299
    %v2301 = vand.u32 %v755, 4294901760
    %2302 = vmatpush.msra.mxu0 %v2301
    %v2303 = vand.u32 %v1566, 4294901760
    %2304 = vmatmul.f32.gmra.mxu0 %v2303
    %v2305 = vpop.f32.mrf.mxu0
    %v2306 = vadd.f32 %v2281, %v2305
    %2307 = vdwg.mxu0
    %v2308 = vperm.slane %v1751, 0
    %v2309 = vperm.slane %v1936, 0
    %v2310 = vperm.slane %v2121, 0
    %v2311 = vperm.slane %v2306, 0
    %v2312 = vmul.f32 %v577, %v2308
    %v2313 = vmul.f32 %v578, %v2309
    %v2314 = vmul.f32 %v579, %v2310
    %v2315 = vmul.f32 %v580, %v2311
    %v2316 = vmul.f32 %v581, %v2308
    %v2317 = vmul.f32 %v582, %v2309
    %v2318 = vmul.f32 %v583, %v2310
    %v2319 = vmul.f32 %v584, %v2311
    %v2320 = vmul.f32 %v585, %v2308
    %v2321 = vmul.f32 %v586, %v2309
    %v2322 = vmul.f32 %v587, %v2310
    %v2323 = vmul.f32 %v588, %v2311
    %v2324 = vmul.f32 %v589, %v2308
    %v2325 = vmul.f32 %v590, %v2309
    %v2326 = vmul.f32 %v591, %v2310
    %v2327 = vmul.f32 %v592, %v2311
    %v2328 = vperm.slane %v1751, 1
    %v2329 = vperm.slane %v1936, 1
    %v2330 = vperm.slane %v2121, 1
    %v2331 = vperm.slane %v2306, 1
    %v2332 = vadd.f32 %v2312, %v2328
    %v2333 = vadd.f32 %v2313, %v2329
    %v2334 = vadd.f32 %v2314, %v2330
    %v2335 = vadd.f32 %v2315, %v2331
    %v2336 = vadd.f32 %v2316, %v2328
    %v2337 = vadd.f32 %v2317, %v2329
    %v2338 = vadd.f32 %v2318, %v2330
    %v2339 = vadd.f32 %v2319, %v2331
    %v2340 = vadd.f32 %v2320, %v2328
    %v2341 = vadd.f32 %v2321, %v2329
    %v2342 = vadd.f32 %v2322, %v2330
    %v2343 = vadd.f32 %v2323, %v2331
    %v2344 = vadd.f32 %v2324, %v2328
    %v2345 = vadd.f32 %v2325, %v2329
    %v2346 = vadd.f32 %v2326, %v2330
    %v2347 = vadd.f32 %v2327, %v2331
    %v2348 = vmax.f32 %v2332, 0.0
    %v2349 = vmax.f32 %v2333, 0.0
    %v2350 = vmax.f32 %v2334, 0.0
    %v2351 = vmax.f32 %v2335, 0.0
    %v2352 = vmax.f32 %v2336, 0.0
    %v2353 = vmax.f32 %v2337, 0.0
    %v2354 = vmax.f32 %v2338, 0.0
    %v2355 = vmax.f32 %v2339, 0.0
    %v2356 = vmax.f32 %v2340, 0.0
    %v2357 = vmax.f32 %v2341, 0.0
    %v2358 = vmax.f32 %v2342, 0.0
    %v2359 = vmax.f32 %v2343, 0.0
    %v2360 = vmax.f32 %v2344, 0.0
    %v2361 = vmax.f32 %v2345, 0.0
    %v2362 = vmax.f32 %v2346, 0.0
    %v2363 = vmax.f32 %v2347, 0.0
    %v2364 = vld [vmem:[%s11] sm:$0xff]
    %v2365 = vld [vmem:[%s11 + $0x8] sm:$0xff]
    %vm2366 = vcmask 244736
    %v2368 = vsel %vm2366, %v2364, 0
    %v2371 = vsel %vm2366, %v2365, 0
    %v2374 = vsel %vm593, %v2360, 0
    %v2377 = vsel %vm593, %v2361, 0
    %v2380 = vsel %vm593, %v2362, 0
    %v2383 = vsel %vm593, %v2363, 0
    %2385 = vmatpush.msra.mxu0 0.0
    %2386 = vmatpush.msra.mxu0 0.0
    %2387 = vmatpush.msra.mxu0 0.0
    %2388 = vmatpush.msra.mxu0 0.0
    %2389 = vmatpush.msra.mxu0 0.0
    %2390 = vmatpush.msra.mxu0 0.0
    %2391 = vmatpush.msra.mxu0 0.0
    %2392 = vmatpush.msra.mxu0 0.0
    %2393 = vmatpush.msra.mxu0 0.0
    %2394 = vmatpush.msra.mxu0 0.0
    %2395 = vmatpush.msra.mxu0 0.0
    %2396 = vmatpush.msra.mxu0 0.0
    %2397 = vmatpush.msra.mxu0 %v2374
    %2398 = vmatpush.msra.mxu0 %v2356
    %2399 = vmatpush.msra.mxu0 %v2352
    %2400 = vmatpush.msra.mxu0 %v2348
    %2401 = vmatmul.f32.gmra.mxu0 %v2368
    %v2402 = vpop.f32.mrf.mxu0
    %v2403 = vadd.f32 0.0, %v2402
    %2404 = vmatmul.f32.gmra.mxu0 %v2371
    %v2405 = vpop.f32.mrf.mxu0
    %v2406 = vadd.f32 0.0, %v2405
    %2407 = vdwg.mxu0
    %2408 = vmatpush.msra.mxu0 0.0
    %2409 = vmatpush.msra.mxu0 0.0
    %2410 = vmatpush.msra.mxu0 0.0
    %2411 = vmatpush.msra.mxu0 0.0
    %2412 = vmatpush.msra.mxu0 0.0
    %2413 = vmatpush.msra.mxu0 0.0
    %2414 = vmatpush.msra.mxu0 0.0
    %2415 = vmatpush.msra.mxu0 0.0
    %2416 = vmatpush.msra.mxu0 0.0
    %2417 = vmatpush.msra.mxu0 0.0
    %2418 = vmatpush.msra.mxu0 0.0
    %2419 = vmatpush.msra.mxu0 0.0
    %2420 = vmatpush.msra.mxu0 %v2377
    %2421 = vmatpush.msra.mxu0 %v2357
    %2422 = vmatpush.msra.mxu0 %v2353
    %2423 = vmatpush.msra.mxu0 %v2349
    %2424 = vmatmul.f32.gmra.mxu0 %v2368
    %v2425 = vpop.f32.mrf.mxu0
    %v2426 = vadd.f32 0.0, %v2425
    %2427 = vmatmul.f32.gmra.mxu0 %v2371
    %v2428 = vpop.f32.mrf.mxu0
    %v2429 = vadd.f32 0.0, %v2428
    %2430 = vdwg.mxu0
    %2431 = vmatpush.msra.mxu0 0.0
    %2432 = vmatpush.msra.mxu0 0.0
    %2433 = vmatpush.msra.mxu0 0.0
    %2434 = vmatpush.msra.mxu0 0.0
    %2435 = vmatpush.msra.mxu0 0.0
    %2436 = vmatpush.msra.mxu0 0.0
    %2437 = vmatpush.msra.mxu0 0.0
    %2438 = vmatpush.msra.mxu0 0.0
    %2439 = vmatpush.msra.mxu0 0.0
    %2440 = vmatpush.msra.mxu0 0.0
    %2441 = vmatpush.msra.mxu0 0.0
    %2442 = vmatpush.msra.mxu0 0.0
    %2443 = vmatpush.msra.mxu0 %v2380
    %2444 = vmatpush.msra.mxu0 %v2358
    %2445 = vmatpush.msra.mxu0 %v2354
    %2446 = vmatpush.msra.mxu0 %v2350
    %2447 = vmatmul.f32.gmra.mxu0 %v2368
    %v2448 = vpop.f32.mrf.mxu0
    %v2449 = vadd.f32 0.0, %v2448
    %2450 = vmatmul.f32.gmra.mxu0 %v2371
    %v2451 = vpop.f32.mrf.mxu0
    %v2452 = vadd.f32 0.0, %v2451
    %2453 = vdwg.mxu0
    %2454 = vmatpush.msra.mxu0 0.0
    %2455 = vmatpush.msra.mxu0 0.0
    %2456 = vmatpush.msra.mxu0 0.0
    %2457 = vmatpush.msra.mxu0 0.0
    %2458 = vmatpush.msra.mxu0 0.0
    %2459 = vmatpush.msra.mxu0 0.0
    %2460 = vmatpush.msra.mxu0 0.0
    %2461 = vmatpush.msra.mxu0 0.0
    %2462 = vmatpush.msra.mxu0 0.0
    %2463 = vmatpush.msra.mxu0 0.0
    %2464 = vmatpush.msra.mxu0 0.0
    %2465 = vmatpush.msra.mxu0 0.0
    %2466 = vmatpush.msra.mxu0 %v2383
    %2467 = vmatpush.msra.mxu0 %v2359
    %2468 = vmatpush.msra.mxu0 %v2355
    %2469 = vmatpush.msra.mxu0 %v2351
    %2470 = vmatmul.f32.gmra.mxu0 %v2368
    %v2471 = vpop.f32.mrf.mxu0
    %v2472 = vadd.f32 0.0, %v2471
    %2473 = vmatmul.f32.gmra.mxu0 %v2371
    %v2474 = vpop.f32.mrf.mxu0
    %v2475 = vadd.f32 0.0, %v2474
    %2476 = vdwg.mxu0
    %2477 = vst [vmem:[#allocation2] sm:$0xff] %v2403
    %2478 = vst [vmem:[#allocation2 + $0x8] sm:$0xff] %v2426
    %2479 = vst [vmem:[#allocation2 + $0x10] sm:$0xff] %v2449
    %2480 = vst.msk [vmem:[#allocation2 + $0x18] sm:$0xff] %vm618, %v2472
    %2481 = vst [vmem:[#allocation2 + $0x20] sm:$0xff] %v2406
    %2482 = vst [vmem:[#allocation2 + $0x28] sm:$0xff] %v2429
    %2483 = vst [vmem:[#allocation2 + $0x30] sm:$0xff] %v2452
    %2484 = vst.msk [vmem:[#allocation2 + $0x38] sm:$0xff] %vm618, %v2475
    %v2485 = vld [vmem:[%s6] sm:$0x3]
    %v2486 = vld [vmem:[#allocation2] sm:$0xff]
    %v2487 = vld [vmem:[#allocation2 + $0x8] sm:$0xff]
    %v2488 = vld [vmem:[#allocation2 + $0x10] sm:$0xff]
    %v2489 = vld [vmem:[#allocation2 + $0x18] sm:$0xff]
    %v2490 = vld [vmem:[#allocation2 + $0x20] sm:$0x3f]
    %v2491 = vld [vmem:[#allocation2 + $0x28] sm:$0x3f]
    %v2492 = vld [vmem:[#allocation2 + $0x30] sm:$0x3f]
    %v2493 = vld [vmem:[#allocation2 + $0x38] sm:$0x3f]
    %v2494 = vpack.c.bf16 %v2490, %v2486
    %v2495 = vpack.c.bf16 %v2491, %v2487
    %v2496 = vpack.c.bf16 %v2492, %v2488
    %v2497 = vpack.c.bf16 %v2493, %v2489
    %v2498 = vld [vmem:[%s2] sm:$0xff]
    %v2499 = vld [vmem:[%s2 + $0x8] sm:$0xff]
    %v2500 = vld [vmem:[%s2 + $0x10] sm:$0xff]
    %v2501 = vld [vmem:[%s2 + $0x18] sm:$0xff]
    %v2502 = vld [vmem:[%s2 + $0x20] sm:$0xff]
    %v2503 = vld [vmem:[%s2 + $0x28] sm:$0xff]
    %v2504 = vld [vmem:[%s2 + $0x30] sm:$0xff]
    %v2505 = vld [vmem:[%s2 + $0x38] sm:$0xff]
    %v2506 = vld [vmem:[%s2 + $0x40] sm:$0xff]
    %v2507 = vld [vmem:[%s2 + $0x48] sm:$0xff]
    %v2508 = vld [vmem:[%s2 + $0x50] sm:$0xff]
    %v2509 = vld [vmem:[%s2 + $0x58] sm:$0xff]
    %v2510 = vld [vmem:[%s2 + $0x60] sm:$0xff]
    %v2511 = vld [vmem:[%s2 + $0x68] sm:$0xff]
    %v2512 = vld [vmem:[%s2 + $0x70] sm:$0xff]
    %v2513 = vld [vmem:[%s2 + $0x78] sm:$0xff]
    %v2514 = vld [vmem:[%s2 + $0x80] sm:$0xff]
    %v2515 = vld [vmem:[%s2 + $0x88] sm:$0xff]
    %v2516 = vld [vmem:[%s2 + $0x90] sm:$0xff]
    %v2517 = vld [vmem:[%s2 + $0x98] sm:$0xff]
    %v2518 = vld [vmem:[%s2 + $0xa0] sm:$0xff]
    %v2519 = vld [vmem:[%s2 + $0xa8] sm:$0xff]
    %v2520 = vld [vmem:[%s2 + $0xb0] sm:$0xff]
    %v2521 = vld [vmem:[%s2 + $0xb8] sm:$0xff]
    %v2522 = vld [vmem:[%s2 + $0xc0] sm:$0xff]
    %v2523 = vld [vmem:[%s2 + $0xc8] sm:$0xff]
    %v2524 = vld [vmem:[%s2 + $0xd0] sm:$0xff]
    %v2525 = vld [vmem:[%s2 + $0xd8] sm:$0xff]
    %v2526 = vld [vmem:[%s2 + $0xe0] sm:$0xff]
    %v2527 = vld [vmem:[%s2 + $0xe8] sm:$0xff]
    %v2528 = vld [vmem:[%s2 + $0xf0] sm:$0xff]
    %v2529 = vld [vmem:[%s2 + $0xf8] sm:$0xff]
    %v2530 = vld [vmem:[%s2 + $0x100] sm:$0xff]
    %v2531 = vld [vmem:[%s2 + $0x108] sm:$0xff]
    %v2532 = vld [vmem:[%s2 + $0x110] sm:$0xff]
    %v2533 = vld [vmem:[%s2 + $0x118] sm:$0xff]
    %v2534 = vld [vmem:[%s2 + $0x120] sm:$0xff]
    %v2535 = vld [vmem:[%s2 + $0x128] sm:$0xff]
    %v2536 = vld [vmem:[%s2 + $0x130] sm:$0xff]
    %v2537 = vld [vmem:[%s2 + $0x138] sm:$0xff]
    %v2538 = vld [vmem:[%s2 + $0x140] sm:$0xff]
    %v2539 = vld [vmem:[%s2 + $0x148] sm:$0xff]
    %v2540 = vld [vmem:[%s2 + $0x150] sm:$0xff]
    %v2541 = vld [vmem:[%s2 + $0x158] sm:$0xff]
    %v2542 = vld [vmem:[%s2 + $0x160] sm:$0xff]
    %v2543 = vld [vmem:[%s2 + $0x168] sm:$0xff]
    %v2544 = vld [vmem:[%s2 + $0x170] sm:$0xff]
    %v2545 = vld [vmem:[%s2 + $0x178] sm:$0xff]
    %v2546 = vld [vmem:[%s2 + $0x180] sm:$0xff]
    %v2547 = vld [vmem:[%s2 + $0x188] sm:$0xff]
    %v2548 = vld [vmem:[%s2 + $0x190] sm:$0xff]
    %v2549 = vld [vmem:[%s2 + $0x198] sm:$0xff]
    %v2550 = vld [vmem:[%s2 + $0x1a0] sm:$0xff]
    %v2551 = vld [vmem:[%s2 + $0x1a8] sm:$0xff]
    %v2552 = vld [vmem:[%s2 + $0x1b0] sm:$0xff]
    %v2553 = vld [vmem:[%s2 + $0x1b8] sm:$0xff]
    %v2610 = vunpack.c.l.b16 %v2498
    %v2611 = vunpack.c.h.b16 %v2498
    %v2612 = vunpack.c.l.b16 %v2499
    %v2613 = vunpack.c.h.b16 %v2499
    %v2614 = vunpack.c.l.b16 %v2500
    %v2615 = vunpack.c.h.b16 %v2500
    %v2616 = vunpack.c.l.b16 %v2501
    %v2617 = vunpack.c.h.b16 %v2501
    %v2618 = vunpack.c.l.b16 %v2502
    %v2619 = vunpack.c.h.b16 %v2502
    %v2620 = vunpack.c.l.b16 %v2503
    %v2621 = vunpack.c.h.b16 %v2503
    %v2622 = vunpack.c.l.b16 %v2504
    %v2623 = vunpack.c.h.b16 %v2504
    %v2624 = vunpack.c.l.b16 %v2505
    %v2625 = vunpack.c.h.b16 %v2505
    %v2626 = vunpack.c.l.b16 %v2506
    %v2627 = vunpack.c.h.b16 %v2506
    %v2628 = vunpack.c.l.b16 %v2507
    %v2629 = vunpack.c.h.b16 %v2507
    %v2630 = vunpack.c.l.b16 %v2508
    %v2631 = vunpack.c.h.b16 %v2508
    %v2632 = vunpack.c.l.b16 %v2509
    %v2633 = vunpack.c.h.b16 %v2509
    %v2634 = vunpack.c.l.b16 %v2510
    %v2635 = vunpack.c.h.b16 %v2510
    %v2636 = vunpack.c.l.b16 %v2511
    %v2637 = vunpack.c.h.b16 %v2511
    %v2638 = vunpack.c.l.b16 %v2512
    %v2639 = vunpack.c.h.b16 %v2512
    %v2640 = vunpack.c.l.b16 %v2513
    %v2641 = vunpack.c.h.b16 %v2513
    %v2642 = vunpack.c.l.b16 %v2514
    %v2643 = vunpack.c.h.b16 %v2514
    %v2644 = vunpack.c.l.b16 %v2515
    %v2645 = vunpack.c.h.b16 %v2515
    %v2646 = vunpack.c.l.b16 %v2516
    %v2647 = vunpack.c.h.b16 %v2516
    %v2648 = vunpack.c.l.b16 %v2517
    %v2649 = vunpack.c.h.b16 %v2517
    %v2650 = vunpack.c.l.b16 %v2518
    %v2651 = vunpack.c.h.b16 %v2518
    %v2652 = vunpack.c.l.b16 %v2519
    %v2653 = vunpack.c.h.b16 %v2519
    %v2654 = vunpack.c.l.b16 %v2520
    %v2655 = vunpack.c.h.b16 %v2520
    %v2656 = vunpack.c.l.b16 %v2521
    %v2657 = vunpack.c.h.b16 %v2521
    %v2658 = vunpack.c.l.b16 %v2522
    %v2659 = vunpack.c.h.b16 %v2522
    %v2660 = vunpack.c.l.b16 %v2523
    %v2661 = vunpack.c.h.b16 %v2523
    %v2662 = vunpack.c.l.b16 %v2524
    %v2663 = vunpack.c.h.b16 %v2524
    %v2664 = vunpack.c.l.b16 %v2525
    %v2665 = vunpack.c.h.b16 %v2525
    %v2666 = vunpack.c.l.b16 %v2526
    %v2667 = vunpack.c.h.b16 %v2526
    %v2668 = vunpack.c.l.b16 %v2527
    %v2669 = vunpack.c.h.b16 %v2527
    %v2670 = vunpack.c.l.b16 %v2528
    %v2671 = vunpack.c.h.b16 %v2528
    %v2672 = vunpack.c.l.b16 %v2529
    %v2673 = vunpack.c.h.b16 %v2529
    %v2674 = vunpack.c.l.b16 %v2530
    %v2675 = vunpack.c.h.b16 %v2530
    %v2676 = vunpack.c.l.b16 %v2531
    %v2677 = vunpack.c.h.b16 %v2531
    %v2678 = vunpack.c.l.b16 %v2532
    %v2679 = vunpack.c.h.b16 %v2532
    %v2680 = vunpack.c.l.b16 %v2533
    %v2681 = vunpack.c.h.b16 %v2533
    %v2682 = vunpack.c.l.b16 %v2534
    %v2683 = vunpack.c.h.b16 %v2534
    %v2684 = vunpack.c.l.b16 %v2535
    %v2685 = vunpack.c.h.b16 %v2535
    %v2686 = vunpack.c.l.b16 %v2536
    %v2687 = vunpack.c.h.b16 %v2536
    %v2688 = vunpack.c.l.b16 %v2537
    %v2689 = vunpack.c.h.b16 %v2537
    %v2690 = vunpack.c.l.b16 %v2538
    %v2691 = vunpack.c.h.b16 %v2538
    %v2692 = vunpack.c.l.b16 %v2539
    %v2693 = vunpack.c.h.b16 %v2539
    %v2694 = vunpack.c.l.b16 %v2540
    %v2695 = vunpack.c.h.b16 %v2540
    %v2696 = vunpack.c.l.b16 %v2541
    %v2697 = vunpack.c.h.b16 %v2541
    %v2698 = vunpack.c.l.b16 %v2542
    %v2699 = vunpack.c.h.b16 %v2542
    %v2700 = vunpack.c.l.b16 %v2543
    %v2701 = vunpack.c.h.b16 %v2543
    %v2702 = vunpack.c.l.b16 %v2544
    %v2703 = vunpack.c.h.b16 %v2544
    %v2704 = vunpack.c.l.b16 %v2545
    %v2705 = vunpack.c.h.b16 %v2545
    %v2706 = vunpack.c.l.b16 %v2546
    %v2707 = vunpack.c.h.b16 %v2546
    %v2708 = vunpack.c.l.b16 %v2547
    %v2709 = vunpack.c.h.b16 %v2547
    %v2710 = vunpack.c.l.b16 %v2548
    %v2711 = vunpack.c.h.b16 %v2548
    %v2712 = vunpack.c.l.b16 %v2549
    %v2713 = vunpack.c.h.b16 %v2549
    %v2714 = vunpack.c.l.b16 %v2550
    %v2715 = vunpack.c.h.b16 %v2550
    %v2716 = vunpack.c.l.b16 %v2551
    %v2717 = vunpack.c.h.b16 %v2551
    %v2718 = vunpack.c.l.b16 %v2552
    %v2719 = vunpack.c.h.b16 %v2552
    %v2720 = vunpack.c.l.b16 %v2553
    %v2721 = vunpack.c.h.b16 %v2553
    %v2722 = vpack.c.b16 %v2612, %v2610
    %v2723 = vpack.c.b16 %v2613, %v2611
    %v2724 = vpack.c.b16 %v2616, %v2614
    %v2725 = vpack.c.b16 %v2617, %v2615
    %v2726 = vpack.c.b16 %v2620, %v2618
    %v2727 = vpack.c.b16 %v2621, %v2619
    %v2728 = vpack.c.b16 %v2624, %v2622
    %v2729 = vpack.c.b16 %v2625, %v2623
    %v2730 = vpack.c.b16 %v2628, %v2626
    %v2731 = vpack.c.b16 %v2629, %v2627
    %v2732 = vpack.c.b16 %v2632, %v2630
    %v2733 = vpack.c.b16 %v2633, %v2631
    %v2734 = vpack.c.b16 %v2636, %v2634
    %v2735 = vpack.c.b16 %v2637, %v2635
    %v2736 = vpack.c.b16 %v2640, %v2638
    %v2737 = vpack.c.b16 %v2641, %v2639
    %v2738 = vpack.c.b16 %v2644, %v2642
    %v2739 = vpack.c.b16 %v2645, %v2643
    %v2740 = vpack.c.b16 %v2648, %v2646
    %v2741 = vpack.c.b16 %v2649, %v2647
    %v2742 = vpack.c.b16 %v2652, %v2650
    %v2743 = vpack.c.b16 %v2653, %v2651
    %v2744 = vpack.c.b16 %v2656, %v2654
    %v2745 = vpack.c.b16 %v2657, %v2655
    %v2746 = vpack.c.b16 %v2660, %v2658
    %v2747 = vpack.c.b16 %v2661, %v2659
    %v2748 = vpack.c.b16 %v2664, %v2662
    %v2749 = vpack.c.b16 %v2665, %v2663
    %v2750 = vpack.c.b16 %v2668, %v2666
    %v2751 = vpack.c.b16 %v2669, %v2667
    %v2752 = vpack.c.b16 %v2672, %v2670
    %v2753 = vpack.c.b16 %v2673, %v2671
    %v2754 = vpack.c.b16 %v2676, %v2674
    %v2755 = vpack.c.b16 %v2677, %v2675
    %v2756 = vpack.c.b16 %v2680, %v2678
    %v2757 = vpack.c.b16 %v2681, %v2679
    %v2758 = vpack.c.b16 %v2684, %v2682
    %v2759 = vpack.c.b16 %v2685, %v2683
    %v2760 = vpack.c.b16 %v2688, %v2686
    %v2761 = vpack.c.b16 %v2689, %v2687
    %v2762 = vpack.c.b16 %v2692, %v2690
    %v2763 = vpack.c.b16 %v2693, %v2691
    %v2764 = vpack.c.b16 %v2696, %v2694
    %v2765 = vpack.c.b16 %v2697, %v2695
    %v2766 = vpack.c.b16 %v2700, %v2698
    %v2767 = vpack.c.b16 %v2701, %v2699
    %v2768 = vpack.c.b16 %v2704, %v2702
    %v2769 = vpack.c.b16 %v2705, %v2703
    %v2770 = vpack.c.b16 %v2708, %v2706
    %v2771 = vpack.c.b16 %v2709, %v2707
    %v2772 = vpack.c.b16 %v2712, %v2710
    %v2773 = vpack.c.b16 %v2713, %v2711
    %v2774 = vpack.c.b16 %v2716, %v2714
    %v2775 = vpack.c.b16 %v2717, %v2715
    %v2776 = vpack.c.b16 %v2720, %v2718
    %v2777 = vpack.c.b16 %v2721, %v2719
    %v2835 = vsel %vm618, %v2497, 0
    %2837 = vmatpush.bf16.msra.mxu0 %v2736
    %2838 = vmatpush.bf16.msra.mxu0 %v2734
    %2839 = vmatpush.bf16.msra.mxu0 %v2732
    %2840 = vmatpush.bf16.msra.mxu0 %v2730
    %2841 = vmatpush.bf16.msra.mxu0 %v2728
    %2842 = vmatpush.bf16.msra.mxu0 %v2726
    %2843 = vmatpush.bf16.msra.mxu0 %v2724
    %2844 = vmatpush.bf16.msra.mxu0 %v2722
    %2845 = vmatmul.bf16.gmra.mxu0 %v2494
    %v2846 = vpop.f32.mrf.mxu0
    %v2847 = vadd.f32 0.0, %v2846
    %v2848 = vpop.f32.mrf.mxu0
    %v2849 = vadd.f32 0.0, %v2848
    %2850 = vdwg.mxu0
    %2851 = vmatpush.bf16.msra.mxu0 %v2752
    %2852 = vmatpush.bf16.msra.mxu0 %v2750
    %2853 = vmatpush.bf16.msra.mxu0 %v2748
    %2854 = vmatpush.bf16.msra.mxu0 %v2746
    %2855 = vmatpush.bf16.msra.mxu0 %v2744
    %2856 = vmatpush.bf16.msra.mxu0 %v2742
    %2857 = vmatpush.bf16.msra.mxu0 %v2740
    %2858 = vmatpush.bf16.msra.mxu0 %v2738
    %2859 = vmatmul.bf16.gmra.mxu0 %v2495
    %v2860 = vpop.f32.mrf.mxu0
    %v2861 = vadd.f32 %v2847, %v2860
    %v2862 = vpop.f32.mrf.mxu0
    %v2863 = vadd.f32 %v2849, %v2862
    %2864 = vdwg.mxu0
    %2865 = vmatpush.bf16.msra.mxu0 %v2768
    %2866 = vmatpush.bf16.msra.mxu0 %v2766
    %2867 = vmatpush.bf16.msra.mxu0 %v2764
    %2868 = vmatpush.bf16.msra.mxu0 %v2762
    %2869 = vmatpush.bf16.msra.mxu0 %v2760
    %2870 = vmatpush.bf16.msra.mxu0 %v2758
    %2871 = vmatpush.bf16.msra.mxu0 %v2756
    %2872 = vmatpush.bf16.msra.mxu0 %v2754
    %2873 = vmatmul.bf16.gmra.mxu0 %v2496
    %v2874 = vpop.f32.mrf.mxu0
    %v2875 = vadd.f32 %v2861, %v2874
    %v2876 = vpop.f32.mrf.mxu0
    %v2877 = vadd.f32 %v2863, %v2876
    %2878 = vdwg.mxu0
    %2879 = vmatpush.bf16.msra.mxu0 0
    %2880 = vmatpush.bf16.msra.mxu0 0
    %2881 = vmatpush.bf16.msra.mxu0 0
    %2882 = vmatpush.bf16.msra.mxu0 0
    %2883 = vmatpush.bf16.msra.mxu0 %v2776
    %2884 = vmatpush.bf16.msra.mxu0 %v2774
    %2885 = vmatpush.bf16.msra.mxu0 %v2772
    %2886 = vmatpush.bf16.msra.mxu0 %v2770
    %2887 = vmatmul.bf16.gmra.mxu0 %v2835
    %v2888 = vpop.f32.mrf.mxu0
    %v2889 = vadd.f32 %v2875, %v2888
    %v2890 = vpop.f32.mrf.mxu0
    %v2891 = vadd.f32 %v2877, %v2890
    %2892 = vdwg.mxu0
    %2893 = vmatpush.bf16.msra.mxu0 %v2737
    %2894 = vmatpush.bf16.msra.mxu0 %v2735
    %2895 = vmatpush.bf16.msra.mxu0 %v2733
    %2896 = vmatpush.bf16.msra.mxu0 %v2731
    %2897 = vmatpush.bf16.msra.mxu0 %v2729
    %2898 = vmatpush.bf16.msra.mxu0 %v2727
    %2899 = vmatpush.bf16.msra.mxu0 %v2725
    %2900 = vmatpush.bf16.msra.mxu0 %v2723
    %2901 = vmatmul.bf16.gmra.mxu0 %v2494
    %v2902 = vpop.f32.mrf.mxu0
    %v2903 = vadd.f32 0.0, %v2902
    %v2904 = vpop.f32.mrf.mxu0
    %v2905 = vadd.f32 0.0, %v2904
    %2906 = vdwg.mxu0
    %2907 = vmatpush.bf16.msra.mxu0 %v2753
    %2908 = vmatpush.bf16.msra.mxu0 %v2751
    %2909 = vmatpush.bf16.msra.mxu0 %v2749
    %2910 = vmatpush.bf16.msra.mxu0 %v2747
    %2911 = vmatpush.bf16.msra.mxu0 %v2745
    %2912 = vmatpush.bf16.msra.mxu0 %v2743
    %2913 = vmatpush.bf16.msra.mxu0 %v2741
    %2914 = vmatpush.bf16.msra.mxu0 %v2739
    %2915 = vmatmul.bf16.gmra.mxu0 %v2495
    %v2916 = vpop.f32.mrf.mxu0
    %v2917 = vadd.f32 %v2903, %v2916
    %v2918 = vpop.f32.mrf.mxu0
    %v2919 = vadd.f32 %v2905, %v2918
    %2920 = vdwg.mxu0
    %2921 = vmatpush.bf16.msra.mxu0 %v2769
    %2922 = vmatpush.bf16.msra.mxu0 %v2767
    %2923 = vmatpush.bf16.msra.mxu0 %v2765
    %2924 = vmatpush.bf16.msra.mxu0 %v2763
    %2925 = vmatpush.bf16.msra.mxu0 %v2761
    %2926 = vmatpush.bf16.msra.mxu0 %v2759
    %2927 = vmatpush.bf16.msra.mxu0 %v2757
    %2928 = vmatpush.bf16.msra.mxu0 %v2755
    %2929 = vmatmul.bf16.gmra.mxu0 %v2496
    %v2930 = vpop.f32.mrf.mxu0
    %v2931 = vadd.f32 %v2917, %v2930
    %v2932 = vpop.f32.mrf.mxu0
    %v2933 = vadd.f32 %v2919, %v2932
    %2934 = vdwg.mxu0
    %2935 = vmatpush.bf16.msra.mxu0 0
    %2936 = vmatpush.bf16.msra.mxu0 0
    %2937 = vmatpush.bf16.msra.mxu0 0
    %2938 = vmatpush.bf16.msra.mxu0 0
    %2939 = vmatpush.bf16.msra.mxu0 %v2777
    %2940 = vmatpush.bf16.msra.mxu0 %v2775
    %2941 = vmatpush.bf16.msra.mxu0 %v2773
    %2942 = vmatpush.bf16.msra.mxu0 %v2771
    %2943 = vmatmul.bf16.gmra.mxu0 %v2835
    %v2944 = vpop.f32.mrf.mxu0
    %v2945 = vadd.f32 %v2931, %v2944
    %v2946 = vpop.f32.mrf.mxu0
    %v2947 = vadd.f32 %v2933, %v2946
    %2948 = vdwg.mxu0
    %v2950 = vperm.slane %v2485, 0
    %v2951 = vperm.slane %v2485, 1
    %v2954 = vadd.f32 %v2950, %v2889
    %v2955 = vadd.f32 %v2951, %v2945
    %v2956 = vadd.f32 %v2950, %v2891
    %v2957 = vadd.f32 %v2951, %v2947
    %v2958 = vld [vmem:[#allocation2] sm:$0xfe]
    %v2959 = vld [vmem:[#allocation2 + $0x8] sm:$0xfe]
    %v2960 = vld [vmem:[#allocation2 + $0x10] sm:$0xfe]
    %v2961 = vld [vmem:[#allocation2 + $0x18] sm:$0xfe]
    %v2962 = vld [vmem:[#allocation2 + $0x20] sm:$0x7f]
    %v2963 = vld [vmem:[#allocation2 + $0x28] sm:$0x7f]
    %v2964 = vld [vmem:[#allocation2 + $0x30] sm:$0x7f]
    %v2965 = vld [vmem:[#allocation2 + $0x38] sm:$0x7f]
    %v2966 = vpack.c.bf16 %v2962, %v2958
    %v2967 = vpack.c.bf16 %v2963, %v2959
    %v2968 = vpack.c.bf16 %v2964, %v2960
    %v2969 = vpack.c.bf16 %v2965, %v2961
    %s2970 = scalar_lea.vmem %s2, 448
    %v2971 = vld [vmem:[%s2970] sm:$0xff]
    %v2972 = vld [vmem:[%s2970 + $0x8] sm:$0xff]
    %v2973 = vld [vmem:[%s2970 + $0x10] sm:$0xff]
    %v2974 = vld [vmem:[%s2970 + $0x18] sm:$0xff]
    %v2975 = vld [vmem:[%s2970 + $0x20] sm:$0xff]
    %v2976 = vld [vmem:[%s2970 + $0x28] sm:$0xff]
    %v2977 = vld [vmem:[%s2970 + $0x30] sm:$0xff]
    %v2978 = vld [vmem:[%s2970 + $0x38] sm:$0xff]
    %v2979 = vld [vmem:[%s2970 + $0x40] sm:$0xff]
    %v2980 = vld [vmem:[%s2970 + $0x48] sm:$0xff]
    %v2981 = vld [vmem:[%s2970 + $0x50] sm:$0xff]
    %v2982 = vld [vmem:[%s2970 + $0x58] sm:$0xff]
    %v2983 = vld [vmem:[%s2970 + $0x60] sm:$0xff]
    %v2984 = vld [vmem:[%s2970 + $0x68] sm:$0xff]
    %v2985 = vld [vmem:[%s2970 + $0x70] sm:$0xff]
    %v2986 = vld [vmem:[%s2970 + $0x78] sm:$0xff]
    %v2987 = vld [vmem:[%s2970 + $0x80] sm:$0xff]
    %v2988 = vld [vmem:[%s2970 + $0x88] sm:$0xff]
    %v2989 = vld [vmem:[%s2970 + $0x90] sm:$0xff]
    %v2990 = vld [vmem:[%s2970 + $0x98] sm:$0xff]
    %v2991 = vld [vmem:[%s2970 + $0xa0] sm:$0xff]
    %v2992 = vld [vmem:[%s2970 + $0xa8] sm:$0xff]
    %v2993 = vld [vmem:[%s2970 + $0xb0] sm:$0xff]
    %v2994 = vld [vmem:[%s2970 + $0xb8] sm:$0xff]
    %v2995 = vld [vmem:[%s2970 + $0xc0] sm:$0xff]
    %v2996 = vld [vmem:[%s2970 + $0xc8] sm:$0xff]
    %v2997 = vld [vmem:[%s2970 + $0xd0] sm:$0xff]
    %v2998 = vld [vmem:[%s2970 + $0xd8] sm:$0xff]
    %v2999 = vld [vmem:[%s2970 + $0xe0] sm:$0xff]
    %v3000 = vld [vmem:[%s2970 + $0xe8] sm:$0xff]
    %v3001 = vld [vmem:[%s2970 + $0xf0] sm:$0xff]
    %v3002 = vld [vmem:[%s2970 + $0xf8] sm:$0xff]
    %v3003 = vld [vmem:[%s2970 + $0x100] sm:$0xff]
    %v3004 = vld [vmem:[%s2970 + $0x108] sm:$0xff]
    %v3005 = vld [vmem:[%s2970 + $0x110] sm:$0xff]
    %v3006 = vld [vmem:[%s2970 + $0x118] sm:$0xff]
    %v3007 = vld [vmem:[%s2970 + $0x120] sm:$0xff]
    %v3008 = vld [vmem:[%s2970 + $0x128] sm:$0xff]
    %v3009 = vld [vmem:[%s2970 + $0x130] sm:$0xff]
    %v3010 = vld [vmem:[%s2970 + $0x138] sm:$0xff]
    %v3011 = vld [vmem:[%s2970 + $0x140] sm:$0xff]
    %v3012 = vld [vmem:[%s2970 + $0x148] sm:$0xff]
    %v3013 = vld [vmem:[%s2970 + $0x150] sm:$0xff]
    %v3014 = vld [vmem:[%s2970 + $0x158] sm:$0xff]
    %v3015 = vld [vmem:[%s2970 + $0x160] sm:$0xff]
    %v3016 = vld [vmem:[%s2970 + $0x168] sm:$0xff]
    %v3017 = vld [vmem:[%s2970 + $0x170] sm:$0xff]
    %v3018 = vld [vmem:[%s2970 + $0x178] sm:$0xff]
    %v3019 = vld [vmem:[%s2970 + $0x180] sm:$0xff]
    %v3020 = vld [vmem:[%s2970 + $0x188] sm:$0xff]
    %v3021 = vld [vmem:[%s2970 + $0x190] sm:$0xff]
    %v3022 = vld [vmem:[%s2970 + $0x198] sm:$0xff]
    %v3023 = vld [vmem:[%s2970 + $0x1a0] sm:$0xff]
    %v3024 = vld [vmem:[%s2970 + $0x1a8] sm:$0xff]
    %v3025 = vld [vmem:[%s2970 + $0x1b0] sm:$0xff]
    %v3026 = vld [vmem:[%s2970 + $0x1b8] sm:$0xff]
    %v3028 = vshrl.u32 %v2966, 16
    %v3030 = vshll.u32 %v2966, 16
    %v3032 = vrot.slane %v3030, 1
    %v3033 = vor.u32 %v3028, %v3032
    %v3035 = vshrl.u32 %v2967, 16
    %v3037 = vshll.u32 %v2967, 16
    %v3039 = vrot.slane %v3037, 1
    %v3040 = vor.u32 %v3035, %v3039
    %v3042 = vshrl.u32 %v2968, 16
    %v3044 = vshll.u32 %v2968, 16
    %v3046 = vrot.slane %v3044, 1
    %v3047 = vor.u32 %v3042, %v3046
    %v3049 = vshrl.u32 %v2969, 16
    %v3051 = vshll.u32 %v2969, 16
    %v3053 = vrot.slane %v3051, 1
    %v3054 = vor.u32 %v3049, %v3053
    %v3114 = vunpack.c.l.b16 %v2971
    %v3115 = vunpack.c.h.b16 %v2971
    %v3116 = vunpack.c.l.b16 %v2972
    %v3117 = vunpack.c.h.b16 %v2972
    %v3118 = vunpack.c.l.b16 %v2973
    %v3119 = vunpack.c.h.b16 %v2973
    %v3120 = vunpack.c.l.b16 %v2974
    %v3121 = vunpack.c.h.b16 %v2974
    %v3122 = vunpack.c.l.b16 %v2975
    %v3123 = vunpack.c.h.b16 %v2975
    %v3124 = vunpack.c.l.b16 %v2976
    %v3125 = vunpack.c.h.b16 %v2976
    %v3126 = vunpack.c.l.b16 %v2977
    %v3127 = vunpack.c.h.b16 %v2977
    %v3128 = vunpack.c.l.b16 %v2978
    %v3129 = vunpack.c.h.b16 %v2978
    %v3130 = vunpack.c.l.b16 %v2979
    %v3131 = vunpack.c.h.b16 %v2979
    %v3132 = vunpack.c.l.b16 %v2980
    %v3133 = vunpack.c.h.b16 %v2980
    %v3134 = vunpack.c.l.b16 %v2981
    %v3135 = vunpack.c.h.b16 %v2981
    %v3136 = vunpack.c.l.b16 %v2982
    %v3137 = vunpack.c.h.b16 %v2982
    %v3138 = vunpack.c.l.b16 %v2983
    %v3139 = vunpack.c.h.b16 %v2983
    %v3140 = vunpack.c.l.b16 %v2984
    %v3141 = vunpack.c.h.b16 %v2984
    %v3142 = vunpack.c.l.b16 %v2985
    %v3143 = vunpack.c.h.b16 %v2985
    %v3144 = vunpack.c.l.b16 %v2986
    %v3145 = vunpack.c.h.b16 %v2986
    %v3146 = vunpack.c.l.b16 %v2987
    %v3147 = vunpack.c.h.b16 %v2987
    %v3148 = vunpack.c.l.b16 %v2988
    %v3149 = vunpack.c.h.b16 %v2988
    %v3150 = vunpack.c.l.b16 %v2989
    %v3151 = vunpack.c.h.b16 %v2989
    %v3152 = vunpack.c.l.b16 %v2990
    %v3153 = vunpack.c.h.b16 %v2990
    %v3154 = vunpack.c.l.b16 %v2991
    %v3155 = vunpack.c.h.b16 %v2991
    %v3156 = vunpack.c.l.b16 %v2992
    %v3157 = vunpack.c.h.b16 %v2992
    %v3158 = vunpack.c.l.b16 %v2993
    %v3159 = vunpack.c.h.b16 %v2993
    %v3160 = vunpack.c.l.b16 %v2994
    %v3161 = vunpack.c.h.b16 %v2994
    %v3162 = vunpack.c.l.b16 %v2995
    %v3163 = vunpack.c.h.b16 %v2995
    %v3164 = vunpack.c.l.b16 %v2996
    %v3165 = vunpack.c.h.b16 %v2996
    %v3166 = vunpack.c.l.b16 %v2997
    %v3167 = vunpack.c.h.b16 %v2997
    %v3168 = vunpack.c.l.b16 %v2998
    %v3169 = vunpack.c.h.b16 %v2998
    %v3170 = vunpack.c.l.b16 %v2999
    %v3171 = vunpack.c.h.b16 %v2999
    %v3172 = vunpack.c.l.b16 %v3000
    %v3173 = vunpack.c.h.b16 %v3000
    %v3174 = vunpack.c.l.b16 %v3001
    %v3175 = vunpack.c.h.b16 %v3001
    %v3176 = vunpack.c.l.b16 %v3002
    %v3177 = vunpack.c.h.b16 %v3002
    %v3178 = vunpack.c.l.b16 %v3003
    %v3179 = vunpack.c.h.b16 %v3003
    %v3180 = vunpack.c.l.b16 %v3004
    %v3181 = vunpack.c.h.b16 %v3004
    %v3182 = vunpack.c.l.b16 %v3005
    %v3183 = vunpack.c.h.b16 %v3005
    %v3184 = vunpack.c.l.b16 %v3006
    %v3185 = vunpack.c.h.b16 %v3006
    %v3186 = vunpack.c.l.b16 %v3007
    %v3187 = vunpack.c.h.b16 %v3007
    %v3188 = vunpack.c.l.b16 %v3008
    %v3189 = vunpack.c.h.b16 %v3008
    %v3190 = vunpack.c.l.b16 %v3009
    %v3191 = vunpack.c.h.b16 %v3009
    %v3192 = vunpack.c.l.b16 %v3010
    %v3193 = vunpack.c.h.b16 %v3010
    %v3194 = vunpack.c.l.b16 %v3011
    %v3195 = vunpack.c.h.b16 %v3011
    %v3196 = vunpack.c.l.b16 %v3012
    %v3197 = vunpack.c.h.b16 %v3012
    %v3198 = vunpack.c.l.b16 %v3013
    %v3199 = vunpack.c.h.b16 %v3013
    %v3200 = vunpack.c.l.b16 %v3014
    %v3201 = vunpack.c.h.b16 %v3014
    %v3202 = vunpack.c.l.b16 %v3015
    %v3203 = vunpack.c.h.b16 %v3015
    %v3204 = vunpack.c.l.b16 %v3016
    %v3205 = vunpack.c.h.b16 %v3016
    %v3206 = vunpack.c.l.b16 %v3017
    %v3207 = vunpack.c.h.b16 %v3017
    %v3208 = vunpack.c.l.b16 %v3018
    %v3209 = vunpack.c.h.b16 %v3018
    %v3210 = vunpack.c.l.b16 %v3019
    %v3211 = vunpack.c.h.b16 %v3019
    %v3212 = vunpack.c.l.b16 %v3020
    %v3213 = vunpack.c.h.b16 %v3020
    %v3214 = vunpack.c.l.b16 %v3021
    %v3215 = vunpack.c.h.b16 %v3021
    %v3216 = vunpack.c.l.b16 %v3022
    %v3217 = vunpack.c.h.b16 %v3022
    %v3218 = vunpack.c.l.b16 %v3023
    %v3219 = vunpack.c.h.b16 %v3023
    %v3220 = vunpack.c.l.b16 %v3024
    %v3221 = vunpack.c.h.b16 %v3024
    %v3222 = vunpack.c.l.b16 %v3025
    %v3223 = vunpack.c.h.b16 %v3025
    %v3224 = vunpack.c.l.b16 %v3026
    %v3225 = vunpack.c.h.b16 %v3026
    %v3226 = vpack.c.b16 %v3116, %v3114
    %v3227 = vpack.c.b16 %v3117, %v3115
    %v3228 = vpack.c.b16 %v3120, %v3118
    %v3229 = vpack.c.b16 %v3121, %v3119
    %v3230 = vpack.c.b16 %v3124, %v3122
    %v3231 = vpack.c.b16 %v3125, %v3123
    %v3232 = vpack.c.b16 %v3128, %v3126
    %v3233 = vpack.c.b16 %v3129, %v3127
    %v3234 = vpack.c.b16 %v3132, %v3130
    %v3235 = vpack.c.b16 %v3133, %v3131
    %v3236 = vpack.c.b16 %v3136, %v3134
    %v3237 = vpack.c.b16 %v3137, %v3135
    %v3238 = vpack.c.b16 %v3140, %v3138
    %v3239 = vpack.c.b16 %v3141, %v3139
    %v3240 = vpack.c.b16 %v3144, %v3142
    %v3241 = vpack.c.b16 %v3145, %v3143
    %v3242 = vpack.c.b16 %v3148, %v3146
    %v3243 = vpack.c.b16 %v3149, %v3147
    %v3244 = vpack.c.b16 %v3152, %v3150
    %v3245 = vpack.c.b16 %v3153, %v3151
    %v3246 = vpack.c.b16 %v3156, %v3154
    %v3247 = vpack.c.b16 %v3157, %v3155
    %v3248 = vpack.c.b16 %v3160, %v3158
    %v3249 = vpack.c.b16 %v3161, %v3159
    %v3250 = vpack.c.b16 %v3164, %v3162
    %v3251 = vpack.c.b16 %v3165, %v3163
    %v3252 = vpack.c.b16 %v3168, %v3166
    %v3253 = vpack.c.b16 %v3169, %v3167
    %v3254 = vpack.c.b16 %v3172, %v3170
    %v3255 = vpack.c.b16 %v3173, %v3171
    %v3256 = vpack.c.b16 %v3176, %v3174
    %v3257 = vpack.c.b16 %v3177, %v3175
    %v3258 = vpack.c.b16 %v3180, %v3178
    %v3259 = vpack.c.b16 %v3181, %v3179
    %v3260 = vpack.c.b16 %v3184, %v3182
    %v3261 = vpack.c.b16 %v3185, %v3183
    %v3262 = vpack.c.b16 %v3188, %v3186
    %v3263 = vpack.c.b16 %v3189, %v3187
    %v3264 = vpack.c.b16 %v3192, %v3190
    %v3265 = vpack.c.b16 %v3193, %v3191
    %v3266 = vpack.c.b16 %v3196, %v3194
    %v3267 = vpack.c.b16 %v3197, %v3195
    %v3268 = vpack.c.b16 %v3200, %v3198
    %v3269 = vpack.c.b16 %v3201, %v3199
    %v3270 = vpack.c.b16 %v3204, %v3202
    %v3271 = vpack.c.b16 %v3205, %v3203
    %v3272 = vpack.c.b16 %v3208, %v3206
    %v3273 = vpack.c.b16 %v3209, %v3207
    %v3274 = vpack.c.b16 %v3212, %v3210
    %v3275 = vpack.c.b16 %v3213, %v3211
    %v3276 = vpack.c.b16 %v3216, %v3214
    %v3277 = vpack.c.b16 %v3217, %v3215
    %v3278 = vpack.c.b16 %v3220, %v3218
    %v3279 = vpack.c.b16 %v3221, %v3219
    %v3280 = vpack.c.b16 %v3224, %v3222
    %v3281 = vpack.c.b16 %v3225, %v3223
    %v3339 = vsel %vm618, %v3054, 0
    %3341 = vmatpush.bf16.msra.mxu0 %v3240
    %3342 = vmatpush.bf16.msra.mxu0 %v3238
    %3343 = vmatpush.bf16.msra.mxu0 %v3236
    %3344 = vmatpush.bf16.msra.mxu0 %v3234
    %3345 = vmatpush.bf16.msra.mxu0 %v3232
    %3346 = vmatpush.bf16.msra.mxu0 %v3230
    %3347 = vmatpush.bf16.msra.mxu0 %v3228
    %3348 = vmatpush.bf16.msra.mxu0 %v3226
    %3349 = vmatmul.bf16.gmra.mxu0 %v3033
    %v3350 = vpop.f32.mrf.mxu0
    %v3351 = vadd.f32 0.0, %v3350
    %v3352 = vpop.f32.mrf.mxu0
    %v3353 = vadd.f32 0.0, %v3352
    %3354 = vdwg.mxu0
    %3355 = vmatpush.bf16.msra.mxu0 %v3256
    %3356 = vmatpush.bf16.msra.mxu0 %v3254
    %3357 = vmatpush.bf16.msra.mxu0 %v3252
    %3358 = vmatpush.bf16.msra.mxu0 %v3250
    %3359 = vmatpush.bf16.msra.mxu0 %v3248
    %3360 = vmatpush.bf16.msra.mxu0 %v3246
    %3361 = vmatpush.bf16.msra.mxu0 %v3244
    %3362 = vmatpush.bf16.msra.mxu0 %v3242
    %3363 = vmatmul.bf16.gmra.mxu0 %v3040
    %v3364 = vpop.f32.mrf.mxu0
    %v3365 = vadd.f32 %v3351, %v3364
    %v3366 = vpop.f32.mrf.mxu0
    %v3367 = vadd.f32 %v3353, %v3366
    %3368 = vdwg.mxu0
    %3369 = vmatpush.bf16.msra.mxu0 %v3272
    %3370 = vmatpush.bf16.msra.mxu0 %v3270
    %3371 = vmatpush.bf16.msra.mxu0 %v3268
    %3372 = vmatpush.bf16.msra.mxu0 %v3266
    %3373 = vmatpush.bf16.msra.mxu0 %v3264
    %3374 = vmatpush.bf16.msra.mxu0 %v3262
    %3375 = vmatpush.bf16.msra.mxu0 %v3260
    %3376 = vmatpush.bf16.msra.mxu0 %v3258
    %3377 = vmatmul.bf16.gmra.mxu0 %v3047
    %v3378 = vpop.f32.mrf.mxu0
    %v3379 = vadd.f32 %v3365, %v3378
    %v3380 = vpop.f32.mrf.mxu0
    %v3381 = vadd.f32 %v3367, %v3380
    %3382 = vdwg.mxu0
    %3383 = vmatpush.bf16.msra.mxu0 0
    %3384 = vmatpush.bf16.msra.mxu0 0
    %3385 = vmatpush.bf16.msra.mxu0 0
    %3386 = vmatpush.bf16.msra.mxu0 0
    %3387 = vmatpush.bf16.msra.mxu0 %v3280
    %3388 = vmatpush.bf16.msra.mxu0 %v3278
    %3389 = vmatpush.bf16.msra.mxu0 %v3276
    %3390 = vmatpush.bf16.msra.mxu0 %v3274
    %3391 = vmatmul.bf16.gmra.mxu0 %v3339
    %v3392 = vpop.f32.mrf.mxu0
    %v3393 = vadd.f32 %v3379, %v3392
    %v3394 = vpop.f32.mrf.mxu0
    %v3395 = vadd.f32 %v3381, %v3394
    %3396 = vdwg.mxu0
    %3397 = vmatpush.bf16.msra.mxu0 %v3241
    %3398 = vmatpush.bf16.msra.mxu0 %v3239
    %3399 = vmatpush.bf16.msra.mxu0 %v3237
    %3400 = vmatpush.bf16.msra.mxu0 %v3235
    %3401 = vmatpush.bf16.msra.mxu0 %v3233
    %3402 = vmatpush.bf16.msra.mxu0 %v3231
    %3403 = vmatpush.bf16.msra.mxu0 %v3229
    %3404 = vmatpush.bf16.msra.mxu0 %v3227
    %3405 = vmatmul.bf16.gmra.mxu0 %v3033
    %v3406 = vpop.f32.mrf.mxu0
    %v3407 = vadd.f32 0.0, %v3406
    %v3408 = vpop.f32.mrf.mxu0
    %v3409 = vadd.f32 0.0, %v3408
    %3410 = vdwg.mxu0
    %3411 = vmatpush.bf16.msra.mxu0 %v3257
    %3412 = vmatpush.bf16.msra.mxu0 %v3255
    %3413 = vmatpush.bf16.msra.mxu0 %v3253
    %3414 = vmatpush.bf16.msra.mxu0 %v3251
    %3415 = vmatpush.bf16.msra.mxu0 %v3249
    %3416 = vmatpush.bf16.msra.mxu0 %v3247
    %3417 = vmatpush.bf16.msra.mxu0 %v3245
    %3418 = vmatpush.bf16.msra.mxu0 %v3243
    %3419 = vmatmul.bf16.gmra.mxu0 %v3040
    %v3420 = vpop.f32.mrf.mxu0
    %v3421 = vadd.f32 %v3407, %v3420
    %v3422 = vpop.f32.mrf.mxu0
    %v3423 = vadd.f32 %v3409, %v3422
    %3424 = vdwg.mxu0
    %3425 = vmatpush.bf16.msra.mxu0 %v3273
    %3426 = vmatpush.bf16.msra.mxu0 %v3271
    %3427 = vmatpush.bf16.msra.mxu0 %v3269
    %3428 = vmatpush.bf16.msra.mxu0 %v3267
    %3429 = vmatpush.bf16.msra.mxu0 %v3265
    %3430 = vmatpush.bf16.msra.mxu0 %v3263
    %3431 = vmatpush.bf16.msra.mxu0 %v3261
    %3432 = vmatpush.bf16.msra.mxu0 %v3259
    %3433 = vmatmul.bf16.gmra.mxu0 %v3047
    %v3434 = vpop.f32.mrf.mxu0
    %v3435 = vadd.f32 %v3421, %v3434
    %v3436 = vpop.f32.mrf.mxu0
    %v3437 = vadd.f32 %v3423, %v3436
    %3438 = vdwg.mxu0
    %3439 = vmatpush.bf16.msra.mxu0 0
    %3440 = vmatpush.bf16.msra.mxu0 0
    %3441 = vmatpush.bf16.msra.mxu0 0
    %3442 = vmatpush.bf16.msra.mxu0 0
    %3443 = vmatpush.bf16.msra.mxu0 %v3281
    %3444 = vmatpush.bf16.msra.mxu0 %v3279
    %3445 = vmatpush.bf16.msra.mxu0 %v3277
    %3446 = vmatpush.bf16.msra.mxu0 %v3275
    %3447 = vmatmul.bf16.gmra.mxu0 %v3339
    %v3448 = vpop.f32.mrf.mxu0
    %v3449 = vadd.f32 %v3435, %v3448
    %v3450 = vpop.f32.mrf.mxu0
    %v3451 = vadd.f32 %v3437, %v3450
    %3452 = vdwg.mxu0
    %v3453 = vadd.f32 %v2954, %v3393
    %v3454 = vadd.f32 %v2955, %v3449
    %v3455 = vadd.f32 %v2956, %v3395
    %v3456 = vadd.f32 %v2957, %v3451
    %v3457 = vld [vmem:[#allocation2] sm:$0xfc]
    %v3458 = vld [vmem:[#allocation2 + $0x8] sm:$0xfc]
    %v3459 = vld [vmem:[#allocation2 + $0x10] sm:$0xfc]
    %v3460 = vld [vmem:[#allocation2 + $0x18] sm:$0xfc]
    %v3461 = vld [vmem:[#allocation2 + $0x20] sm:$0xff]
    %v3462 = vld [vmem:[#allocation2 + $0x28] sm:$0xff]
    %v3463 = vld [vmem:[#allocation2 + $0x30] sm:$0xff]
    %v3464 = vld [vmem:[#allocation2 + $0x38] sm:$0xff]
    %v3465 = vpack.c.bf16 %v3461, %v3457
    %v3466 = vpack.c.bf16 %v3462, %v3458
    %v3467 = vpack.c.bf16 %v3463, %v3459
    %v3468 = vpack.c.bf16 %v3464, %v3460
    %s3469 = scalar_lea.vmem %s2, 896
    %v3470 = vld [vmem:[%s3469] sm:$0xff]
    %v3471 = vld [vmem:[%s3469 + $0x8] sm:$0xff]
    %v3472 = vld [vmem:[%s3469 + $0x10] sm:$0xff]
    %v3473 = vld [vmem:[%s3469 + $0x18] sm:$0xff]
    %v3474 = vld [vmem:[%s3469 + $0x20] sm:$0xff]
    %v3475 = vld [vmem:[%s3469 + $0x28] sm:$0xff]
    %v3476 = vld [vmem:[%s3469 + $0x30] sm:$0xff]
    %v3477 = vld [vmem:[%s3469 + $0x38] sm:$0xff]
    %v3478 = vld [vmem:[%s3469 + $0x40] sm:$0xff]
    %v3479 = vld [vmem:[%s3469 + $0x48] sm:$0xff]
    %v3480 = vld [vmem:[%s3469 + $0x50] sm:$0xff]
    %v3481 = vld [vmem:[%s3469 + $0x58] sm:$0xff]
    %v3482 = vld [vmem:[%s3469 + $0x60] sm:$0xff]
    %v3483 = vld [vmem:[%s3469 + $0x68] sm:$0xff]
    %v3484 = vld [vmem:[%s3469 + $0x70] sm:$0xff]
    %v3485 = vld [vmem:[%s3469 + $0x78] sm:$0xff]
    %v3486 = vld [vmem:[%s3469 + $0x80] sm:$0xff]
    %v3487 = vld [vmem:[%s3469 + $0x88] sm:$0xff]
    %v3488 = vld [vmem:[%s3469 + $0x90] sm:$0xff]
    %v3489 = vld [vmem:[%s3469 + $0x98] sm:$0xff]
    %v3490 = vld [vmem:[%s3469 + $0xa0] sm:$0xff]
    %v3491 = vld [vmem:[%s3469 + $0xa8] sm:$0xff]
    %v3492 = vld [vmem:[%s3469 + $0xb0] sm:$0xff]
    %v3493 = vld [vmem:[%s3469 + $0xb8] sm:$0xff]
    %v3494 = vld [vmem:[%s3469 + $0xc0] sm:$0xff]
    %v3495 = vld [vmem:[%s3469 + $0xc8] sm:$0xff]
    %v3496 = vld [vmem:[%s3469 + $0xd0] sm:$0xff]
    %v3497 = vld [vmem:[%s3469 + $0xd8] sm:$0xff]
    %v3498 = vld [vmem:[%s3469 + $0xe0] sm:$0xff]
    %v3499 = vld [vmem:[%s3469 + $0xe8] sm:$0xff]
    %v3500 = vld [vmem:[%s3469 + $0xf0] sm:$0xff]
    %v3501 = vld [vmem:[%s3469 + $0xf8] sm:$0xff]
    %v3502 = vld [vmem:[%s3469 + $0x100] sm:$0xff]
    %v3503 = vld [vmem:[%s3469 + $0x108] sm:$0xff]
    %v3504 = vld [vmem:[%s3469 + $0x110] sm:$0xff]
    %v3505 = vld [vmem:[%s3469 + $0x118] sm:$0xff]
    %v3506 = vld [vmem:[%s3469 + $0x120] sm:$0xff]
    %v3507 = vld [vmem:[%s3469 + $0x128] sm:$0xff]
    %v3508 = vld [vmem:[%s3469 + $0x130] sm:$0xff]
    %v3509 = vld [vmem:[%s3469 + $0x138] sm:$0xff]
    %v3510 = vld [vmem:[%s3469 + $0x140] sm:$0xff]
    %v3511 = vld [vmem:[%s3469 + $0x148] sm:$0xff]
    %v3512 = vld [vmem:[%s3469 + $0x150] sm:$0xff]
    %v3513 = vld [vmem:[%s3469 + $0x158] sm:$0xff]
    %v3514 = vld [vmem:[%s3469 + $0x160] sm:$0xff]
    %v3515 = vld [vmem:[%s3469 + $0x168] sm:$0xff]
    %v3516 = vld [vmem:[%s3469 + $0x170] sm:$0xff]
    %v3517 = vld [vmem:[%s3469 + $0x178] sm:$0xff]
    %v3518 = vld [vmem:[%s3469 + $0x180] sm:$0xff]
    %v3519 = vld [vmem:[%s3469 + $0x188] sm:$0xff]
    %v3520 = vld [vmem:[%s3469 + $0x190] sm:$0xff]
    %v3521 = vld [vmem:[%s3469 + $0x198] sm:$0xff]
    %v3522 = vld [vmem:[%s3469 + $0x1a0] sm:$0xff]
    %v3523 = vld [vmem:[%s3469 + $0x1a8] sm:$0xff]
    %v3524 = vld [vmem:[%s3469 + $0x1b0] sm:$0xff]
    %v3525 = vld [vmem:[%s3469 + $0x1b8] sm:$0xff]
    %v3530 = vrot.slane %v3465, 1
    %v3531 = vrot.slane %v3466, 1
    %v3532 = vrot.slane %v3467, 1
    %v3533 = vrot.slane %v3468, 1
    %v3593 = vunpack.c.l.b16 %v3470
    %v3594 = vunpack.c.h.b16 %v3470
    %v3595 = vunpack.c.l.b16 %v3471
    %v3596 = vunpack.c.h.b16 %v3471
    %v3597 = vunpack.c.l.b16 %v3472
    %v3598 = vunpack.c.h.b16 %v3472
    %v3599 = vunpack.c.l.b16 %v3473
    %v3600 = vunpack.c.h.b16 %v3473
    %v3601 = vunpack.c.l.b16 %v3474
    %v3602 = vunpack.c.h.b16 %v3474
    %v3603 = vunpack.c.l.b16 %v3475
    %v3604 = vunpack.c.h.b16 %v3475
    %v3605 = vunpack.c.l.b16 %v3476
    %v3606 = vunpack.c.h.b16 %v3476
    %v3607 = vunpack.c.l.b16 %v3477
    %v3608 = vunpack.c.h.b16 %v3477
    %v3609 = vunpack.c.l.b16 %v3478
    %v3610 = vunpack.c.h.b16 %v3478
    %v3611 = vunpack.c.l.b16 %v3479
    %v3612 = vunpack.c.h.b16 %v3479
    %v3613 = vunpack.c.l.b16 %v3480
    %v3614 = vunpack.c.h.b16 %v3480
    %v3615 = vunpack.c.l.b16 %v3481
    %v3616 = vunpack.c.h.b16 %v3481
    %v3617 = vunpack.c.l.b16 %v3482
    %v3618 = vunpack.c.h.b16 %v3482
    %v3619 = vunpack.c.l.b16 %v3483
    %v3620 = vunpack.c.h.b16 %v3483
    %v3621 = vunpack.c.l.b16 %v3484
    %v3622 = vunpack.c.h.b16 %v3484
    %v3623 = vunpack.c.l.b16 %v3485
    %v3624 = vunpack.c.h.b16 %v3485
    %v3625 = vunpack.c.l.b16 %v3486
    %v3626 = vunpack.c.h.b16 %v3486
    %v3627 = vunpack.c.l.b16 %v3487
    %v3628 = vunpack.c.h.b16 %v3487
    %v3629 = vunpack.c.l.b16 %v3488
    %v3630 = vunpack.c.h.b16 %v3488
    %v3631 = vunpack.c.l.b16 %v3489
    %v3632 = vunpack.c.h.b16 %v3489
    %v3633 = vunpack.c.l.b16 %v3490
    %v3634 = vunpack.c.h.b16 %v3490
    %v3635 = vunpack.c.l.b16 %v3491
    %v3636 = vunpack.c.h.b16 %v3491
    %v3637 = vunpack.c.l.b16 %v3492
    %v3638 = vunpack.c.h.b16 %v3492
    %v3639 = vunpack.c.l.b16 %v3493
    %v3640 = vunpack.c.h.b16 %v3493
    %v3641 = vunpack.c.l.b16 %v3494
    %v3642 = vunpack.c.h.b16 %v3494
    %v3643 = vunpack.c.l.b16 %v3495
    %v3644 = vunpack.c.h.b16 %v3495
    %v3645 = vunpack.c.l.b16 %v3496
    %v3646 = vunpack.c.h.b16 %v3496
    %v3647 = vunpack.c.l.b16 %v3497
    %v3648 = vunpack.c.h.b16 %v3497
    %v3649 = vunpack.c.l.b16 %v3498
    %v3650 = vunpack.c.h.b16 %v3498
    %v3651 = vunpack.c.l.b16 %v3499
    %v3652 = vunpack.c.h.b16 %v3499
    %v3653 = vunpack.c.l.b16 %v3500
    %v3654 = vunpack.c.h.b16 %v3500
    %v3655 = vunpack.c.l.b16 %v3501
    %v3656 = vunpack.c.h.b16 %v3501
    %v3657 = vunpack.c.l.b16 %v3502
    %v3658 = vunpack.c.h.b16 %v3502
    %v3659 = vunpack.c.l.b16 %v3503
    %v3660 = vunpack.c.h.b16 %v3503
    %v3661 = vunpack.c.l.b16 %v3504
    %v3662 = vunpack.c.h.b16 %v3504
    %v3663 = vunpack.c.l.b16 %v3505
    %v3664 = vunpack.c.h.b16 %v3505
    %v3665 = vunpack.c.l.b16 %v3506
    %v3666 = vunpack.c.h.b16 %v3506
    %v3667 = vunpack.c.l.b16 %v3507
    %v3668 = vunpack.c.h.b16 %v3507
    %v3669 = vunpack.c.l.b16 %v3508
    %v3670 = vunpack.c.h.b16 %v3508
    %v3671 = vunpack.c.l.b16 %v3509
    %v3672 = vunpack.c.h.b16 %v3509
    %v3673 = vunpack.c.l.b16 %v3510
    %v3674 = vunpack.c.h.b16 %v3510
    %v3675 = vunpack.c.l.b16 %v3511
    %v3676 = vunpack.c.h.b16 %v3511
    %v3677 = vunpack.c.l.b16 %v3512
    %v3678 = vunpack.c.h.b16 %v3512
    %v3679 = vunpack.c.l.b16 %v3513
    %v3680 = vunpack.c.h.b16 %v3513
    %v3681 = vunpack.c.l.b16 %v3514
    %v3682 = vunpack.c.h.b16 %v3514
    %v3683 = vunpack.c.l.b16 %v3515
    %v3684 = vunpack.c.h.b16 %v3515
    %v3685 = vunpack.c.l.b16 %v3516
    %v3686 = vunpack.c.h.b16 %v3516
    %v3687 = vunpack.c.l.b16 %v3517
    %v3688 = vunpack.c.h.b16 %v3517
    %v3689 = vunpack.c.l.b16 %v3518
    %v3690 = vunpack.c.h.b16 %v3518
    %v3691 = vunpack.c.l.b16 %v3519
    %v3692 = vunpack.c.h.b16 %v3519
    %v3693 = vunpack.c.l.b16 %v3520
    %v3694 = vunpack.c.h.b16 %v3520
    %v3695 = vunpack.c.l.b16 %v3521
    %v3696 = vunpack.c.h.b16 %v3521
    %v3697 = vunpack.c.l.b16 %v3522
    %v3698 = vunpack.c.h.b16 %v3522
    %v3699 = vunpack.c.l.b16 %v3523
    %v3700 = vunpack.c.h.b16 %v3523
    %v3701 = vunpack.c.l.b16 %v3524
    %v3702 = vunpack.c.h.b16 %v3524
    %v3703 = vunpack.c.l.b16 %v3525
    %v3704 = vunpack.c.h.b16 %v3525
    %v3705 = vpack.c.b16 %v3595, %v3593
    %v3706 = vpack.c.b16 %v3596, %v3594
    %v3707 = vpack.c.b16 %v3599, %v3597
    %v3708 = vpack.c.b16 %v3600, %v3598
    %v3709 = vpack.c.b16 %v3603, %v3601
    %v3710 = vpack.c.b16 %v3604, %v3602
    %v3711 = vpack.c.b16 %v3607, %v3605
    %v3712 = vpack.c.b16 %v3608, %v3606
    %v3713 = vpack.c.b16 %v3611, %v3609
    %v3714 = vpack.c.b16 %v3612, %v3610
    %v3715 = vpack.c.b16 %v3615, %v3613
    %v3716 = vpack.c.b16 %v3616, %v3614
    %v3717 = vpack.c.b16 %v3619, %v3617
    %v3718 = vpack.c.b16 %v3620, %v3618
    %v3719 = vpack.c.b16 %v3623, %v3621
    %v3720 = vpack.c.b16 %v3624, %v3622
    %v3721 = vpack.c.b16 %v3627, %v3625
    %v3722 = vpack.c.b16 %v3628, %v3626
    %v3723 = vpack.c.b16 %v3631, %v3629
    %v3724 = vpack.c.b16 %v3632, %v3630
    %v3725 = vpack.c.b16 %v3635, %v3633
    %v3726 = vpack.c.b16 %v3636, %v3634
    %v3727 = vpack.c.b16 %v3639, %v3637
    %v3728 = vpack.c.b16 %v3640, %v3638
    %v3729 = vpack.c.b16 %v3643, %v3641
    %v3730 = vpack.c.b16 %v3644, %v3642
    %v3731 = vpack.c.b16 %v3647, %v3645
    %v3732 = vpack.c.b16 %v3648, %v3646
    %v3733 = vpack.c.b16 %v3651, %v3649
    %v3734 = vpack.c.b16 %v3652, %v3650
    %v3735 = vpack.c.b16 %v3655, %v3653
    %v3736 = vpack.c.b16 %v3656, %v3654
    %v3737 = vpack.c.b16 %v3659, %v3657
    %v3738 = vpack.c.b16 %v3660, %v3658
    %v3739 = vpack.c.b16 %v3663, %v3661
    %v3740 = vpack.c.b16 %v3664, %v3662
    %v3741 = vpack.c.b16 %v3667, %v3665
    %v3742 = vpack.c.b16 %v3668, %v3666
    %v3743 = vpack.c.b16 %v3671, %v3669
    %v3744 = vpack.c.b16 %v3672, %v3670
    %v3745 = vpack.c.b16 %v3675, %v3673
    %v3746 = vpack.c.b16 %v3676, %v3674
    %v3747 = vpack.c.b16 %v3679, %v3677
    %v3748 = vpack.c.b16 %v3680, %v3678
    %v3749 = vpack.c.b16 %v3683, %v3681
    %v3750 = vpack.c.b16 %v3684, %v3682
    %v3751 = vpack.c.b16 %v3687, %v3685
    %v3752 = vpack.c.b16 %v3688, %v3686
    %v3753 = vpack.c.b16 %v3691, %v3689
    %v3754 = vpack.c.b16 %v3692, %v3690
    %v3755 = vpack.c.b16 %v3695, %v3693
    %v3756 = vpack.c.b16 %v3696, %v3694
    %v3757 = vpack.c.b16 %v3699, %v3697
    %v3758 = vpack.c.b16 %v3700, %v3698
    %v3759 = vpack.c.b16 %v3703, %v3701
    %v3760 = vpack.c.b16 %v3704, %v3702
    %v3818 = vsel %vm618, %v3533, 0
    %3820 = vmatpush.bf16.msra.mxu0 %v3719
    %3821 = vmatpush.bf16.msra.mxu0 %v3717
    %3822 = vmatpush.bf16.msra.mxu0 %v3715
    %3823 = vmatpush.bf16.msra.mxu0 %v3713
    %3824 = vmatpush.bf16.msra.mxu0 %v3711
    %3825 = vmatpush.bf16.msra.mxu0 %v3709
    %3826 = vmatpush.bf16.msra.mxu0 %v3707
    %3827 = vmatpush.bf16.msra.mxu0 %v3705
    %3828 = vmatmul.bf16.gmra.mxu0 %v3530
    %v3829 = vpop.f32.mrf.mxu0
    %v3830 = vadd.f32 0.0, %v3829
    %v3831 = vpop.f32.mrf.mxu0
    %v3832 = vadd.f32 0.0, %v3831
    %3833 = vdwg.mxu0
    %3834 = vmatpush.bf16.msra.mxu0 %v3735
    %3835 = vmatpush.bf16.msra.mxu0 %v3733
    %3836 = vmatpush.bf16.msra.mxu0 %v3731
    %3837 = vmatpush.bf16.msra.mxu0 %v3729
    %3838 = vmatpush.bf16.msra.mxu0 %v3727
    %3839 = vmatpush.bf16.msra.mxu0 %v3725
    %3840 = vmatpush.bf16.msra.mxu0 %v3723
    %3841 = vmatpush.bf16.msra.mxu0 %v3721
    %3842 = vmatmul.bf16.gmra.mxu0 %v3531
    %v3843 = vpop.f32.mrf.mxu0
    %v3844 = vadd.f32 %v3830, %v3843
    %v3845 = vpop.f32.mrf.mxu0
    %v3846 = vadd.f32 %v3832, %v3845
    %3847 = vdwg.mxu0
    %3848 = vmatpush.bf16.msra.mxu0 %v3751
    %3849 = vmatpush.bf16.msra.mxu0 %v3749
    %3850 = vmatpush.bf16.msra.mxu0 %v3747
    %3851 = vmatpush.bf16.msra.mxu0 %v3745
    %3852 = vmatpush.bf16.msra.mxu0 %v3743
    %3853 = vmatpush.bf16.msra.mxu0 %v3741
    %3854 = vmatpush.bf16.msra.mxu0 %v3739
    %3855 = vmatpush.bf16.msra.mxu0 %v3737
    %3856 = vmatmul.bf16.gmra.mxu0 %v3532
    %v3857 = vpop.f32.mrf.mxu0
    %v3858 = vadd.f32 %v3844, %v3857
    %v3859 = vpop.f32.mrf.mxu0
    %v3860 = vadd.f32 %v3846, %v3859
    %3861 = vdwg.mxu0
    %3862 = vmatpush.bf16.msra.mxu0 0
    %3863 = vmatpush.bf16.msra.mxu0 0
    %3864 = vmatpush.bf16.msra.mxu0 0
    %3865 = vmatpush.bf16.msra.mxu0 0
    %3866 = vmatpush.bf16.msra.mxu0 %v3759
    %3867 = vmatpush.bf16.msra.mxu0 %v3757
    %3868 = vmatpush.bf16.msra.mxu0 %v3755
    %3869 = vmatpush.bf16.msra.mxu0 %v3753
    %3870 = vmatmul.bf16.gmra.mxu0 %v3818
    %v3871 = vpop.f32.mrf.mxu0
    %v3872 = vadd.f32 %v3858, %v3871
    %v3873 = vpop.f32.mrf.mxu0
    %v3874 = vadd.f32 %v3860, %v3873
    %3875 = vdwg.mxu0
    %3876 = vmatpush.bf16.msra.mxu0 %v3720
    %3877 = vmatpush.bf16.msra.mxu0 %v3718
    %3878 = vmatpush.bf16.msra.mxu0 %v3716
    %3879 = vmatpush.bf16.msra.mxu0 %v3714
    %3880 = vmatpush.bf16.msra.mxu0 %v3712
    %3881 = vmatpush.bf16.msra.mxu0 %v3710
    %3882 = vmatpush.bf16.msra.mxu0 %v3708
    %3883 = vmatpush.bf16.msra.mxu0 %v3706
    %3884 = vmatmul.bf16.gmra.mxu0 %v3530
    %v3885 = vpop.f32.mrf.mxu0
    %v3886 = vadd.f32 0.0, %v3885
    %v3887 = vpop.f32.mrf.mxu0
    %v3888 = vadd.f32 0.0, %v3887
    %3889 = vdwg.mxu0
    %3890 = vmatpush.bf16.msra.mxu0 %v3736
    %3891 = vmatpush.bf16.msra.mxu0 %v3734
    %3892 = vmatpush.bf16.msra.mxu0 %v3732
    %3893 = vmatpush.bf16.msra.mxu0 %v3730
    %3894 = vmatpush.bf16.msra.mxu0 %v3728
    %3895 = vmatpush.bf16.msra.mxu0 %v3726
    %3896 = vmatpush.bf16.msra.mxu0 %v3724
    %3897 = vmatpush.bf16.msra.mxu0 %v3722
    %3898 = vmatmul.bf16.gmra.mxu0 %v3531
    %v3899 = vpop.f32.mrf.mxu0
    %v3900 = vadd.f32 %v3886, %v3899
    %v3901 = vpop.f32.mrf.mxu0
    %v3902 = vadd.f32 %v3888, %v3901
    %3903 = vdwg.mxu0
    %3904 = vmatpush.bf16.msra.mxu0 %v3752
    %3905 = vmatpush.bf16.msra.mxu0 %v3750
    %3906 = vmatpush.bf16.msra.mxu0 %v3748
    %3907 = vmatpush.bf16.msra.mxu0 %v3746
    %3908 = vmatpush.bf16.msra.mxu0 %v3744
    %3909 = vmatpush.bf16.msra.mxu0 %v3742
    %3910 = vmatpush.bf16.msra.mxu0 %v3740
    %3911 = vmatpush.bf16.msra.mxu0 %v3738
    %3912 = vmatmul.bf16.gmra.mxu0 %v3532
    %v3913 = vpop.f32.mrf.mxu0
    %v3914 = vadd.f32 %v3900, %v3913
    %v3915 = vpop.f32.mrf.mxu0
    %v3916 = vadd.f32 %v3902, %v3915
    %3917 = vdwg.mxu0
    %3918 = vmatpush.bf16.msra.mxu0 0
    %3919 = vmatpush.bf16.msra.mxu0 0
    %3920 = vmatpush.bf16.msra.mxu0 0
    %3921 = vmatpush.bf16.msra.mxu0 0
    %3922 = vmatpush.bf16.msra.mxu0 %v3760
    %3923 = vmatpush.bf16.msra.mxu0 %v3758
    %3924 = vmatpush.bf16.msra.mxu0 %v3756
    %3925 = vmatpush.bf16.msra.mxu0 %v3754
    %3926 = vmatmul.bf16.gmra.mxu0 %v3818
    %v3927 = vpop.f32.mrf.mxu0
    %v3928 = vadd.f32 %v3914, %v3927
    %v3929 = vpop.f32.mrf.mxu0
    %v3930 = vadd.f32 %v3916, %v3929
    %3931 = vdwg.mxu0
    %v3932 = vadd.f32 %v3453, %v3872
    %v3933 = vadd.f32 %v3454, %v3928
    %v3934 = vadd.f32 %v3455, %v3874
    %v3935 = vadd.f32 %v3456, %v3930
    %vm3936 = vcmask 1044480
    %v3937 = vsel %vm3936, %v3932, 0.0
    %v3938 = vrot.slane %v3937, 4
    %v3939 = vadd.f32 %v3937, %v3938
    %v3940 = vrot.slane %v3939, 2
    %v3941 = vadd.f32 %v3939, %v3940
    %v3942 = vrot.slane %v3941, 1
    %v3943 = vadd.f32 %v3941, %v3942
    %vm3944 = vcmask 258048
    %v3945 = vsel %vm3944, %v3933, 0.0
    %v3946 = vrot.slane %v3945, 4
    %v3947 = vadd.f32 %v3945, %v3946
    %v3948 = vrot.slane %v3947, 2
    %v3949 = vadd.f32 %v3947, %v3948
    %v3950 = vrot.slane %v3949, 1
    %v3951 = vadd.f32 %v3949, %v3950
    %v3952 = vmul.f32 %v3932, %v3932
    %v3953 = vmul.f32 %v3933, %v3933
    %v3954 = vsel %vm3936, %v3952, 0.0
    %v3955 = vrot.slane %v3954, 4
    %v3956 = vadd.f32 %v3954, %v3955
    %v3957 = vrot.slane %v3956, 2
    %v3958 = vadd.f32 %v3956, %v3957
    %v3959 = vrot.slane %v3958, 1
    %v3960 = vadd.f32 %v3958, %v3959
    %v3961 = vsel %vm3944, %v3953, 0.0
    %v3962 = vrot.slane %v3961, 4
    %v3963 = vadd.f32 %v3961, %v3962
    %v3964 = vrot.slane %v3963, 2
    %v3965 = vadd.f32 %v3963, %v3964
    %v3966 = vrot.slane %v3965, 1
    %v3967 = vadd.f32 %v3965, %v3966
    %v3968 = vsel %vm3936, %v3934, 0.0
    %v3969 = vrot.slane %v3968, 4
    %v3970 = vadd.f32 %v3968, %v3969
    %v3971 = vrot.slane %v3970, 2
    %v3972 = vadd.f32 %v3970, %v3971
    %v3973 = vrot.slane %v3972, 1
    %v3974 = vadd.f32 %v3972, %v3973
    %v3975 = vsel %vm3944, %v3935, 0.0
    %v3976 = vrot.slane %v3975, 4
    %v3977 = vadd.f32 %v3975, %v3976
    %v3978 = vrot.slane %v3977, 2
    %v3979 = vadd.f32 %v3977, %v3978
    %v3980 = vrot.slane %v3979, 1
    %v3981 = vadd.f32 %v3979, %v3980
    %v3982 = vmul.f32 %v3934, %v3934
    %v3983 = vmul.f32 %v3935, %v3935
    %v3984 = vsel %vm3936, %v3982, 0.0
    %v3985 = vrot.slane %v3984, 4
    %v3986 = vadd.f32 %v3984, %v3985
    %v3987 = vrot.slane %v3986, 2
    %v3988 = vadd.f32 %v3986, %v3987
    %v3989 = vrot.slane %v3988, 1
    %v3990 = vadd.f32 %v3988, %v3989
    %v3991 = vsel %vm3944, %v3983, 0.0
    %v3992 = vrot.slane %v3991, 4
    %v3993 = vadd.f32 %v3991, %v3992
    %v3994 = vrot.slane %v3993, 2
    %v3995 = vadd.f32 %v3993, %v3994
    %v3996 = vrot.slane %v3995, 1
    %v3997 = vadd.f32 %v3995, %v3996
    %v3998 = vadd.f32 %v3943, %v3974
    %v3999 = vadd.f32 %v3951, %v3981
    %v4000 = vadd.f32 %v3960, %v3990
    %v4001 = vadd.f32 %v3967, %v3997
    %v4002 = vld [vmem:[%s10] sm:$0xff]
    %v4003 = vld [vmem:[%s10 + $0x8] sm:$0xff]
    %v4004 = vld [vmem:[%s10 + $0x10] sm:$0xff]
    %v4005 = vld [vmem:[%s10 + $0x18] sm:$0xff]
    %v4006 = vld [vmem:[%s10 + $0x20] sm:$0xff]
    %v4007 = vld [vmem:[%s10 + $0x28] sm:$0xff]
    %v4008 = vld [vmem:[%s10 + $0x30] sm:$0xff]
    %v4009 = vld [vmem:[%s10 + $0x38] sm:$0xff]
    %v4010 = vld [vmem:[%s7] sm:$0x1]
    %v4011 = vld [vmem:[%s8] sm:$0x1]
    %v4012 = vsel %vm772, %v3998, %v4000
    %v4013 = vsel %vm772, %v3999, %v4001
    %v4015 = vsel %vm1564, %v4013, 0
    %v4018 = vsel %vm1564, %v4003, 0
    %v4021 = vsel %vm1564, %v4005, 0
    %v4024 = vsel %vm1564, %v4007, 0
    %v4027 = vsel %vm1564, %v4009, 0
    %4029 = vmatpush.xpose.msra.mxu0 0.0
    %4030 = vmatpush.xpose.msra.mxu0 0.0
    %4031 = vmatpush.xpose.msra.mxu0 0.0
    %4032 = vmatpush.xpose.msra.mxu0 0.0
    %4033 = vmatpush.xpose.msra.mxu0 0.0
    %4034 = vmatpush.xpose.msra.mxu0 0.0
    %4035 = vmatpush.xpose.msra.mxu0 0.0
    %4036 = vmatpush.xpose.msra.mxu0 0.0
    %4037 = vmatpush.xpose.msra.mxu0 0.0
    %4038 = vmatpush.xpose.msra.mxu0 0.0
    %4039 = vmatpush.xpose.msra.mxu0 0.0
    %4040 = vmatpush.xpose.msra.mxu0 0.0
    %v4041 = vand.u32 %v4008, 4294901760
    %4042 = vmatpush.xpose.msra.mxu0 %v4041
    %v4043 = vand.u32 %v4006, 4294901760
    %4044 = vmatpush.xpose.msra.mxu0 %v4043
    %v4045 = vand.u32 %v4004, 4294901760
    %4046 = vmatpush.xpose.msra.mxu0 %v4045
    %v4047 = vand.u32 %v4002, 4294901760
    %4048 = vmatpush.xpose.msra.mxu0 %v4047
    %v4049 = vand.u32 %v4012, 4294901760
    %v4050 = vsub.f32 %v4012, %v4049
    %v4051 = vand.u32 %v4050, 4294901760
    %v4052 = vsub.f32 %v4050, %v4051
    %v4053 = vand.u32 %v4052, 4294901760
    %4054 = vmatmul.f32.gmra.mxu0 %v4053
    %v4055 = vpop.f32.mrf.mxu0
    %v4056 = vadd.f32 0.0, %v4055
    %4057 = vdwg.mxu0
    %4058 = vmatpush.xpose.msra.mxu0 0.0
    %4059 = vmatpush.xpose.msra.mxu0 0.0
    %4060 = vmatpush.xpose.msra.mxu0 0.0
    %4061 = vmatpush.xpose.msra.mxu0 0.0
    %4062 = vmatpush.xpose.msra.mxu0 0.0
    %4063 = vmatpush.xpose.msra.mxu0 0.0
    %4064 = vmatpush.xpose.msra.mxu0 0.0
    %4065 = vmatpush.xpose.msra.mxu0 0.0
    %4066 = vmatpush.xpose.msra.mxu0 0.0
    %4067 = vmatpush.xpose.msra.mxu0 0.0
    %4068 = vmatpush.xpose.msra.mxu0 0.0
    %4069 = vmatpush.xpose.msra.mxu0 0.0
    %v4070 = vand.u32 %v4008, 4294901760
    %v4071 = vsub.f32 %v4008, %v4070
    %v4072 = vand.u32 %v4071, 4294901760
    %v4073 = vsub.f32 %v4071, %v4072
    %v4074 = vand.u32 %v4073, 4294901760
    %4075 = vmatpush.xpose.msra.mxu0 %v4074
    %v4076 = vand.u32 %v4006, 4294901760
    %v4077 = vsub.f32 %v4006, %v4076
    %v4078 = vand.u32 %v4077, 4294901760
    %v4079 = vsub.f32 %v4077, %v4078
    %v4080 = vand.u32 %v4079, 4294901760
    %4081 = vmatpush.xpose.msra.mxu0 %v4080
    %v4082 = vand.u32 %v4004, 4294901760
    %v4083 = vsub.f32 %v4004, %v4082
    %v4084 = vand.u32 %v4083, 4294901760
    %v4085 = vsub.f32 %v4083, %v4084
    %v4086 = vand.u32 %v4085, 4294901760
    %4087 = vmatpush.xpose.msra.mxu0 %v4086
    %v4088 = vand.u32 %v4002, 4294901760
    %v4089 = vsub.f32 %v4002, %v4088
    %v4090 = vand.u32 %v4089, 4294901760
    %v4091 = vsub.f32 %v4089, %v4090
    %v4092 = vand.u32 %v4091, 4294901760
    %4093 = vmatpush.xpose.msra.mxu0 %v4092
    %v4094 = vand.u32 %v4012, 4294901760
    %4095 = vmatmul.f32.gmra.mxu0 %v4094
    %v4096 = vpop.f32.mrf.mxu0
    %v4097 = vadd.f32 %v4056, %v4096
    %4098 = vdwg.mxu0
    %4099 = vmatpush.xpose.msra.mxu0 0.0
    %4100 = vmatpush.xpose.msra.mxu0 0.0
    %4101 = vmatpush.xpose.msra.mxu0 0.0
    %4102 = vmatpush.xpose.msra.mxu0 0.0
    %4103 = vmatpush.xpose.msra.mxu0 0.0
    %4104 = vmatpush.xpose.msra.mxu0 0.0
    %4105 = vmatpush.xpose.msra.mxu0 0.0
    %4106 = vmatpush.xpose.msra.mxu0 0.0
    %4107 = vmatpush.xpose.msra.mxu0 0.0
    %4108 = vmatpush.xpose.msra.mxu0 0.0
    %4109 = vmatpush.xpose.msra.mxu0 0.0
    %4110 = vmatpush.xpose.msra.mxu0 0.0
    %v4111 = vand.u32 %v4008, 4294901760
    %v4112 = vsub.f32 %v4008, %v4111
    %4113 = vmatpush.xpose.msra.mxu0 %v4112
    %v4114 = vand.u32 %v4006, 4294901760
    %v4115 = vsub.f32 %v4006, %v4114
    %4116 = vmatpush.xpose.msra.mxu0 %v4115
    %v4117 = vand.u32 %v4004, 4294901760
    %v4118 = vsub.f32 %v4004, %v4117
    %4119 = vmatpush.xpose.msra.mxu0 %v4118
    %v4120 = vand.u32 %v4002, 4294901760
    %v4121 = vsub.f32 %v4002, %v4120
    %4122 = vmatpush.xpose.msra.mxu0 %v4121
    %v4123 = vand.u32 %v4012, 4294901760
    %v4124 = vsub.f32 %v4012, %v4123
    %4125 = vmatmul.f32.gmra.mxu0 %v4124
    %v4126 = vpop.f32.mrf.mxu0
    %v4127 = vadd.f32 %v4097, %v4126
    %4128 = vdwg.mxu0
    %4129 = vmatpush.xpose.msra.mxu0 0.0
    %4130 = vmatpush.xpose.msra.mxu0 0.0
    %4131 = vmatpush.xpose.msra.mxu0 0.0
    %4132 = vmatpush.xpose.msra.mxu0 0.0
    %4133 = vmatpush.xpose.msra.mxu0 0.0
    %4134 = vmatpush.xpose.msra.mxu0 0.0
    %4135 = vmatpush.xpose.msra.mxu0 0.0
    %4136 = vmatpush.xpose.msra.mxu0 0.0
    %4137 = vmatpush.xpose.msra.mxu0 0.0
    %4138 = vmatpush.xpose.msra.mxu0 0.0
    %4139 = vmatpush.xpose.msra.mxu0 0.0
    %4140 = vmatpush.xpose.msra.mxu0 0.0
    %v4141 = vand.u32 %v4008, 4294901760
    %4142 = vmatpush.xpose.msra.mxu0 %v4141
    %v4143 = vand.u32 %v4006, 4294901760
    %4144 = vmatpush.xpose.msra.mxu0 %v4143
    %v4145 = vand.u32 %v4004, 4294901760
    %4146 = vmatpush.xpose.msra.mxu0 %v4145
    %v4147 = vand.u32 %v4002, 4294901760
    %4148 = vmatpush.xpose.msra.mxu0 %v4147
    %v4149 = vand.u32 %v4012, 4294901760
    %v4150 = vsub.f32 %v4012, %v4149
    %v4151 = vand.u32 %v4150, 4294901760
    %4152 = vmatmul.f32.gmra.mxu0 %v4151
    %v4153 = vpop.f32.mrf.mxu0
    %v4154 = vadd.f32 %v4127, %v4153
    %4155 = vdwg.mxu0
    %4156 = vmatpush.xpose.msra.mxu0 0.0
    %4157 = vmatpush.xpose.msra.mxu0 0.0
    %4158 = vmatpush.xpose.msra.mxu0 0.0
    %4159 = vmatpush.xpose.msra.mxu0 0.0
    %4160 = vmatpush.xpose.msra.mxu0 0.0
    %4161 = vmatpush.xpose.msra.mxu0 0.0
    %4162 = vmatpush.xpose.msra.mxu0 0.0
    %4163 = vmatpush.xpose.msra.mxu0 0.0
    %4164 = vmatpush.xpose.msra.mxu0 0.0
    %4165 = vmatpush.xpose.msra.mxu0 0.0
    %4166 = vmatpush.xpose.msra.mxu0 0.0
    %4167 = vmatpush.xpose.msra.mxu0 0.0
    %v4168 = vand.u32 %v4008, 4294901760
    %v4169 = vsub.f32 %v4008, %v4168
    %v4170 = vand.u32 %v4169, 4294901760
    %4171 = vmatpush.xpose.msra.mxu0 %v4170
    %v4172 = vand.u32 %v4006, 4294901760
    %v4173 = vsub.f32 %v4006, %v4172
    %v4174 = vand.u32 %v4173, 4294901760
    %4175 = vmatpush.xpose.msra.mxu0 %v4174
    %v4176 = vand.u32 %v4004, 4294901760
    %v4177 = vsub.f32 %v4004, %v4176
    %v4178 = vand.u32 %v4177, 4294901760
    %4179 = vmatpush.xpose.msra.mxu0 %v4178
    %v4180 = vand.u32 %v4002, 4294901760
    %v4181 = vsub.f32 %v4002, %v4180
    %v4182 = vand.u32 %v4181, 4294901760
    %4183 = vmatpush.xpose.msra.mxu0 %v4182
    %v4184 = vand.u32 %v4012, 4294901760
    %4185 = vmatmul.f32.gmra.mxu0 %v4184
    %v4186 = vpop.f32.mrf.mxu0
    %v4187 = vadd.f32 %v4154, %v4186
    %4188 = vdwg.mxu0
    %4189 = vmatpush.xpose.msra.mxu0 0.0
    %4190 = vmatpush.xpose.msra.mxu0 0.0
    %4191 = vmatpush.xpose.msra.mxu0 0.0
    %4192 = vmatpush.xpose.msra.mxu0 0.0
    %4193 = vmatpush.xpose.msra.mxu0 0.0
    %4194 = vmatpush.xpose.msra.mxu0 0.0
    %4195 = vmatpush.xpose.msra.mxu0 0.0
    %4196 = vmatpush.xpose.msra.mxu0 0.0
    %4197 = vmatpush.xpose.msra.mxu0 0.0
    %4198 = vmatpush.xpose.msra.mxu0 0.0
    %4199 = vmatpush.xpose.msra.mxu0 0.0
    %4200 = vmatpush.xpose.msra.mxu0 0.0
    %v4201 = vand.u32 %v4008, 4294901760
    %4202 = vmatpush.xpose.msra.mxu0 %v4201
    %v4203 = vand.u32 %v4006, 4294901760
    %4204 = vmatpush.xpose.msra.mxu0 %v4203
    %v4205 = vand.u32 %v4004, 4294901760
    %4206 = vmatpush.xpose.msra.mxu0 %v4205
    %v4207 = vand.u32 %v4002, 4294901760
    %4208 = vmatpush.xpose.msra.mxu0 %v4207
    %v4209 = vand.u32 %v4012, 4294901760
    %4210 = vmatmul.f32.gmra.mxu0 %v4209
    %v4211 = vpop.f32.mrf.mxu0
    %v4212 = vadd.f32 %v4187, %v4211
    %4213 = vdwg.mxu0
    %4214 = vmatpush.xpose.msra.mxu0 0.0
    %4215 = vmatpush.xpose.msra.mxu0 0.0
    %4216 = vmatpush.xpose.msra.mxu0 0.0
    %4217 = vmatpush.xpose.msra.mxu0 0.0
    %4218 = vmatpush.xpose.msra.mxu0 0.0
    %4219 = vmatpush.xpose.msra.mxu0 0.0
    %4220 = vmatpush.xpose.msra.mxu0 0.0
    %4221 = vmatpush.xpose.msra.mxu0 0.0
    %4222 = vmatpush.xpose.msra.mxu0 0.0
    %4223 = vmatpush.xpose.msra.mxu0 0.0
    %4224 = vmatpush.xpose.msra.mxu0 0.0
    %4225 = vmatpush.xpose.msra.mxu0 0.0
    %v4226 = vand.u32 %v4027, 4294901760
    %4227 = vmatpush.xpose.msra.mxu0 %v4226
    %v4228 = vand.u32 %v4024, 4294901760
    %4229 = vmatpush.xpose.msra.mxu0 %v4228
    %v4230 = vand.u32 %v4021, 4294901760
    %4231 = vmatpush.xpose.msra.mxu0 %v4230
    %v4232 = vand.u32 %v4018, 4294901760
    %4233 = vmatpush.xpose.msra.mxu0 %v4232
    %v4234 = vand.u32 %v4015, 4294901760
    %v4235 = vsub.f32 %v4015, %v4234
    %v4236 = vand.u32 %v4235, 4294901760
    %v4237 = vsub.f32 %v4235, %v4236
    %v4238 = vand.u32 %v4237, 4294901760
    %4239 = vmatmul.f32.gmra.mxu0 %v4238
    %v4240 = vpop.f32.mrf.mxu0
    %v4241 = vadd.f32 %v4212, %v4240
    %4242 = vdwg.mxu0
    %4243 = vmatpush.xpose.msra.mxu0 0.0
    %4244 = vmatpush.xpose.msra.mxu0 0.0
    %4245 = vmatpush.xpose.msra.mxu0 0.0
    %4246 = vmatpush.xpose.msra.mxu0 0.0
    %4247 = vmatpush.xpose.msra.mxu0 0.0
    %4248 = vmatpush.xpose.msra.mxu0 0.0
    %4249 = vmatpush.xpose.msra.mxu0 0.0
    %4250 = vmatpush.xpose.msra.mxu0 0.0
    %4251 = vmatpush.xpose.msra.mxu0 0.0
    %4252 = vmatpush.xpose.msra.mxu0 0.0
    %4253 = vmatpush.xpose.msra.mxu0 0.0
    %4254 = vmatpush.xpose.msra.mxu0 0.0
    %v4255 = vand.u32 %v4027, 4294901760
    %v4256 = vsub.f32 %v4027, %v4255
    %v4257 = vand.u32 %v4256, 4294901760
    %v4258 = vsub.f32 %v4256, %v4257
    %v4259 = vand.u32 %v4258, 4294901760
    %4260 = vmatpush.xpose.msra.mxu0 %v4259
    %v4261 = vand.u32 %v4024, 4294901760
    %v4262 = vsub.f32 %v4024, %v4261
    %v4263 = vand.u32 %v4262, 4294901760
    %v4264 = vsub.f32 %v4262, %v4263
    %v4265 = vand.u32 %v4264, 4294901760
    %4266 = vmatpush.xpose.msra.mxu0 %v4265
    %v4267 = vand.u32 %v4021, 4294901760
    %v4268 = vsub.f32 %v4021, %v4267
    %v4269 = vand.u32 %v4268, 4294901760
    %v4270 = vsub.f32 %v4268, %v4269
    %v4271 = vand.u32 %v4270, 4294901760
    %4272 = vmatpush.xpose.msra.mxu0 %v4271
    %v4273 = vand.u32 %v4018, 4294901760
    %v4274 = vsub.f32 %v4018, %v4273
    %v4275 = vand.u32 %v4274, 4294901760
    %v4276 = vsub.f32 %v4274, %v4275
    %v4277 = vand.u32 %v4276, 4294901760
    %4278 = vmatpush.xpose.msra.mxu0 %v4277
    %v4279 = vand.u32 %v4015, 4294901760
    %4280 = vmatmul.f32.gmra.mxu0 %v4279
    %v4281 = vpop.f32.mrf.mxu0
    %v4282 = vadd.f32 %v4241, %v4281
    %4283 = vdwg.mxu0
    %4284 = vmatpush.xpose.msra.mxu0 0.0
    %4285 = vmatpush.xpose.msra.mxu0 0.0
    %4286 = vmatpush.xpose.msra.mxu0 0.0
    %4287 = vmatpush.xpose.msra.mxu0 0.0
    %4288 = vmatpush.xpose.msra.mxu0 0.0
    %4289 = vmatpush.xpose.msra.mxu0 0.0
    %4290 = vmatpush.xpose.msra.mxu0 0.0
    %4291 = vmatpush.xpose.msra.mxu0 0.0
    %4292 = vmatpush.xpose.msra.mxu0 0.0
    %4293 = vmatpush.xpose.msra.mxu0 0.0
    %4294 = vmatpush.xpose.msra.mxu0 0.0
    %4295 = vmatpush.xpose.msra.mxu0 0.0
    %v4296 = vand.u32 %v4027, 4294901760
    %v4297 = vsub.f32 %v4027, %v4296
    %4298 = vmatpush.xpose.msra.mxu0 %v4297
    %v4299 = vand.u32 %v4024, 4294901760
    %v4300 = vsub.f32 %v4024, %v4299
    %4301 = vmatpush.xpose.msra.mxu0 %v4300
    %v4302 = vand.u32 %v4021, 4294901760
    %v4303 = vsub.f32 %v4021, %v4302
    %4304 = vmatpush.xpose.msra.mxu0 %v4303
    %v4305 = vand.u32 %v4018, 4294901760
    %v4306 = vsub.f32 %v4018, %v4305
    %4307 = vmatpush.xpose.msra.mxu0 %v4306
    %v4308 = vand.u32 %v4015, 4294901760
    %v4309 = vsub.f32 %v4015, %v4308
    %4310 = vmatmul.f32.gmra.mxu0 %v4309
    %v4311 = vpop.f32.mrf.mxu0
    %v4312 = vadd.f32 %v4282, %v4311
    %4313 = vdwg.mxu0
    %4314 = vmatpush.xpose.msra.mxu0 0.0
    %4315 = vmatpush.xpose.msra.mxu0 0.0
    %4316 = vmatpush.xpose.msra.mxu0 0.0
    %4317 = vmatpush.xpose.msra.mxu0 0.0
    %4318 = vmatpush.xpose.msra.mxu0 0.0
    %4319 = vmatpush.xpose.msra.mxu0 0.0
    %4320 = vmatpush.xpose.msra.mxu0 0.0
    %4321 = vmatpush.xpose.msra.mxu0 0.0
    %4322 = vmatpush.xpose.msra.mxu0 0.0
    %4323 = vmatpush.xpose.msra.mxu0 0.0
    %4324 = vmatpush.xpose.msra.mxu0 0.0
    %4325 = vmatpush.xpose.msra.mxu0 0.0
    %v4326 = vand.u32 %v4027, 4294901760
    %4327 = vmatpush.xpose.msra.mxu0 %v4326
    %v4328 = vand.u32 %v4024, 4294901760
    %4329 = vmatpush.xpose.msra.mxu0 %v4328
    %v4330 = vand.u32 %v4021, 4294901760
    %4331 = vmatpush.xpose.msra.mxu0 %v4330
    %v4332 = vand.u32 %v4018, 4294901760
    %4333 = vmatpush.xpose.msra.mxu0 %v4332
    %v4334 = vand.u32 %v4015, 4294901760
    %v4335 = vsub.f32 %v4015, %v4334
    %v4336 = vand.u32 %v4335, 4294901760
    %4337 = vmatmul.f32.gmra.mxu0 %v4336
    %v4338 = vpop.f32.mrf.mxu0
    %v4339 = vadd.f32 %v4312, %v4338
    %4340 = vdwg.mxu0
    %4341 = vmatpush.xpose.msra.mxu0 0.0
    %4342 = vmatpush.xpose.msra.mxu0 0.0
    %4343 = vmatpush.xpose.msra.mxu0 0.0
    %4344 = vmatpush.xpose.msra.mxu0 0.0
    %4345 = vmatpush.xpose.msra.mxu0 0.0
    %4346 = vmatpush.xpose.msra.mxu0 0.0
    %4347 = vmatpush.xpose.msra.mxu0 0.0
    %4348 = vmatpush.xpose.msra.mxu0 0.0
    %4349 = vmatpush.xpose.msra.mxu0 0.0
    %4350 = vmatpush.xpose.msra.mxu0 0.0
    %4351 = vmatpush.xpose.msra.mxu0 0.0
    %4352 = vmatpush.xpose.msra.mxu0 0.0
    %v4353 = vand.u32 %v4027, 4294901760
    %v4354 = vsub.f32 %v4027, %v4353
    %v4355 = vand.u32 %v4354, 4294901760
    %4356 = vmatpush.xpose.msra.mxu0 %v4355
    %v4357 = vand.u32 %v4024, 4294901760
    %v4358 = vsub.f32 %v4024, %v4357
    %v4359 = vand.u32 %v4358, 4294901760
    %4360 = vmatpush.xpose.msra.mxu0 %v4359
    %v4361 = vand.u32 %v4021, 4294901760
    %v4362 = vsub.f32 %v4021, %v4361
    %v4363 = vand.u32 %v4362, 4294901760
    %4364 = vmatpush.xpose.msra.mxu0 %v4363
    %v4365 = vand.u32 %v4018, 4294901760
    %v4366 = vsub.f32 %v4018, %v4365
    %v4367 = vand.u32 %v4366, 4294901760
    %4368 = vmatpush.xpose.msra.mxu0 %v4367
    %v4369 = vand.u32 %v4015, 4294901760
    %4370 = vmatmul.f32.gmra.mxu0 %v4369
    %v4371 = vpop.f32.mrf.mxu0
    %v4372 = vadd.f32 %v4339, %v4371
    %4373 = vdwg.mxu0
    %4374 = vmatpush.xpose.msra.mxu0 0.0
    %4375 = vmatpush.xpose.msra.mxu0 0.0
    %4376 = vmatpush.xpose.msra.mxu0 0.0
    %4377 = vmatpush.xpose.msra.mxu0 0.0
    %4378 = vmatpush.xpose.msra.mxu0 0.0
    %4379 = vmatpush.xpose.msra.mxu0 0.0
    %4380 = vmatpush.xpose.msra.mxu0 0.0
    %4381 = vmatpush.xpose.msra.mxu0 0.0
    %4382 = vmatpush.xpose.msra.mxu0 0.0
    %4383 = vmatpush.xpose.msra.mxu0 0.0
    %4384 = vmatpush.xpose.msra.mxu0 0.0
    %4385 = vmatpush.xpose.msra.mxu0 0.0
    %v4386 = vand.u32 %v4027, 4294901760
    %4387 = vmatpush.xpose.msra.mxu0 %v4386
    %v4388 = vand.u32 %v4024, 4294901760
    %4389 = vmatpush.xpose.msra.mxu0 %v4388
    %v4390 = vand.u32 %v4021, 4294901760
    %4391 = vmatpush.xpose.msra.mxu0 %v4390
    %v4392 = vand.u32 %v4018, 4294901760
    %4393 = vmatpush.xpose.msra.mxu0 %v4392
    %v4394 = vand.u32 %v4015, 4294901760
    %4395 = vmatmul.f32.gmra.mxu0 %v4394
    %v4396 = vpop.f32.mrf.mxu0
    %v4397 = vadd.f32 %v4372, %v4396
    %4398 = vdwg.mxu0
    %v4399 = vmul.f32 %v4397, 0.02
    %v4400 = vmul.f32 %v4399, %v4399
    %v4402 = vrot.slane %v4400, 7
    %v4404 = vsub.f32 %v4399, %v4402
    %v4405 = vadd.f32 %v4404, 1e-05
    %v4406 = vrsqrt.pop %v4405
    %v4407 = vmul.f32 %v4406, %v4405
    %v4408 = vmul.f32 %v4407, %v4406
    %v4409 = vmul.f32 0.5, %v4408
    %v4410 = vsub.f32 1.5, %v4409
    %v4411 = vmul.f32 %v4406, %v4410
    %vm4412 = vweird.f32 %v4405
    %vm4413 = vweird.f32 %v4406
    %vm4414 = vmor %vm4412, %vm4413
    %v4415 = vsel %vm4414, %v4406, %v4411
    %4417 = vst [vmem:[#allocation1] sm:$0xff] %v4415
    %s4418 = scalar_lea.vmem [#allocation1], 1
    %v4419 = vld [vmem:[%s4418] ss:$9 sm:$0xff]
    %v4421 = vmul.f32 %v4010, %v4419
    %v4422 = vmul.f32 %v4399, %v4421
    %v4423 = vsub.f32 %v4011, %v4422
    %v4425 = vperm.slane %v4421, 0
    %v4428 = vperm.slane %v4423, 0
    %v4430 = vsel %vm772, %v4425, %v4428
    %v4432 = vsel %vm1564, %v4430, 0
    %4434 = vmatpush.msra.mxu0 0.0
    %4435 = vmatpush.msra.mxu0 0.0
    %4436 = vmatpush.msra.mxu0 0.0
    %4437 = vmatpush.msra.mxu0 0.0
    %4438 = vmatpush.msra.mxu0 0.0
    %4439 = vmatpush.msra.mxu0 0.0
    %4440 = vmatpush.msra.mxu0 0.0
    %4441 = vmatpush.msra.mxu0 0.0
    %4442 = vmatpush.msra.mxu0 0.0
    %4443 = vmatpush.msra.mxu0 0.0
    %4444 = vmatpush.msra.mxu0 0.0
    %4445 = vmatpush.msra.mxu0 0.0
    %v4446 = vand.u32 %v4008, 4294901760
    %4447 = vmatpush.msra.mxu0 %v4446
    %v4448 = vand.u32 %v4006, 4294901760
    %4449 = vmatpush.msra.mxu0 %v4448
    %v4450 = vand.u32 %v4004, 4294901760
    %4451 = vmatpush.msra.mxu0 %v4450
    %v4452 = vand.u32 %v4002, 4294901760
    %4453 = vmatpush.msra.mxu0 %v4452
    %v4454 = vand.u32 %v4432, 4294901760
    %v4455 = vsub.f32 %v4432, %v4454
    %v4456 = vand.u32 %v4455, 4294901760
    %v4457 = vsub.f32 %v4455, %v4456
    %v4458 = vand.u32 %v4457, 4294901760
    %4459 = vmatmul.f32.gmra.mxu0 %v4458
    %v4460 = vpop.f32.mrf.mxu0
    %v4461 = vadd.f32 0.0, %v4460
    %4462 = vdwg.mxu0
    %4463 = vmatpush.msra.mxu0 0.0
    %4464 = vmatpush.msra.mxu0 0.0
    %4465 = vmatpush.msra.mxu0 0.0
    %4466 = vmatpush.msra.mxu0 0.0
    %4467 = vmatpush.msra.mxu0 0.0
    %4468 = vmatpush.msra.mxu0 0.0
    %4469 = vmatpush.msra.mxu0 0.0
    %4470 = vmatpush.msra.mxu0 0.0
    %4471 = vmatpush.msra.mxu0 0.0
    %4472 = vmatpush.msra.mxu0 0.0
    %4473 = vmatpush.msra.mxu0 0.0
    %4474 = vmatpush.msra.mxu0 0.0
    %v4475 = vand.u32 %v4008, 4294901760
    %v4476 = vsub.f32 %v4008, %v4475
    %v4477 = vand.u32 %v4476, 4294901760
    %v4478 = vsub.f32 %v4476, %v4477
    %v4479 = vand.u32 %v4478, 4294901760
    %4480 = vmatpush.msra.mxu0 %v4479
    %v4481 = vand.u32 %v4006, 4294901760
    %v4482 = vsub.f32 %v4006, %v4481
    %v4483 = vand.u32 %v4482, 4294901760
    %v4484 = vsub.f32 %v4482, %v4483
    %v4485 = vand.u32 %v4484, 4294901760
    %4486 = vmatpush.msra.mxu0 %v4485
    %v4487 = vand.u32 %v4004, 4294901760
    %v4488 = vsub.f32 %v4004, %v4487
    %v4489 = vand.u32 %v4488, 4294901760
    %v4490 = vsub.f32 %v4488, %v4489
    %v4491 = vand.u32 %v4490, 4294901760
    %4492 = vmatpush.msra.mxu0 %v4491
    %v4493 = vand.u32 %v4002, 4294901760
    %v4494 = vsub.f32 %v4002, %v4493
    %v4495 = vand.u32 %v4494, 4294901760
    %v4496 = vsub.f32 %v4494, %v4495
    %v4497 = vand.u32 %v4496, 4294901760
    %4498 = vmatpush.msra.mxu0 %v4497
    %v4499 = vand.u32 %v4432, 4294901760
    %4500 = vmatmul.f32.gmra.mxu0 %v4499
    %v4501 = vpop.f32.mrf.mxu0
    %v4502 = vadd.f32 %v4461, %v4501
    %4503 = vdwg.mxu0
    %4504 = vmatpush.msra.mxu0 0.0
    %4505 = vmatpush.msra.mxu0 0.0
    %4506 = vmatpush.msra.mxu0 0.0
    %4507 = vmatpush.msra.mxu0 0.0
    %4508 = vmatpush.msra.mxu0 0.0
    %4509 = vmatpush.msra.mxu0 0.0
    %4510 = vmatpush.msra.mxu0 0.0
    %4511 = vmatpush.msra.mxu0 0.0
    %4512 = vmatpush.msra.mxu0 0.0
    %4513 = vmatpush.msra.mxu0 0.0
    %4514 = vmatpush.msra.mxu0 0.0
    %4515 = vmatpush.msra.mxu0 0.0
    %v4516 = vand.u32 %v4008, 4294901760
    %v4517 = vsub.f32 %v4008, %v4516
    %4518 = vmatpush.msra.mxu0 %v4517
    %v4519 = vand.u32 %v4006, 4294901760
    %v4520 = vsub.f32 %v4006, %v4519
    %4521 = vmatpush.msra.mxu0 %v4520
    %v4522 = vand.u32 %v4004, 4294901760
    %v4523 = vsub.f32 %v4004, %v4522
    %4524 = vmatpush.msra.mxu0 %v4523
    %v4525 = vand.u32 %v4002, 4294901760
    %v4526 = vsub.f32 %v4002, %v4525
    %4527 = vmatpush.msra.mxu0 %v4526
    %v4528 = vand.u32 %v4432, 4294901760
    %v4529 = vsub.f32 %v4432, %v4528
    %4530 = vmatmul.f32.gmra.mxu0 %v4529
    %v4531 = vpop.f32.mrf.mxu0
    %v4532 = vadd.f32 %v4502, %v4531
    %4533 = vdwg.mxu0
    %4534 = vmatpush.msra.mxu0 0.0
    %4535 = vmatpush.msra.mxu0 0.0
    %4536 = vmatpush.msra.mxu0 0.0
    %4537 = vmatpush.msra.mxu0 0.0
    %4538 = vmatpush.msra.mxu0 0.0
    %4539 = vmatpush.msra.mxu0 0.0
    %4540 = vmatpush.msra.mxu0 0.0
    %4541 = vmatpush.msra.mxu0 0.0
    %4542 = vmatpush.msra.mxu0 0.0
    %4543 = vmatpush.msra.mxu0 0.0
    %4544 = vmatpush.msra.mxu0 0.0
    %4545 = vmatpush.msra.mxu0 0.0
    %v4546 = vand.u32 %v4008, 4294901760
    %4547 = vmatpush.msra.mxu0 %v4546
    %v4548 = vand.u32 %v4006, 4294901760
    %4549 = vmatpush.msra.mxu0 %v4548
    %v4550 = vand.u32 %v4004, 4294901760
    %4551 = vmatpush.msra.mxu0 %v4550
    %v4552 = vand.u32 %v4002, 4294901760
    %4553 = vmatpush.msra.mxu0 %v4552
    %v4554 = vand.u32 %v4432, 4294901760
    %v4555 = vsub.f32 %v4432, %v4554
    %v4556 = vand.u32 %v4555, 4294901760
    %4557 = vmatmul.f32.gmra.mxu0 %v4556
    %v4558 = vpop.f32.mrf.mxu0
    %v4559 = vadd.f32 %v4532, %v4558
    %4560 = vdwg.mxu0
    %4561 = vmatpush.msra.mxu0 0.0
    %4562 = vmatpush.msra.mxu0 0.0
    %4563 = vmatpush.msra.mxu0 0.0
    %4564 = vmatpush.msra.mxu0 0.0
    %4565 = vmatpush.msra.mxu0 0.0
    %4566 = vmatpush.msra.mxu0 0.0
    %4567 = vmatpush.msra.mxu0 0.0
    %4568 = vmatpush.msra.mxu0 0.0
    %4569 = vmatpush.msra.mxu0 0.0
    %4570 = vmatpush.msra.mxu0 0.0
    %4571 = vmatpush.msra.mxu0 0.0
    %4572 = vmatpush.msra.mxu0 0.0
    %v4573 = vand.u32 %v4008, 4294901760
    %v4574 = vsub.f32 %v4008, %v4573
    %v4575 = vand.u32 %v4574, 4294901760
    %4576 = vmatpush.msra.mxu0 %v4575
    %v4577 = vand.u32 %v4006, 4294901760
    %v4578 = vsub.f32 %v4006, %v4577
    %v4579 = vand.u32 %v4578, 4294901760
    %4580 = vmatpush.msra.mxu0 %v4579
    %v4581 = vand.u32 %v4004, 4294901760
    %v4582 = vsub.f32 %v4004, %v4581
    %v4583 = vand.u32 %v4582, 4294901760
    %4584 = vmatpush.msra.mxu0 %v4583
    %v4585 = vand.u32 %v4002, 4294901760
    %v4586 = vsub.f32 %v4002, %v4585
    %v4587 = vand.u32 %v4586, 4294901760
    %4588 = vmatpush.msra.mxu0 %v4587
    %v4589 = vand.u32 %v4432, 4294901760
    %4590 = vmatmul.f32.gmra.mxu0 %v4589
    %v4591 = vpop.f32.mrf.mxu0
    %v4592 = vadd.f32 %v4559, %v4591
    %4593 = vdwg.mxu0
    %4594 = vmatpush.msra.mxu0 0.0
    %4595 = vmatpush.msra.mxu0 0.0
    %4596 = vmatpush.msra.mxu0 0.0
    %4597 = vmatpush.msra.mxu0 0.0
    %4598 = vmatpush.msra.mxu0 0.0
    %4599 = vmatpush.msra.mxu0 0.0
    %4600 = vmatpush.msra.mxu0 0.0
    %4601 = vmatpush.msra.mxu0 0.0
    %4602 = vmatpush.msra.mxu0 0.0
    %4603 = vmatpush.msra.mxu0 0.0
    %4604 = vmatpush.msra.mxu0 0.0
    %4605 = vmatpush.msra.mxu0 0.0
    %v4606 = vand.u32 %v4008, 4294901760
    %4607 = vmatpush.msra.mxu0 %v4606
    %v4608 = vand.u32 %v4006, 4294901760
    %4609 = vmatpush.msra.mxu0 %v4608
    %v4610 = vand.u32 %v4004, 4294901760
    %4611 = vmatpush.msra.mxu0 %v4610
    %v4612 = vand.u32 %v4002, 4294901760
    %4613 = vmatpush.msra.mxu0 %v4612
    %v4614 = vand.u32 %v4432, 4294901760
    %4615 = vmatmul.f32.gmra.mxu0 %v4614
    %v4616 = vpop.f32.mrf.mxu0
    %v4617 = vadd.f32 %v4592, %v4616
    %4618 = vdwg.mxu0
    %4619 = vmatpush.msra.mxu0 0.0
    %4620 = vmatpush.msra.mxu0 0.0
    %4621 = vmatpush.msra.mxu0 0.0
    %4622 = vmatpush.msra.mxu0 0.0
    %4623 = vmatpush.msra.mxu0 0.0
    %4624 = vmatpush.msra.mxu0 0.0
    %4625 = vmatpush.msra.mxu0 0.0
    %4626 = vmatpush.msra.mxu0 0.0
    %4627 = vmatpush.msra.mxu0 0.0
    %4628 = vmatpush.msra.mxu0 0.0
    %4629 = vmatpush.msra.mxu0 0.0
    %4630 = vmatpush.msra.mxu0 0.0
    %v4631 = vand.u32 %v4009, 4294901760
    %4632 = vmatpush.msra.mxu0 %v4631
    %v4633 = vand.u32 %v4007, 4294901760
    %4634 = vmatpush.msra.mxu0 %v4633
    %v4635 = vand.u32 %v4005, 4294901760
    %4636 = vmatpush.msra.mxu0 %v4635
    %v4637 = vand.u32 %v4003, 4294901760
    %4638 = vmatpush.msra.mxu0 %v4637
    %v4639 = vand.u32 %v4432, 4294901760
    %v4640 = vsub.f32 %v4432, %v4639
    %v4641 = vand.u32 %v4640, 4294901760
    %v4642 = vsub.f32 %v4640, %v4641
    %v4643 = vand.u32 %v4642, 4294901760
    %4644 = vmatmul.f32.gmra.mxu0 %v4643
    %v4645 = vpop.f32.mrf.mxu0
    %v4646 = vadd.f32 0.0, %v4645
    %4647 = vdwg.mxu0
    %4648 = vmatpush.msra.mxu0 0.0
    %4649 = vmatpush.msra.mxu0 0.0
    %4650 = vmatpush.msra.mxu0 0.0
    %4651 = vmatpush.msra.mxu0 0.0
    %4652 = vmatpush.msra.mxu0 0.0
    %4653 = vmatpush.msra.mxu0 0.0
    %4654 = vmatpush.msra.mxu0 0.0
    %4655 = vmatpush.msra.mxu0 0.0
    %4656 = vmatpush.msra.mxu0 0.0
    %4657 = vmatpush.msra.mxu0 0.0
    %4658 = vmatpush.msra.mxu0 0.0
    %4659 = vmatpush.msra.mxu0 0.0
    %v4660 = vand.u32 %v4009, 4294901760
    %v4661 = vsub.f32 %v4009, %v4660
    %v4662 = vand.u32 %v4661, 4294901760
    %v4663 = vsub.f32 %v4661, %v4662
    %v4664 = vand.u32 %v4663, 4294901760
    %4665 = vmatpush.msra.mxu0 %v4664
    %v4666 = vand.u32 %v4007, 4294901760
    %v4667 = vsub.f32 %v4007, %v4666
    %v4668 = vand.u32 %v4667, 4294901760
    %v4669 = vsub.f32 %v4667, %v4668
    %v4670 = vand.u32 %v4669, 4294901760
    %4671 = vmatpush.msra.mxu0 %v4670
    %v4672 = vand.u32 %v4005, 4294901760
    %v4673 = vsub.f32 %v4005, %v4672
    %v4674 = vand.u32 %v4673, 4294901760
    %v4675 = vsub.f32 %v4673, %v4674
    %v4676 = vand.u32 %v4675, 4294901760
    %4677 = vmatpush.msra.mxu0 %v4676
    %v4678 = vand.u32 %v4003, 4294901760
    %v4679 = vsub.f32 %v4003, %v4678
    %v4680 = vand.u32 %v4679, 4294901760
    %v4681 = vsub.f32 %v4679, %v4680
    %v4682 = vand.u32 %v4681, 4294901760
    %4683 = vmatpush.msra.mxu0 %v4682
    %v4684 = vand.u32 %v4432, 4294901760
    %4685 = vmatmul.f32.gmra.mxu0 %v4684
    %v4686 = vpop.f32.mrf.mxu0
    %v4687 = vadd.f32 %v4646, %v4686
    %4688 = vdwg.mxu0
    %4689 = vmatpush.msra.mxu0 0.0
    %4690 = vmatpush.msra.mxu0 0.0
    %4691 = vmatpush.msra.mxu0 0.0
    %4692 = vmatpush.msra.mxu0 0.0
    %4693 = vmatpush.msra.mxu0 0.0
    %4694 = vmatpush.msra.mxu0 0.0
    %4695 = vmatpush.msra.mxu0 0.0
    %4696 = vmatpush.msra.mxu0 0.0
    %4697 = vmatpush.msra.mxu0 0.0
    %4698 = vmatpush.msra.mxu0 0.0
    %4699 = vmatpush.msra.mxu0 0.0
    %4700 = vmatpush.msra.mxu0 0.0
    %v4701 = vand.u32 %v4009, 4294901760
    %v4702 = vsub.f32 %v4009, %v4701
    %4703 = vmatpush.msra.mxu0 %v4702
    %v4704 = vand.u32 %v4007, 4294901760
    %v4705 = vsub.f32 %v4007, %v4704
    %4706 = vmatpush.msra.mxu0 %v4705
    %v4707 = vand.u32 %v4005, 4294901760
    %v4708 = vsub.f32 %v4005, %v4707
    %4709 = vmatpush.msra.mxu0 %v4708
    %v4710 = vand.u32 %v4003, 4294901760
    %v4711 = vsub.f32 %v4003, %v4710
    %4712 = vmatpush.msra.mxu0 %v4711
    %v4713 = vand.u32 %v4432, 4294901760
    %v4714 = vsub.f32 %v4432, %v4713
    %4715 = vmatmul.f32.gmra.mxu0 %v4714
    %v4716 = vpop.f32.mrf.mxu0
    %v4717 = vadd.f32 %v4687, %v4716
    %4718 = vdwg.mxu0
    %4719 = vmatpush.msra.mxu0 0.0
    %4720 = vmatpush.msra.mxu0 0.0
    %4721 = vmatpush.msra.mxu0 0.0
    %4722 = vmatpush.msra.mxu0 0.0
    %4723 = vmatpush.msra.mxu0 0.0
    %4724 = vmatpush.msra.mxu0 0.0
    %4725 = vmatpush.msra.mxu0 0.0
    %4726 = vmatpush.msra.mxu0 0.0
    %4727 = vmatpush.msra.mxu0 0.0
    %4728 = vmatpush.msra.mxu0 0.0
    %4729 = vmatpush.msra.mxu0 0.0
    %4730 = vmatpush.msra.mxu0 0.0
    %v4731 = vand.u32 %v4009, 4294901760
    %4732 = vmatpush.msra.mxu0 %v4731
    %v4733 = vand.u32 %v4007, 4294901760
    %4734 = vmatpush.msra.mxu0 %v4733
    %v4735 = vand.u32 %v4005, 4294901760
    %4736 = vmatpush.msra.mxu0 %v4735
    %v4737 = vand.u32 %v4003, 4294901760
    %4738 = vmatpush.msra.mxu0 %v4737
    %v4739 = vand.u32 %v4432, 4294901760
    %v4740 = vsub.f32 %v4432, %v4739
    %v4741 = vand.u32 %v4740, 4294901760
    %4742 = vmatmul.f32.gmra.mxu0 %v4741
    %v4743 = vpop.f32.mrf.mxu0
    %v4744 = vadd.f32 %v4717, %v4743
    %4745 = vdwg.mxu0
    %4746 = vmatpush.msra.mxu0 0.0
    %4747 = vmatpush.msra.mxu0 0.0
    %4748 = vmatpush.msra.mxu0 0.0
    %4749 = vmatpush.msra.mxu0 0.0
    %4750 = vmatpush.msra.mxu0 0.0
    %4751 = vmatpush.msra.mxu0 0.0
    %4752 = vmatpush.msra.mxu0 0.0
    %4753 = vmatpush.msra.mxu0 0.0
    %4754 = vmatpush.msra.mxu0 0.0
    %4755 = vmatpush.msra.mxu0 0.0
    %4756 = vmatpush.msra.mxu0 0.0
    %4757 = vmatpush.msra.mxu0 0.0
    %v4758 = vand.u32 %v4009, 4294901760
    %v4759 = vsub.f32 %v4009, %v4758
    %v4760 = vand.u32 %v4759, 4294901760
    %4761 = vmatpush.msra.mxu0 %v4760
    %v4762 = vand.u32 %v4007, 4294901760
    %v4763 = vsub.f32 %v4007, %v4762
    %v4764 = vand.u32 %v4763, 4294901760
    %4765 = vmatpush.msra.mxu0 %v4764
    %v4766 = vand.u32 %v4005, 4294901760
    %v4767 = vsub.f32 %v4005, %v4766
    %v4768 = vand.u32 %v4767, 4294901760
    %4769 = vmatpush.msra.mxu0 %v4768
    %v4770 = vand.u32 %v4003, 4294901760
    %v4771 = vsub.f32 %v4003, %v4770
    %v4772 = vand.u32 %v4771, 4294901760
    %4773 = vmatpush.msra.mxu0 %v4772
    %v4774 = vand.u32 %v4432, 4294901760
    %4775 = vmatmul.f32.gmra.mxu0 %v4774
    %v4776 = vpop.f32.mrf.mxu0
    %v4777 = vadd.f32 %v4744, %v4776
    %4778 = vdwg.mxu0
    %4779 = vmatpush.msra.mxu0 0.0
    %4780 = vmatpush.msra.mxu0 0.0
    %4781 = vmatpush.msra.mxu0 0.0
    %4782 = vmatpush.msra.mxu0 0.0
    %4783 = vmatpush.msra.mxu0 0.0
    %4784 = vmatpush.msra.mxu0 0.0
    %4785 = vmatpush.msra.mxu0 0.0
    %4786 = vmatpush.msra.mxu0 0.0
    %4787 = vmatpush.msra.mxu0 0.0
    %4788 = vmatpush.msra.mxu0 0.0
    %4789 = vmatpush.msra.mxu0 0.0
    %4790 = vmatpush.msra.mxu0 0.0
    %v4791 = vand.u32 %v4009, 4294901760
    %4792 = vmatpush.msra.mxu0 %v4791
    %v4793 = vand.u32 %v4007, 4294901760
    %4794 = vmatpush.msra.mxu0 %v4793
    %v4795 = vand.u32 %v4005, 4294901760
    %4796 = vmatpush.msra.mxu0 %v4795
    %v4797 = vand.u32 %v4003, 4294901760
    %4798 = vmatpush.msra.mxu0 %v4797
    %v4799 = vand.u32 %v4432, 4294901760
    %4800 = vmatmul.f32.gmra.mxu0 %v4799
    %v4801 = vpop.f32.mrf.mxu0
    %v4802 = vadd.f32 %v4777, %v4801
    %4803 = vdwg.mxu0
    %v4804 = vperm.slane %v4617, 0
    %v4805 = vperm.slane %v4802, 0
    %v4806 = vmul.f32 %v3932, %v4804
    %v4807 = vmul.f32 %v3933, %v4805
    %v4808 = vmul.f32 %v3934, %v4804
    %v4809 = vmul.f32 %v3935, %v4805
    %v4810 = vperm.slane %v4617, 1
    %v4811 = vperm.slane %v4802, 1
    %v4812 = vadd.f32 %v4806, %v4810
    %v4813 = vadd.f32 %v4807, %v4811
    %v4814 = vadd.f32 %v4808, %v4810
    %v4815 = vadd.f32 %v4809, %v4811
    %v4816 = vmax.f32 %v4812, 0.0
    %v4817 = vmax.f32 %v4813, 0.0
    %v4818 = vmax.f32 %v4814, 0.0
    %v4819 = vmax.f32 %v4815, 0.0
    %v4820 = vld [vmem:[%s12] sm:$0x3]
    %vm4821 = vcmask 113664
    %v4823 = vsel %vm4821, %v4820, 0
    %v4826 = vsel %vm593, %v4818, 0
    %v4829 = vsel %vm593, %v4819, 0
    %4831 = vmatpush.msra.mxu0 0.0
    %4832 = vmatpush.msra.mxu0 0.0
    %4833 = vmatpush.msra.mxu0 0.0
    %4834 = vmatpush.msra.mxu0 0.0
    %4835 = vmatpush.msra.mxu0 0.0
    %4836 = vmatpush.msra.mxu0 0.0
    %4837 = vmatpush.msra.mxu0 0.0
    %4838 = vmatpush.msra.mxu0 0.0
    %4839 = vmatpush.msra.mxu0 0.0
    %4840 = vmatpush.msra.mxu0 0.0
    %4841 = vmatpush.msra.mxu0 0.0
    %4842 = vmatpush.msra.mxu0 0.0
    %4843 = vmatpush.msra.mxu0 0.0
    %4844 = vmatpush.msra.mxu0 0.0
    %v4845 = vand.u32 %v4826, 4294901760
    %4846 = vmatpush.msra.mxu0 %v4845
    %v4847 = vand.u32 %v4816, 4294901760
    %4848 = vmatpush.msra.mxu0 %v4847
    %v4849 = vand.u32 %v4823, 4294901760
    %v4850 = vsub.f32 %v4823, %v4849
    %v4851 = vand.u32 %v4850, 4294901760
    %v4852 = vsub.f32 %v4850, %v4851
    %v4853 = vand.u32 %v4852, 4294901760
    %4854 = vmatmul.f32.gmra.mxu0 %v4853
    %v4855 = vpop.f32.mrf.mxu0
    %v4856 = vadd.f32 0.0, %v4855
    %4857 = vdwg.mxu0
    %4858 = vmatpush.msra.mxu0 0.0
    %4859 = vmatpush.msra.mxu0 0.0
    %4860 = vmatpush.msra.mxu0 0.0
    %4861 = vmatpush.msra.mxu0 0.0
    %4862 = vmatpush.msra.mxu0 0.0
    %4863 = vmatpush.msra.mxu0 0.0
    %4864 = vmatpush.msra.mxu0 0.0
    %4865 = vmatpush.msra.mxu0 0.0
    %4866 = vmatpush.msra.mxu0 0.0
    %4867 = vmatpush.msra.mxu0 0.0
    %4868 = vmatpush.msra.mxu0 0.0
    %4869 = vmatpush.msra.mxu0 0.0
    %4870 = vmatpush.msra.mxu0 0.0
    %4871 = vmatpush.msra.mxu0 0.0
    %v4872 = vand.u32 %v4826, 4294901760
    %v4873 = vsub.f32 %v4826, %v4872
    %v4874 = vand.u32 %v4873, 4294901760
    %v4875 = vsub.f32 %v4873, %v4874
    %v4876 = vand.u32 %v4875, 4294901760
    %4877 = vmatpush.msra.mxu0 %v4876
    %v4878 = vand.u32 %v4816, 4294901760
    %v4879 = vsub.f32 %v4816, %v4878
    %v4880 = vand.u32 %v4879, 4294901760
    %v4881 = vsub.f32 %v4879, %v4880
    %v4882 = vand.u32 %v4881, 4294901760
    %4883 = vmatpush.msra.mxu0 %v4882
    %v4884 = vand.u32 %v4823, 4294901760
    %4885 = vmatmul.f32.gmra.mxu0 %v4884
    %v4886 = vpop.f32.mrf.mxu0
    %v4887 = vadd.f32 %v4856, %v4886
    %4888 = vdwg.mxu0
    %4889 = vmatpush.msra.mxu0 0.0
    %4890 = vmatpush.msra.mxu0 0.0
    %4891 = vmatpush.msra.mxu0 0.0
    %4892 = vmatpush.msra.mxu0 0.0
    %4893 = vmatpush.msra.mxu0 0.0
    %4894 = vmatpush.msra.mxu0 0.0
    %4895 = vmatpush.msra.mxu0 0.0
    %4896 = vmatpush.msra.mxu0 0.0
    %4897 = vmatpush.msra.mxu0 0.0
    %4898 = vmatpush.msra.mxu0 0.0
    %4899 = vmatpush.msra.mxu0 0.0
    %4900 = vmatpush.msra.mxu0 0.0
    %4901 = vmatpush.msra.mxu0 0.0
    %4902 = vmatpush.msra.mxu0 0.0
    %v4903 = vand.u32 %v4826, 4294901760
    %v4904 = vsub.f32 %v4826, %v4903
    %4905 = vmatpush.msra.mxu0 %v4904
    %v4906 = vand.u32 %v4816, 4294901760
    %v4907 = vsub.f32 %v4816, %v4906
    %4908 = vmatpush.msra.mxu0 %v4907
    %v4909 = vand.u32 %v4823, 4294901760
    %v4910 = vsub.f32 %v4823, %v4909
    %4911 = vmatmul.f32.gmra.mxu0 %v4910
    %v4912 = vpop.f32.mrf.mxu0
    %v4913 = vadd.f32 %v4887, %v4912
    %4914 = vdwg.mxu0
    %4915 = vmatpush.msra.mxu0 0.0
    %4916 = vmatpush.msra.mxu0 0.0
    %4917 = vmatpush.msra.mxu0 0.0
    %4918 = vmatpush.msra.mxu0 0.0
    %4919 = vmatpush.msra.mxu0 0.0
    %4920 = vmatpush.msra.mxu0 0.0
    %4921 = vmatpush.msra.mxu0 0.0
    %4922 = vmatpush.msra.mxu0 0.0
    %4923 = vmatpush.msra.mxu0 0.0
    %4924 = vmatpush.msra.mxu0 0.0
    %4925 = vmatpush.msra.mxu0 0.0
    %4926 = vmatpush.msra.mxu0 0.0
    %4927 = vmatpush.msra.mxu0 0.0
    %4928 = vmatpush.msra.mxu0 0.0
    %v4929 = vand.u32 %v4826, 4294901760
    %4930 = vmatpush.msra.mxu0 %v4929
    %v4931 = vand.u32 %v4816, 4294901760
    %4932 = vmatpush.msra.mxu0 %v4931
    %v4933 = vand.u32 %v4823, 4294901760
    %v4934 = vsub.f32 %v4823, %v4933
    %v4935 = vand.u32 %v4934, 4294901760
    %4936 = vmatmul.f32.gmra.mxu0 %v4935
    %v4937 = vpop.f32.mrf.mxu0
    %v4938 = vadd.f32 %v4913, %v4937
    %4939 = vdwg.mxu0
    %4940 = vmatpush.msra.mxu0 0.0
    %4941 = vmatpush.msra.mxu0 0.0
    %4942 = vmatpush.msra.mxu0 0.0
    %4943 = vmatpush.msra.mxu0 0.0
    %4944 = vmatpush.msra.mxu0 0.0
    %4945 = vmatpush.msra.mxu0 0.0
    %4946 = vmatpush.msra.mxu0 0.0
    %4947 = vmatpush.msra.mxu0 0.0
    %4948 = vmatpush.msra.mxu0 0.0
    %4949 = vmatpush.msra.mxu0 0.0
    %4950 = vmatpush.msra.mxu0 0.0
    %4951 = vmatpush.msra.mxu0 0.0
    %4952 = vmatpush.msra.mxu0 0.0
    %4953 = vmatpush.msra.mxu0 0.0
    %v4954 = vand.u32 %v4826, 4294901760
    %v4955 = vsub.f32 %v4826, %v4954
    %v4956 = vand.u32 %v4955, 4294901760
    %4957 = vmatpush.msra.mxu0 %v4956
    %v4958 = vand.u32 %v4816, 4294901760
    %v4959 = vsub.f32 %v4816, %v4958
    %v4960 = vand.u32 %v4959, 4294901760
    %4961 = vmatpush.msra.mxu0 %v4960
    %v4962 = vand.u32 %v4823, 4294901760
    %4963 = vmatmul.f32.gmra.mxu0 %v4962
    %v4964 = vpop.f32.mrf.mxu0
    %v4965 = vadd.f32 %v4938, %v4964
    %4966 = vdwg.mxu0
    %4967 = vmatpush.msra.mxu0 0.0
    %4968 = vmatpush.msra.mxu0 0.0
    %4969 = vmatpush.msra.mxu0 0.0
    %4970 = vmatpush.msra.mxu0 0.0
    %4971 = vmatpush.msra.mxu0 0.0
    %4972 = vmatpush.msra.mxu0 0.0
    %4973 = vmatpush.msra.mxu0 0.0
    %4974 = vmatpush.msra.mxu0 0.0
    %4975 = vmatpush.msra.mxu0 0.0
    %4976 = vmatpush.msra.mxu0 0.0
    %4977 = vmatpush.msra.mxu0 0.0
    %4978 = vmatpush.msra.mxu0 0.0
    %4979 = vmatpush.msra.mxu0 0.0
    %4980 = vmatpush.msra.mxu0 0.0
    %v4981 = vand.u32 %v4826, 4294901760
    %4982 = vmatpush.msra.mxu0 %v4981
    %v4983 = vand.u32 %v4816, 4294901760
    %4984 = vmatpush.msra.mxu0 %v4983
    %v4985 = vand.u32 %v4823, 4294901760
    %4986 = vmatmul.f32.gmra.mxu0 %v4985
    %v4987 = vpop.f32.mrf.mxu0
    %v4988 = vadd.f32 %v4965, %v4987
    %4989 = vdwg.mxu0
    %4990 = vmatpush.msra.mxu0 0.0
    %4991 = vmatpush.msra.mxu0 0.0
    %4992 = vmatpush.msra.mxu0 0.0
    %4993 = vmatpush.msra.mxu0 0.0
    %4994 = vmatpush.msra.mxu0 0.0
    %4995 = vmatpush.msra.mxu0 0.0
    %4996 = vmatpush.msra.mxu0 0.0
    %4997 = vmatpush.msra.mxu0 0.0
    %4998 = vmatpush.msra.mxu0 0.0
    %4999 = vmatpush.msra.mxu0 0.0
    %5000 = vmatpush.msra.mxu0 0.0
    %5001 = vmatpush.msra.mxu0 0.0
    %5002 = vmatpush.msra.mxu0 0.0
    %5003 = vmatpush.msra.mxu0 0.0
    %v5004 = vand.u32 %v4829, 4294901760
    %5005 = vmatpush.msra.mxu0 %v5004
    %v5006 = vand.u32 %v4817, 4294901760
    %5007 = vmatpush.msra.mxu0 %v5006
    %v5008 = vand.u32 %v4823, 4294901760
    %v5009 = vsub.f32 %v4823, %v5008
    %v5010 = vand.u32 %v5009, 4294901760
    %v5011 = vsub.f32 %v5009, %v5010
    %v5012 = vand.u32 %v5011, 4294901760
    %5013 = vmatmul.f32.gmra.mxu0 %v5012
    %v5014 = vpop.f32.mrf.mxu0
    %v5015 = vadd.f32 0.0, %v5014
    %5016 = vdwg.mxu0
    %5017 = vmatpush.msra.mxu0 0.0
    %5018 = vmatpush.msra.mxu0 0.0
    %5019 = vmatpush.msra.mxu0 0.0
    %5020 = vmatpush.msra.mxu0 0.0
    %5021 = vmatpush.msra.mxu0 0.0
    %5022 = vmatpush.msra.mxu0 0.0
    %5023 = vmatpush.msra.mxu0 0.0
    %5024 = vmatpush.msra.mxu0 0.0
    %5025 = vmatpush.msra.mxu0 0.0
    %5026 = vmatpush.msra.mxu0 0.0
    %5027 = vmatpush.msra.mxu0 0.0
    %5028 = vmatpush.msra.mxu0 0.0
    %5029 = vmatpush.msra.mxu0 0.0
    %5030 = vmatpush.msra.mxu0 0.0
    %v5031 = vand.u32 %v4829, 4294901760
    %v5032 = vsub.f32 %v4829, %v5031
    %v5033 = vand.u32 %v5032, 4294901760
    %v5034 = vsub.f32 %v5032, %v5033
    %v5035 = vand.u32 %v5034, 4294901760
    %5036 = vmatpush.msra.mxu0 %v5035
    %v5037 = vand.u32 %v4817, 4294901760
    %v5038 = vsub.f32 %v4817, %v5037
    %v5039 = vand.u32 %v5038, 4294901760
    %v5040 = vsub.f32 %v5038, %v5039
    %v5041 = vand.u32 %v5040, 4294901760
    %5042 = vmatpush.msra.mxu0 %v5041
    %v5043 = vand.u32 %v4823, 4294901760
    %5044 = vmatmul.f32.gmra.mxu0 %v5043
    %v5045 = vpop.f32.mrf.mxu0
    %v5046 = vadd.f32 %v5015, %v5045
    %5047 = vdwg.mxu0
    %5048 = vmatpush.msra.mxu0 0.0
    %5049 = vmatpush.msra.mxu0 0.0
    %5050 = vmatpush.msra.mxu0 0.0
    %5051 = vmatpush.msra.mxu0 0.0
    %5052 = vmatpush.msra.mxu0 0.0
    %5053 = vmatpush.msra.mxu0 0.0
    %5054 = vmatpush.msra.mxu0 0.0
    %5055 = vmatpush.msra.mxu0 0.0
    %5056 = vmatpush.msra.mxu0 0.0
    %5057 = vmatpush.msra.mxu0 0.0
    %5058 = vmatpush.msra.mxu0 0.0
    %5059 = vmatpush.msra.mxu0 0.0
    %5060 = vmatpush.msra.mxu0 0.0
    %5061 = vmatpush.msra.mxu0 0.0
    %v5062 = vand.u32 %v4829, 4294901760
    %v5063 = vsub.f32 %v4829, %v5062
    %5064 = vmatpush.msra.mxu0 %v5063
    %v5065 = vand.u32 %v4817, 4294901760
    %v5066 = vsub.f32 %v4817, %v5065
    %5067 = vmatpush.msra.mxu0 %v5066
    %v5068 = vand.u32 %v4823, 4294901760
    %v5069 = vsub.f32 %v4823, %v5068
    %5070 = vmatmul.f32.gmra.mxu0 %v5069
    %v5071 = vpop.f32.mrf.mxu0
    %v5072 = vadd.f32 %v5046, %v5071
    %5073 = vdwg.mxu0
    %5074 = vmatpush.msra.mxu0 0.0
    %5075 = vmatpush.msra.mxu0 0.0
    %5076 = vmatpush.msra.mxu0 0.0
    %5077 = vmatpush.msra.mxu0 0.0
    %5078 = vmatpush.msra.mxu0 0.0
    %5079 = vmatpush.msra.mxu0 0.0
    %5080 = vmatpush.msra.mxu0 0.0
    %5081 = vmatpush.msra.mxu0 0.0
    %5082 = vmatpush.msra.mxu0 0.0
    %5083 = vmatpush.msra.mxu0 0.0
    %5084 = vmatpush.msra.mxu0 0.0
    %5085 = vmatpush.msra.mxu0 0.0
    %5086 = vmatpush.msra.mxu0 0.0
    %5087 = vmatpush.msra.mxu0 0.0
    %v5088 = vand.u32 %v4829, 4294901760
    %5089 = vmatpush.msra.mxu0 %v5088
    %v5090 = vand.u32 %v4817, 4294901760
    %5091 = vmatpush.msra.mxu0 %v5090
    %v5092 = vand.u32 %v4823, 4294901760
    %v5093 = vsub.f32 %v4823, %v5092
    %v5094 = vand.u32 %v5093, 4294901760
    %5095 = vmatmul.f32.gmra.mxu0 %v5094
    %v5096 = vpop.f32.mrf.mxu0
    %v5097 = vadd.f32 %v5072, %v5096
    %5098 = vdwg.mxu0
    %5099 = vmatpush.msra.mxu0 0.0
    %5100 = vmatpush.msra.mxu0 0.0
    %5101 = vmatpush.msra.mxu0 0.0
    %5102 = vmatpush.msra.mxu0 0.0
    %5103 = vmatpush.msra.mxu0 0.0
    %5104 = vmatpush.msra.mxu0 0.0
    %5105 = vmatpush.msra.mxu0 0.0
    %5106 = vmatpush.msra.mxu0 0.0
    %5107 = vmatpush.msra.mxu0 0.0
    %5108 = vmatpush.msra.mxu0 0.0
    %5109 = vmatpush.msra.mxu0 0.0
    %5110 = vmatpush.msra.mxu0 0.0
    %5111 = vmatpush.msra.mxu0 0.0
    %5112 = vmatpush.msra.mxu0 0.0
    %v5113 = vand.u32 %v4829, 4294901760
    %v5114 = vsub.f32 %v4829, %v5113
    %v5115 = vand.u32 %v5114, 4294901760
    %5116 = vmatpush.msra.mxu0 %v5115
    %v5117 = vand.u32 %v4817, 4294901760
    %v5118 = vsub.f32 %v4817, %v5117
    %v5119 = vand.u32 %v5118, 4294901760
    %5120 = vmatpush.msra.mxu0 %v5119
    %v5121 = vand.u32 %v4823, 4294901760
    %5122 = vmatmul.f32.gmra.mxu0 %v5121
    %v5123 = vpop.f32.mrf.mxu0
    %v5124 = vadd.f32 %v5097, %v5123
    %5125 = vdwg.mxu0
    %5126 = vmatpush.msra.mxu0 0.0
    %5127 = vmatpush.msra.mxu0 0.0
    %5128 = vmatpush.msra.mxu0 0.0
    %5129 = vmatpush.msra.mxu0 0.0
    %5130 = vmatpush.msra.mxu0 0.0
    %5131 = vmatpush.msra.mxu0 0.0
    %5132 = vmatpush.msra.mxu0 0.0
    %5133 = vmatpush.msra.mxu0 0.0
    %5134 = vmatpush.msra.mxu0 0.0
    %5135 = vmatpush.msra.mxu0 0.0
    %5136 = vmatpush.msra.mxu0 0.0
    %5137 = vmatpush.msra.mxu0 0.0
    %5138 = vmatpush.msra.mxu0 0.0
    %5139 = vmatpush.msra.mxu0 0.0
    %v5140 = vand.u32 %v4829, 4294901760
    %5141 = vmatpush.msra.mxu0 %v5140
    %v5142 = vand.u32 %v4817, 4294901760
    %5143 = vmatpush.msra.mxu0 %v5142
    %v5144 = vand.u32 %v4823, 4294901760
    %5145 = vmatmul.f32.gmra.mxu0 %v5144
    %v5146 = vpop.f32.mrf.mxu0
    %v5147 = vadd.f32 %v5124, %v5146
    %5148 = vdwg.mxu0
    %v5149 = vld [vmem:[%s13] sm:$0xff]
    %v5150 = vld [vmem:[%s13 + $0x8] sm:$0xff]
    %v5151 = vld [vmem:[%s13 + $0x10] sm:$0xff]
    %v5152 = vld [vmem:[%s13 + $0x18] sm:$0xff]
    %v5153 = vld [vmem:[%s13 + $0x20] sm:$0xff]
    %v5154 = vld [vmem:[%s13 + $0x28] sm:$0xff]
    %v5155 = vld [vmem:[%s13 + $0x30] sm:$0xff]
    %v5156 = vld [vmem:[%s13 + $0x38] sm:$0xff]
    %v5157 = vld [vmem:[%s13 + $0x40] sm:$0xff]
    %v5158 = vld [vmem:[%s13 + $0x48] sm:$0xff]
    %v5159 = vld [vmem:[%s13 + $0x50] sm:$0xff]
    %v5160 = vld [vmem:[%s13 + $0x58] sm:$0xff]
    %v5161 = vld [vmem:[%s13 + $0x60] sm:$0xff]
    %v5162 = vld [vmem:[%s13 + $0x68] sm:$0xff]
    %v5163 = vld [vmem:[%s13 + $0x70] sm:$0xff]
    %v5164 = vld [vmem:[%s13 + $0x78] sm:$0xff]
    %v5165 = vld [vmem:[%s13 + $0x80] sm:$0xff]
    %v5166 = vld [vmem:[%s13 + $0x88] sm:$0xff]
    %v5167 = vld [vmem:[%s13 + $0x90] sm:$0xff]
    %v5168 = vld [vmem:[%s13 + $0x98] sm:$0xff]
    %v5169 = vld [vmem:[%s14] sm:$0x1]
    %v5171 = vperm.slane %v5169, 0
    %v5174 = vsel %vm1564, %v5147, 0
    %v5176 = vand.u32 %v5164, 4294901760
    %5177 = vmatpush.msra.mxu0 %v5176
    %v5178 = vand.u32 %v5163, 4294901760
    %5179 = vmatpush.msra.mxu0 %v5178
    %v5180 = vand.u32 %v5162, 4294901760
    %5181 = vmatpush.msra.mxu0 %v5180
    %v5182 = vand.u32 %v5161, 4294901760
    %5183 = vmatpush.msra.mxu0 %v5182
    %v5184 = vand.u32 %v5160, 4294901760
    %5185 = vmatpush.msra.mxu0 %v5184
    %v5186 = vand.u32 %v5159, 4294901760
    %5187 = vmatpush.msra.mxu0 %v5186
    %v5188 = vand.u32 %v5158, 4294901760
    %5189 = vmatpush.msra.mxu0 %v5188
    %v5190 = vand.u32 %v5157, 4294901760
    %5191 = vmatpush.msra.mxu0 %v5190
    %v5192 = vand.u32 %v5156, 4294901760
    %5193 = vmatpush.msra.mxu0 %v5192
    %v5194 = vand.u32 %v5155, 4294901760
    %5195 = vmatpush.msra.mxu0 %v5194
    %v5196 = vand.u32 %v5154, 4294901760
    %5197 = vmatpush.msra.mxu0 %v5196
    %v5198 = vand.u32 %v5153, 4294901760
    %5199 = vmatpush.msra.mxu0 %v5198
    %v5200 = vand.u32 %v5152, 4294901760
    %5201 = vmatpush.msra.mxu0 %v5200
    %v5202 = vand.u32 %v5151, 4294901760
    %5203 = vmatpush.msra.mxu0 %v5202
    %v5204 = vand.u32 %v5150, 4294901760
    %5205 = vmatpush.msra.mxu0 %v5204
    %v5206 = vand.u32 %v5149, 4294901760
    %5207 = vmatpush.msra.mxu0 %v5206
    %v5208 = vand.u32 %v4988, 4294901760
    %v5209 = vsub.f32 %v4988, %v5208
    %v5210 = vand.u32 %v5209, 4294901760
    %v5211 = vsub.f32 %v5209, %v5210
    %v5212 = vand.u32 %v5211, 4294901760
    %5213 = vmatmul.f32.gmra.mxu0 %v5212
    %v5214 = vpop.f32.mrf.mxu0
    %v5215 = vadd.f32 %v5171, %v5214
    %5216 = vdwg.mxu0
    %v5217 = vand.u32 %v5164, 4294901760
    %v5218 = vsub.f32 %v5164, %v5217
    %v5219 = vand.u32 %v5218, 4294901760
    %v5220 = vsub.f32 %v5218, %v5219
    %v5221 = vand.u32 %v5220, 4294901760
    %5222 = vmatpush.msra.mxu0 %v5221
    %v5223 = vand.u32 %v5163, 4294901760
    %v5224 = vsub.f32 %v5163, %v5223
    %v5225 = vand.u32 %v5224, 4294901760
    %v5226 = vsub.f32 %v5224, %v5225
    %v5227 = vand.u32 %v5226, 4294901760
    %5228 = vmatpush.msra.mxu0 %v5227
    %v5229 = vand.u32 %v5162, 4294901760
    %v5230 = vsub.f32 %v5162, %v5229
    %v5231 = vand.u32 %v5230, 4294901760
    %v5232 = vsub.f32 %v5230, %v5231
    %v5233 = vand.u32 %v5232, 4294901760
    %5234 = vmatpush.msra.mxu0 %v5233
    %v5235 = vand.u32 %v5161, 4294901760
    %v5236 = vsub.f32 %v5161, %v5235
    %v5237 = vand.u32 %v5236, 4294901760
    %v5238 = vsub.f32 %v5236, %v5237
    %v5239 = vand.u32 %v5238, 4294901760
    %5240 = vmatpush.msra.mxu0 %v5239
    %v5241 = vand.u32 %v5160, 4294901760
    %v5242 = vsub.f32 %v5160, %v5241
    %v5243 = vand.u32 %v5242, 4294901760
    %v5244 = vsub.f32 %v5242, %v5243
    %v5245 = vand.u32 %v5244, 4294901760
    %5246 = vmatpush.msra.mxu0 %v5245
    %v5247 = vand.u32 %v5159, 4294901760
    %v5248 = vsub.f32 %v5159, %v5247
    %v5249 = vand.u32 %v5248, 4294901760
    %v5250 = vsub.f32 %v5248, %v5249
    %v5251 = vand.u32 %v5250, 4294901760
    %5252 = vmatpush.msra.mxu0 %v5251
    %v5253 = vand.u32 %v5158, 4294901760
    %v5254 = vsub.f32 %v5158, %v5253
    %v5255 = vand.u32 %v5254, 4294901760
    %v5256 = vsub.f32 %v5254, %v5255
    %v5257 = vand.u32 %v5256, 4294901760
    %5258 = vmatpush.msra.mxu0 %v5257
    %v5259 = vand.u32 %v5157, 4294901760
    %v5260 = vsub.f32 %v5157, %v5259
    %v5261 = vand.u32 %v5260, 4294901760
    %v5262 = vsub.f32 %v5260, %v5261
    %v5263 = vand.u32 %v5262, 4294901760
    %5264 = vmatpush.msra.mxu0 %v5263
    %v5265 = vand.u32 %v5156, 4294901760
    %v5266 = vsub.f32 %v5156, %v5265
    %v5267 = vand.u32 %v5266, 4294901760
    %v5268 = vsub.f32 %v5266, %v5267
    %v5269 = vand.u32 %v5268, 4294901760
    %5270 = vmatpush.msra.mxu0 %v5269
    %v5271 = vand.u32 %v5155, 4294901760
    %v5272 = vsub.f32 %v5155, %v5271
    %v5273 = vand.u32 %v5272, 4294901760
    %v5274 = vsub.f32 %v5272, %v5273
    %v5275 = vand.u32 %v5274, 4294901760
    %5276 = vmatpush.msra.mxu0 %v5275
    %v5277 = vand.u32 %v5154, 4294901760
    %v5278 = vsub.f32 %v5154, %v5277
    %v5279 = vand.u32 %v5278, 4294901760
    %v5280 = vsub.f32 %v5278, %v5279
    %v5281 = vand.u32 %v5280, 4294901760
    %5282 = vmatpush.msra.mxu0 %v5281
    %v5283 = vand.u32 %v5153, 4294901760
    %v5284 = vsub.f32 %v5153, %v5283
    %v5285 = vand.u32 %v5284, 4294901760
    %v5286 = vsub.f32 %v5284, %v5285
    %v5287 = vand.u32 %v5286, 4294901760
    %5288 = vmatpush.msra.mxu0 %v5287
    %v5289 = vand.u32 %v5152, 4294901760
    %v5290 = vsub.f32 %v5152, %v5289
    %v5291 = vand.u32 %v5290, 4294901760
    %v5292 = vsub.f32 %v5290, %v5291
    %v5293 = vand.u32 %v5292, 4294901760
    %5294 = vmatpush.msra.mxu0 %v5293
    %v5295 = vand.u32 %v5151, 4294901760
    %v5296 = vsub.f32 %v5151, %v5295
    %v5297 = vand.u32 %v5296, 4294901760
    %v5298 = vsub.f32 %v5296, %v5297
    %v5299 = vand.u32 %v5298, 4294901760
    %5300 = vmatpush.msra.mxu0 %v5299
    %v5301 = vand.u32 %v5150, 4294901760
    %v5302 = vsub.f32 %v5150, %v5301
    %v5303 = vand.u32 %v5302, 4294901760
    %v5304 = vsub.f32 %v5302, %v5303
    %v5305 = vand.u32 %v5304, 4294901760
    %5306 = vmatpush.msra.mxu0 %v5305
    %v5307 = vand.u32 %v5149, 4294901760
    %v5308 = vsub.f32 %v5149, %v5307
    %v5309 = vand.u32 %v5308, 4294901760
    %v5310 = vsub.f32 %v5308, %v5309
    %v5311 = vand.u32 %v5310, 4294901760
    %5312 = vmatpush.msra.mxu0 %v5311
    %v5313 = vand.u32 %v4988, 4294901760
    %5314 = vmatmul.f32.gmra.mxu0 %v5313
    %v5315 = vpop.f32.mrf.mxu0
    %v5316 = vadd.f32 %v5215, %v5315
    %5317 = vdwg.mxu0
    %v5318 = vand.u32 %v5164, 4294901760
    %v5319 = vsub.f32 %v5164, %v5318
    %5320 = vmatpush.msra.mxu0 %v5319
    %v5321 = vand.u32 %v5163, 4294901760
    %v5322 = vsub.f32 %v5163, %v5321
    %5323 = vmatpush.msra.mxu0 %v5322
    %v5324 = vand.u32 %v5162, 4294901760
    %v5325 = vsub.f32 %v5162, %v5324
    %5326 = vmatpush.msra.mxu0 %v5325
    %v5327 = vand.u32 %v5161, 4294901760
    %v5328 = vsub.f32 %v5161, %v5327
    %5329 = vmatpush.msra.mxu0 %v5328
    %v5330 = vand.u32 %v5160, 4294901760
    %v5331 = vsub.f32 %v5160, %v5330
    %5332 = vmatpush.msra.mxu0 %v5331
    %v5333 = vand.u32 %v5159, 4294901760
    %v5334 = vsub.f32 %v5159, %v5333
    %5335 = vmatpush.msra.mxu0 %v5334
    %v5336 = vand.u32 %v5158, 4294901760
    %v5337 = vsub.f32 %v5158, %v5336
    %5338 = vmatpush.msra.mxu0 %v5337
    %v5339 = vand.u32 %v5157, 4294901760
    %v5340 = vsub.f32 %v5157, %v5339
    %5341 = vmatpush.msra.mxu0 %v5340
    %v5342 = vand.u32 %v5156, 4294901760
    %v5343 = vsub.f32 %v5156, %v5342
    %5344 = vmatpush.msra.mxu0 %v5343
    %v5345 = vand.u32 %v5155, 4294901760
    %v5346 = vsub.f32 %v5155, %v5345
    %5347 = vmatpush.msra.mxu0 %v5346
    %v5348 = vand.u32 %v5154, 4294901760
    %v5349 = vsub.f32 %v5154, %v5348
    %5350 = vmatpush.msra.mxu0 %v5349
    %v5351 = vand.u32 %v5153, 4294901760
    %v5352 = vsub.f32 %v5153, %v5351
    %5353 = vmatpush.msra.mxu0 %v5352
    %v5354 = vand.u32 %v5152, 4294901760
    %v5355 = vsub.f32 %v5152, %v5354
    %5356 = vmatpush.msra.mxu0 %v5355
    %v5357 = vand.u32 %v5151, 4294901760
    %v5358 = vsub.f32 %v5151, %v5357
    %5359 = vmatpush.msra.mxu0 %v5358
    %v5360 = vand.u32 %v5150, 4294901760
    %v5361 = vsub.f32 %v5150, %v5360
    %5362 = vmatpush.msra.mxu0 %v5361
    %v5363 = vand.u32 %v5149, 4294901760
    %v5364 = vsub.f32 %v5149, %v5363
    %5365 = vmatpush.msra.mxu0 %v5364
    %v5366 = vand.u32 %v4988, 4294901760
    %v5367 = vsub.f32 %v4988, %v5366
    %5368 = vmatmul.f32.gmra.mxu0 %v5367
    %v5369 = vpop.f32.mrf.mxu0
    %v5370 = vadd.f32 %v5316, %v5369
    %5371 = vdwg.mxu0
    %v5372 = vand.u32 %v5164, 4294901760
    %5373 = vmatpush.msra.mxu0 %v5372
    %v5374 = vand.u32 %v5163, 4294901760
    %5375 = vmatpush.msra.mxu0 %v5374
    %v5376 = vand.u32 %v5162, 4294901760
    %5377 = vmatpush.msra.mxu0 %v5376
    %v5378 = vand.u32 %v5161, 4294901760
    %5379 = vmatpush.msra.mxu0 %v5378
    %v5380 = vand.u32 %v5160, 4294901760
    %5381 = vmatpush.msra.mxu0 %v5380
    %v5382 = vand.u32 %v5159, 4294901760
    %5383 = vmatpush.msra.mxu0 %v5382
    %v5384 = vand.u32 %v5158, 4294901760
    %5385 = vmatpush.msra.mxu0 %v5384
    %v5386 = vand.u32 %v5157, 4294901760
    %5387 = vmatpush.msra.mxu0 %v5386
    %v5388 = vand.u32 %v5156, 4294901760
    %5389 = vmatpush.msra.mxu0 %v5388
    %v5390 = vand.u32 %v5155, 4294901760
    %5391 = vmatpush.msra.mxu0 %v5390
    %v5392 = vand.u32 %v5154, 4294901760
    %5393 = vmatpush.msra.mxu0 %v5392
    %v5394 = vand.u32 %v5153, 4294901760
    %5395 = vmatpush.msra.mxu0 %v5394
    %v5396 = vand.u32 %v5152, 4294901760
    %5397 = vmatpush.msra.mxu0 %v5396
    %v5398 = vand.u32 %v5151, 4294901760
    %5399 = vmatpush.msra.mxu0 %v5398
    %v5400 = vand.u32 %v5150, 4294901760
    %5401 = vmatpush.msra.mxu0 %v5400
    %v5402 = vand.u32 %v5149, 4294901760
    %5403 = vmatpush.msra.mxu0 %v5402
    %v5404 = vand.u32 %v4988, 4294901760
    %v5405 = vsub.f32 %v4988, %v5404
    %v5406 = vand.u32 %v5405, 4294901760
    %5407 = vmatmul.f32.gmra.mxu0 %v5406
    %v5408 = vpop.f32.mrf.mxu0
    %v5409 = vadd.f32 %v5370, %v5408
    %5410 = vdwg.mxu0
    %v5411 = vand.u32 %v5164, 4294901760
    %v5412 = vsub.f32 %v5164, %v5411
    %v5413 = vand.u32 %v5412, 4294901760
    %5414 = vmatpush.msra.mxu0 %v5413
    %v5415 = vand.u32 %v5163, 4294901760
    %v5416 = vsub.f32 %v5163, %v5415
    %v5417 = vand.u32 %v5416, 4294901760
    %5418 = vmatpush.msra.mxu0 %v5417
    %v5419 = vand.u32 %v5162, 4294901760
    %v5420 = vsub.f32 %v5162, %v5419
    %v5421 = vand.u32 %v5420, 4294901760
    %5422 = vmatpush.msra.mxu0 %v5421
    %v5423 = vand.u32 %v5161, 4294901760
    %v5424 = vsub.f32 %v5161, %v5423
    %v5425 = vand.u32 %v5424, 4294901760
    %5426 = vmatpush.msra.mxu0 %v5425
    %v5427 = vand.u32 %v5160, 4294901760
    %v5428 = vsub.f32 %v5160, %v5427
    %v5429 = vand.u32 %v5428, 4294901760
    %5430 = vmatpush.msra.mxu0 %v5429
    %v5431 = vand.u32 %v5159, 4294901760
    %v5432 = vsub.f32 %v5159, %v5431
    %v5433 = vand.u32 %v5432, 4294901760
    %5434 = vmatpush.msra.mxu0 %v5433
    %v5435 = vand.u32 %v5158, 4294901760
    %v5436 = vsub.f32 %v5158, %v5435
    %v5437 = vand.u32 %v5436, 4294901760
    %5438 = vmatpush.msra.mxu0 %v5437
    %v5439 = vand.u32 %v5157, 4294901760
    %v5440 = vsub.f32 %v5157, %v5439
    %v5441 = vand.u32 %v5440, 4294901760
    %5442 = vmatpush.msra.mxu0 %v5441
    %v5443 = vand.u32 %v5156, 4294901760
    %v5444 = vsub.f32 %v5156, %v5443
    %v5445 = vand.u32 %v5444, 4294901760
    %5446 = vmatpush.msra.mxu0 %v5445
    %v5447 = vand.u32 %v5155, 4294901760
    %v5448 = vsub.f32 %v5155, %v5447
    %v5449 = vand.u32 %v5448, 4294901760
    %5450 = vmatpush.msra.mxu0 %v5449
    %v5451 = vand.u32 %v5154, 4294901760
    %v5452 = vsub.f32 %v5154, %v5451
    %v5453 = vand.u32 %v5452, 4294901760
    %5454 = vmatpush.msra.mxu0 %v5453
    %v5455 = vand.u32 %v5153, 4294901760
    %v5456 = vsub.f32 %v5153, %v5455
    %v5457 = vand.u32 %v5456, 4294901760
    %5458 = vmatpush.msra.mxu0 %v5457
    %v5459 = vand.u32 %v5152, 4294901760
    %v5460 = vsub.f32 %v5152, %v5459
    %v5461 = vand.u32 %v5460, 4294901760
    %5462 = vmatpush.msra.mxu0 %v5461
    %v5463 = vand.u32 %v5151, 4294901760
    %v5464 = vsub.f32 %v5151, %v5463
    %v5465 = vand.u32 %v5464, 4294901760
    %5466 = vmatpush.msra.mxu0 %v5465
    %v5467 = vand.u32 %v5150, 4294901760
    %v5468 = vsub.f32 %v5150, %v5467
    %v5469 = vand.u32 %v5468, 4294901760
    %5470 = vmatpush.msra.mxu0 %v5469
    %v5471 = vand.u32 %v5149, 4294901760
    %v5472 = vsub.f32 %v5149, %v5471
    %v5473 = vand.u32 %v5472, 4294901760
    %5474 = vmatpush.msra.mxu0 %v5473
    %v5475 = vand.u32 %v4988, 4294901760
    %5476 = vmatmul.f32.gmra.mxu0 %v5475
    %v5477 = vpop.f32.mrf.mxu0
    %v5478 = vadd.f32 %v5409, %v5477
    %5479 = vdwg.mxu0
    %v5480 = vand.u32 %v5164, 4294901760
    %5481 = vmatpush.msra.mxu0 %v5480
    %v5482 = vand.u32 %v5163, 4294901760
    %5483 = vmatpush.msra.mxu0 %v5482
    %v5484 = vand.u32 %v5162, 4294901760
    %5485 = vmatpush.msra.mxu0 %v5484
    %v5486 = vand.u32 %v5161, 4294901760
    %5487 = vmatpush.msra.mxu0 %v5486
    %v5488 = vand.u32 %v5160, 4294901760
    %5489 = vmatpush.msra.mxu0 %v5488
    %v5490 = vand.u32 %v5159, 4294901760
    %5491 = vmatpush.msra.mxu0 %v5490
    %v5492 = vand.u32 %v5158, 4294901760
    %5493 = vmatpush.msra.mxu0 %v5492
    %v5494 = vand.u32 %v5157, 4294901760
    %5495 = vmatpush.msra.mxu0 %v5494
    %v5496 = vand.u32 %v5156, 4294901760
    %5497 = vmatpush.msra.mxu0 %v5496
    %v5498 = vand.u32 %v5155, 4294901760
    %5499 = vmatpush.msra.mxu0 %v5498
    %v5500 = vand.u32 %v5154, 4294901760
    %5501 = vmatpush.msra.mxu0 %v5500
    %v5502 = vand.u32 %v5153, 4294901760
    %5503 = vmatpush.msra.mxu0 %v5502
    %v5504 = vand.u32 %v5152, 4294901760
    %5505 = vmatpush.msra.mxu0 %v5504
    %v5506 = vand.u32 %v5151, 4294901760
    %5507 = vmatpush.msra.mxu0 %v5506
    %v5508 = vand.u32 %v5150, 4294901760
    %5509 = vmatpush.msra.mxu0 %v5508
    %v5510 = vand.u32 %v5149, 4294901760
    %5511 = vmatpush.msra.mxu0 %v5510
    %v5512 = vand.u32 %v4988, 4294901760
    %5513 = vmatmul.f32.gmra.mxu0 %v5512
    %v5514 = vpop.f32.mrf.mxu0
    %v5515 = vadd.f32 %v5478, %v5514
    %5516 = vdwg.mxu0
    %5517 = vmatpush.msra.mxu0 0.0
    %5518 = vmatpush.msra.mxu0 0.0
    %5519 = vmatpush.msra.mxu0 0.0
    %5520 = vmatpush.msra.mxu0 0.0
    %5521 = vmatpush.msra.mxu0 0.0
    %5522 = vmatpush.msra.mxu0 0.0
    %5523 = vmatpush.msra.mxu0 0.0
    %5524 = vmatpush.msra.mxu0 0.0
    %5525 = vmatpush.msra.mxu0 0.0
    %5526 = vmatpush.msra.mxu0 0.0
    %5527 = vmatpush.msra.mxu0 0.0
    %5528 = vmatpush.msra.mxu0 0.0
    %v5529 = vand.u32 %v5168, 4294901760
    %5530 = vmatpush.msra.mxu0 %v5529
    %v5531 = vand.u32 %v5167, 4294901760
    %5532 = vmatpush.msra.mxu0 %v5531
    %v5533 = vand.u32 %v5166, 4294901760
    %5534 = vmatpush.msra.mxu0 %v5533
    %v5535 = vand.u32 %v5165, 4294901760
    %5536 = vmatpush.msra.mxu0 %v5535
    %v5537 = vand.u32 %v5174, 4294901760
    %v5538 = vsub.f32 %v5174, %v5537
    %v5539 = vand.u32 %v5538, 4294901760
    %v5540 = vsub.f32 %v5538, %v5539
    %v5541 = vand.u32 %v5540, 4294901760
    %5542 = vmatmul.f32.gmra.mxu0 %v5541
    %v5543 = vpop.f32.mrf.mxu0
    %v5544 = vadd.f32 %v5515, %v5543
    %5545 = vdwg.mxu0
    %5546 = vmatpush.msra.mxu0 0.0
    %5547 = vmatpush.msra.mxu0 0.0
    %5548 = vmatpush.msra.mxu0 0.0
    %5549 = vmatpush.msra.mxu0 0.0
    %5550 = vmatpush.msra.mxu0 0.0
    %5551 = vmatpush.msra.mxu0 0.0
    %5552 = vmatpush.msra.mxu0 0.0
    %5553 = vmatpush.msra.mxu0 0.0
    %5554 = vmatpush.msra.mxu0 0.0
    %5555 = vmatpush.msra.mxu0 0.0
    %5556 = vmatpush.msra.mxu0 0.0
    %5557 = vmatpush.msra.mxu0 0.0
    %v5558 = vand.u32 %v5168, 4294901760
    %v5559 = vsub.f32 %v5168, %v5558
    %v5560 = vand.u32 %v5559, 4294901760
    %v5561 = vsub.f32 %v5559, %v5560
    %v5562 = vand.u32 %v5561, 4294901760
    %5563 = vmatpush.msra.mxu0 %v5562
    %v5564 = vand.u32 %v5167, 4294901760
    %v5565 = vsub.f32 %v5167, %v5564
    %v5566 = vand.u32 %v5565, 4294901760
    %v5567 = vsub.f32 %v5565, %v5566
    %v5568 = vand.u32 %v5567, 4294901760
    %5569 = vmatpush.msra.mxu0 %v5568
    %v5570 = vand.u32 %v5166, 4294901760
    %v5571 = vsub.f32 %v5166, %v5570
    %v5572 = vand.u32 %v5571, 4294901760
    %v5573 = vsub.f32 %v5571, %v5572
    %v5574 = vand.u32 %v5573, 4294901760
    %5575 = vmatpush.msra.mxu0 %v5574
    %v5576 = vand.u32 %v5165, 4294901760
    %v5577 = vsub.f32 %v5165, %v5576
    %v5578 = vand.u32 %v5577, 4294901760
    %v5579 = vsub.f32 %v5577, %v5578
    %v5580 = vand.u32 %v5579, 4294901760
    %5581 = vmatpush.msra.mxu0 %v5580
    %v5582 = vand.u32 %v5174, 4294901760
    %5583 = vmatmul.f32.gmra.mxu0 %v5582
    %v5584 = vpop.f32.mrf.mxu0
    %v5585 = vadd.f32 %v5544, %v5584
    %5586 = vdwg.mxu0
    %5587 = vmatpush.msra.mxu0 0.0
    %5588 = vmatpush.msra.mxu0 0.0
    %5589 = vmatpush.msra.mxu0 0.0
    %5590 = vmatpush.msra.mxu0 0.0
    %5591 = vmatpush.msra.mxu0 0.0
    %5592 = vmatpush.msra.mxu0 0.0
    %5593 = vmatpush.msra.mxu0 0.0
    %5594 = vmatpush.msra.mxu0 0.0
    %5595 = vmatpush.msra.mxu0 0.0
    %5596 = vmatpush.msra.mxu0 0.0
    %5597 = vmatpush.msra.mxu0 0.0
    %5598 = vmatpush.msra.mxu0 0.0
    %v5599 = vand.u32 %v5168, 4294901760
    %v5600 = vsub.f32 %v5168, %v5599
    %5601 = vmatpush.msra.mxu0 %v5600
    %v5602 = vand.u32 %v5167, 4294901760
    %v5603 = vsub.f32 %v5167, %v5602
    %5604 = vmatpush.msra.mxu0 %v5603
    %v5605 = vand.u32 %v5166, 4294901760
    %v5606 = vsub.f32 %v5166, %v5605
    %5607 = vmatpush.msra.mxu0 %v5606
    %v5608 = vand.u32 %v5165, 4294901760
    %v5609 = vsub.f32 %v5165, %v5608
    %5610 = vmatpush.msra.mxu0 %v5609
    %v5611 = vand.u32 %v5174, 4294901760
    %v5612 = vsub.f32 %v5174, %v5611
    %5613 = vmatmul.f32.gmra.mxu0 %v5612
    %v5614 = vpop.f32.mrf.mxu0
    %v5615 = vadd.f32 %v5585, %v5614
    %5616 = vdwg.mxu0
    %5617 = vmatpush.msra.mxu0 0.0
    %5618 = vmatpush.msra.mxu0 0.0
    %5619 = vmatpush.msra.mxu0 0.0
    %5620 = vmatpush.msra.mxu0 0.0
    %5621 = vmatpush.msra.mxu0 0.0
    %5622 = vmatpush.msra.mxu0 0.0
    %5623 = vmatpush.msra.mxu0 0.0
    %5624 = vmatpush.msra.mxu0 0.0
    %5625 = vmatpush.msra.mxu0 0.0
    %5626 = vmatpush.msra.mxu0 0.0
    %5627 = vmatpush.msra.mxu0 0.0
    %5628 = vmatpush.msra.mxu0 0.0
    %v5629 = vand.u32 %v5168, 4294901760
    %5630 = vmatpush.msra.mxu0 %v5629
    %v5631 = vand.u32 %v5167, 4294901760
    %5632 = vmatpush.msra.mxu0 %v5631
    %v5633 = vand.u32 %v5166, 4294901760
    %5634 = vmatpush.msra.mxu0 %v5633
    %v5635 = vand.u32 %v5165, 4294901760
    %5636 = vmatpush.msra.mxu0 %v5635
    %v5637 = vand.u32 %v5174, 4294901760
    %v5638 = vsub.f32 %v5174, %v5637
    %v5639 = vand.u32 %v5638, 4294901760
    %5640 = vmatmul.f32.gmra.mxu0 %v5639
    %v5641 = vpop.f32.mrf.mxu0
    %v5642 = vadd.f32 %v5615, %v5641
    %5643 = vdwg.mxu0
    %5644 = vmatpush.msra.mxu0 0.0
    %5645 = vmatpush.msra.mxu0 0.0
    %5646 = vmatpush.msra.mxu0 0.0
    %5647 = vmatpush.msra.mxu0 0.0
    %5648 = vmatpush.msra.mxu0 0.0
    %5649 = vmatpush.msra.mxu0 0.0
    %5650 = vmatpush.msra.mxu0 0.0
    %5651 = vmatpush.msra.mxu0 0.0
    %5652 = vmatpush.msra.mxu0 0.0
    %5653 = vmatpush.msra.mxu0 0.0
    %5654 = vmatpush.msra.mxu0 0.0
    %5655 = vmatpush.msra.mxu0 0.0
    %v5656 = vand.u32 %v5168, 4294901760
    %v5657 = vsub.f32 %v5168, %v5656
    %v5658 = vand.u32 %v5657, 4294901760
    %5659 = vmatpush.msra.mxu0 %v5658
    %v5660 = vand.u32 %v5167, 4294901760
    %v5661 = vsub.f32 %v5167, %v5660
    %v5662 = vand.u32 %v5661, 4294901760
    %5663 = vmatpush.msra.mxu0 %v5662
    %v5664 = vand.u32 %v5166, 4294901760
    %v5665 = vsub.f32 %v5166, %v5664
    %v5666 = vand.u32 %v5665, 4294901760
    %5667 = vmatpush.msra.mxu0 %v5666
    %v5668 = vand.u32 %v5165, 4294901760
    %v5669 = vsub.f32 %v5165, %v5668
    %v5670 = vand.u32 %v5669, 4294901760
    %5671 = vmatpush.msra.mxu0 %v5670
    %v5672 = vand.u32 %v5174, 4294901760
    %5673 = vmatmul.f32.gmra.mxu0 %v5672
    %v5674 = vpop.f32.mrf.mxu0
    %v5675 = vadd.f32 %v5642, %v5674
    %5676 = vdwg.mxu0
    %5677 = vmatpush.msra.mxu0 0.0
    %5678 = vmatpush.msra.mxu0 0.0
    %5679 = vmatpush.msra.mxu0 0.0
    %5680 = vmatpush.msra.mxu0 0.0
    %5681 = vmatpush.msra.mxu0 0.0
    %5682 = vmatpush.msra.mxu0 0.0
    %5683 = vmatpush.msra.mxu0 0.0
    %5684 = vmatpush.msra.mxu0 0.0
    %5685 = vmatpush.msra.mxu0 0.0
    %5686 = vmatpush.msra.mxu0 0.0
    %5687 = vmatpush.msra.mxu0 0.0
    %5688 = vmatpush.msra.mxu0 0.0
    %v5689 = vand.u32 %v5168, 4294901760
    %5690 = vmatpush.msra.mxu0 %v5689
    %v5691 = vand.u32 %v5167, 4294901760
    %5692 = vmatpush.msra.mxu0 %v5691
    %v5693 = vand.u32 %v5166, 4294901760
    %5694 = vmatpush.msra.mxu0 %v5693
    %v5695 = vand.u32 %v5165, 4294901760
    %5696 = vmatpush.msra.mxu0 %v5695
    %v5697 = vand.u32 %v5174, 4294901760
    %5698 = vmatmul.f32.gmra.mxu0 %v5697
    %v5699 = vpop.f32.mrf.mxu0
    %v5700 = vadd.f32 %v5675, %v5699
    %5701 = vdwg.mxu0
    %v5702 = vmax.f32 %v5700, 0.0
    %vm5703 = vcmask 74752
    %5704 = vst.msk [vmem:[#allocation3] sm:$0x3] %vm5703, %v5702
    // Predicated region
    $region62: #{convnet2_forward.1} parent=1 // pred_check
      _
    $region63: #{convnet2_forward.1} parent=1 // pred_check_branch
      %5706 = sbr.rel (0) target = $region65
    $region64: #{convnet2_forward.1} parent=1 // pred_region
      %5708 = vsyncadd [#allocation4], 0
      %s5710 = sshll.u32 [#allocation3], 4
      %s5711 = int_to_ptr.vmem [resolvable:$true] %s5710
      %s5712 = sshll.u32 %s15, 4
      %s5713 = int_to_ptr.hbm [resolvable:$true] %s5712
      %5715 = dma.vmem_to_hbm [thread:$0]  %s5711, 32, %s5713, [#allocation4]
    $region65: #{convnet2_forward.1} parent=1 // pred_fallthru
      _
    // Predicated region
    $region66: #{convnet2_forward.1} parent=1 // pred_check
      _
    $region67: #{convnet2_forward.1} parent=1 // pred_check_branch
      %5717 = sbr.rel (0) target = $region69
    $region68: #{convnet2_forward.1} parent=1 // pred_region
      %5719 = dma.done [#allocation4], 32
    $region69: #{convnet2_forward.1} parent=1 // pred_fallthru
      _
    %5720 = vsyncpa [#allocation4], 1

</llo_original>
